<compile_context>
chip_gen: v5e
topology: v5e:2x2
jax: 0.10.0
libtpu: 0.0.40
codegen_flags: <defaults>
</compile_context>

<pallas_src>
import math

import jax
import jax.numpy as jnp
from jax.experimental import pallas as pl
from jax.experimental.pallas import tpu as pltpu

# -------------------------- model configuration ------------------------------
DIM = 32          # "dim"       (512 in the real model)
DIM_COND = 16     # "dim_cond"  (256 in the real model)
N_WN = 4          # len(wn_seq)
DIL_CYCLE = 4     # dilation_cycle_length
N_LYNX = 2
LYNX_K = 31       # LYNXConvModule kernel_size
EXPANSION = 2     # LYNXNet expansion factor
EPS = 1e-5        # LayerNorm eps (PyTorch default)
SQRT2 = math.sqrt(2.0)

MAX_DIL = 2 ** (DIL_CYCLE - 1)                 # largest WaveNet dilation (8)
WN_PAD = ((MAX_DIL + 7) // 8) * 8              # sublane-aligned halo for k=3 conv
LYNX_HALF = LYNX_K // 2                        # 15
LYNX_PAD = ((LYNX_HALF + 7) // 8) * 8          # sublane-aligned halo (16)


# ------------------------------ kernel helpers --------------------------------
def _layernorm(v, g, b):
    mu = jnp.mean(v, axis=-1, keepdims=True)
    var = jnp.mean(jnp.square(v - mu), axis=-1, keepdims=True)
    return (v - mu) * jax.lax.rsqrt(var + EPS) * g + b


# --------------------------------- kernel -------------------------------------
def _packed_block_kernel(
    wnx_ref, lyx_ref, cond_ref, dstep_ref,
    # WaveNet (gate|filter and residual|skip fused; cond / diff-step stacked;
    # dilated-conv taps stacked along the input axis for a single GEMM)
    dil_w, dil_b, dif_w, dif_b, cnd_w, cnd_b, out_w, out_b,
    # LYNXNet (GLU a|b fused; cond / diff-step stacked)
    lx_dif_w, lx_dif_b, lx_cnd_w, lx_cnd_b, lx_ln_g, lx_ln_b,
    lx_pw1_w, lx_pw1_b, lx_dw_w, lx_dw_b, lx_prelu, lx_pw2_w, lx_pw2_b,
    # PackedBlock merge
    w2l_w, w2l_b, wnn_g, wnn_b, l2w1_w, l2w1_b, l2w2_w, l2w2_b,
    lstep_w, lstep_b, nrm_g_wn, nrm_b_wn, nrm_g_lx, nrm_b_lx,
    # outputs
    o_wn_ref, o_lx_ref,
):
    f32 = jnp.float32
    bf16 = jnp.bfloat16
    T, D = wnx_ref.shape[1], wnx_ref.shape[2]
    DL = lyx_ref.shape[2]                      # 2*D
    IN = EXPANSION * DL                        # 4*D
    DOUT = 2 * D

    def dot(a, w):
        return jnp.dot(a, w, preferred_element_type=f32)

    wn_x = wnx_ref[0].astype(f32)              # (T, D)
    lynx_x = lyx_ref[0].astype(f32)            # (T, 2D)
    cond_bf = cond_ref[0].astype(bf16)         # (T, C)
    dstep_bf = dstep_ref[0].astype(bf16)       # (1, D)

    # ---------- layer-invariant projections: hoisted, stacked, fused ----------
    wn_cnd_all = dot(cond_bf, cnd_w[...]) + cnd_b[...]        # (T, N_WN*2D) gate|filter
    wn_dif_all = dot(dstep_bf, dif_w[...]) + dif_b[...]       # (1, N_WN*D)
    lstep = dot(dstep_bf, lstep_w[...]) + lstep_b[...]        # (1, 2D)  lynx_step
    lx_dif_all = dot(lstep.astype(bf16), lx_dif_w[...]) + lx_dif_b[...]   # (1, N_LYNX*2D)
    lx_cnd_all = dot(cond_bf, lx_cnd_w[...]) + lx_cnd_b[...]  # (T, N_LYNX*2D)

    # ---------------- WaveNet residual blocks (k=3 dilated conv) --------------
    zpad_y = jnp.zeros((WN_PAD, D), f32)
    conn_sum = jnp.zeros((T, D), f32)
    for i in range(N_WN):
        dil = 2 ** (i % DIL_CYCLE)
        # diffusion_projection: Linear(D,D), broadcast over time
        y = wn_x + wn_dif_all[:, i * D:(i + 1) * D]                    # (T, D)
        # zero-padded shift buffer replaces any shift-matrix matmuls
        yp = jnp.concatenate([zpad_y, y, zpad_y], axis=0)              # (T+2*WN_PAD, D)
        # stack the 3 taps along lanes -> one MXU GEMM for the dilated conv
        taps = jnp.concatenate(
            [yp[WN_PAD - dil:WN_PAD - dil + T, :],                     # t - dil
             y,                                                        # t
             yp[WN_PAD + dil:WN_PAD + dil + T, :]],                    # t + dil
            axis=-1).astype(bf16)                                      # (T, 3D)
        # dilated_conv(y) + conditioner_projection(cond), gate|filter fused
        gf = (wn_cnd_all[:, i * DOUT:(i + 1) * DOUT] + dil_b[i]
              + dot(taps, dil_w[i]))                                   # (T, 2D)
        z = jax.nn.sigmoid(gf[:, :D]) * jnp.tanh(gf[:, D:])            # (T, D)
        # output_projection, residual|skip fused
        rs = dot(z.astype(bf16), out_w[i]) + out_b[i]                  # (T, 2D)
        wn_x = (wn_x + rs[:, :D]) * (1.0 / SQRT2)
        conn_sum = conn_sum + rs[:, D:]
    connects = conn_sum * (1.0 / math.sqrt(N_WN))

    # ---------------- LYNXNet residual layers (k=31 depthwise conv) -----------
    zpad_u = jnp.zeros((LYNX_PAD, IN), f32)
    for j in range(N_LYNX):
        res = lynx_x
        h = (lynx_x
             + lx_dif_all[:, j * DL:(j + 1) * DL]
             + lx_cnd_all[:, j * DL:(j + 1) * DL])
        hn = _layernorm(h, lx_ln_g[j], lx_ln_b[j])
        # pointwise conv (2D -> 2*IN), fused GLU halves, then GLU
        glu = dot(hn.astype(bf16), lx_pw1_w[j]) + lx_pw1_b[j]          # (T, 2*IN)
        u = glu[:, :IN] * jax.nn.sigmoid(glu[:, IN:])                  # (T, IN)
        # depthwise conv (k=31, same padding) as pad + shifted VPU MACs
        up = jnp.concatenate([zpad_u, u, zpad_u], axis=0)              # (T+2*LYNX_PAD, IN)
        dwj = lx_dw_w[j]                                               # (31, IN)
        dacc = jnp.zeros((T, IN), f32)
        for k in range(LYNX_K):
            off = LYNX_PAD + k - LYNX_HALF
            dacc = dacc + up[off:off + T, :] * dwj[k:k + 1, :]
        dacc = dacc + lx_dw_b[j]
        # PReLU (per inner channel)
        alpha = lx_prelu[j]                                            # (1, IN)
        act = jnp.where(dacc >= 0.0, dacc, alpha * dacc)
        # pointwise conv (IN -> 2D); nn.Dropout(0.1) is identity in eval mode
        q = dot(act.astype(bf16), lx_pw2_w[j]) + lx_pw2_b[j]
        lynx_x = q + res

    # -------------------------------- merge ------------------------------------
    connects_n = _layernorm(connects, wnn_g[...], wnn_b[...])          # wn_norm
    t1 = dot(lynx_x.astype(bf16), l2w1_w[...]) + l2w1_b[...]
    t1 = t1 * jax.nn.sigmoid(t1)                                       # SiLU
    t2 = dot(t1.astype(bf16), l2w2_w[...]) + l2w2_b[...]
    part_wn = wn_x + t2                                                # (T, D)
    part_lx = lynx_x + dot(connects_n.astype(bf16), w2l_w[...]) + w2l_b[...]   # (T, 2D)

    # final LayerNorm over the concatenated 3D channels (stats computed across
    # both parts, so no lane-dim concatenation is needed inside the kernel)
    n_tot = D + DL
    tot = jnp.sum(part_wn, axis=-1, keepdims=True) + jnp.sum(part_lx, axis=-1, keepdims=True)
    mu = tot / n_tot
    q1 = jnp.sum(jnp.square(part_wn - mu), axis=-1, keepdims=True)
    q2 = jnp.sum(jnp.square(part_lx - mu), axis=-1, keepdims=True)
    inv = jax.lax.rsqrt((q1 + q2) / n_tot + EPS)
    o_wn_ref[0] = ((part_wn - mu) * inv * nrm_g_wn[...] + nrm_b_wn[...]).astype(o_wn_ref.dtype)
    o_lx_ref[0] = ((part_lx - mu) * inv * nrm_g_lx[...] + nrm_b_lx[...]).astype(o_lx_ref.dtype)


# ------------------------------ parameter init --------------------------------
def init_params(key):
    """Synthetic parameters, already in kernel (channel-last, fused, bf16) form."""
    D, C = DIM, DIM_COND
    DL, IN = 2 * D, EXPANSION * 2 * D
    keys = iter(jax.random.split(key, 64))

    def w(shape, fan_in, dtype=jnp.bfloat16):
        return (jax.random.normal(next(keys), shape, jnp.float32)
                / math.sqrt(fan_in)).astype(dtype)

    def b(shape, scale=0.02):
        return jax.random.normal(next(keys), shape, jnp.float32) * scale

    params = [
        # ---- WaveNet ResidualBlocks ----
        w((N_WN, 3 * D, 2 * D), 3 * D),       # dil_w   dilated conv, taps stacked, gate|filter fused
        b((N_WN, 1, 2 * D)),                  # dil_b
        w((D, N_WN * D), D),                  # dif_w   diffusion Linear(D,D), stacked over layers
        b((1, N_WN * D)),                     # dif_b
        w((C, N_WN * 2 * D), C),              # cnd_w   conditioner 1x1, stacked, gate|filter fused
        b((1, N_WN * 2 * D)),                 # cnd_b
        w((N_WN, D, 2 * D), D),               # out_w   output 1x1, residual|skip fused
        b((N_WN, 1, 2 * D)),                  # out_b
        # ---- LYNXNet residual layers ----
        w((DL, N_LYNX * DL), DL),             # lx_dif_w  Conv1d(2D,2D,1), stacked over layers
        b((1, N_LYNX * DL)),                  # lx_dif_b
        w((C, N_LYNX * DL), C),               # lx_cnd_w  Conv1d(C,2D,1), stacked over layers
        b((1, N_LYNX * DL)),                  # lx_cnd_b
        1.0 + b((N_LYNX, 1, DL)),             # lx_ln_g   LayerNorm(2D)
        b((N_LYNX, 1, DL)),                   # lx_ln_b
        w((N_LYNX, DL, 2 * IN), DL),          # lx_pw1_w  Conv1d(2D,2*IN,1), GLU a|b fused
        b((N_LYNX, 1, 2 * IN)),               # lx_pw1_b
        w((N_LYNX, LYNX_K, IN), LYNX_K, dtype=jnp.float32),  # lx_dw_w depthwise (VPU, f32)
        b((N_LYNX, 1, IN)),                   # lx_dw_b
        jnp.full((N_LYNX, 1, IN), 0.25, jnp.float32),        # lx_prelu (PyTorch default)
        w((N_LYNX, IN, DL), IN),              # lx_pw2_w  Conv1d(IN,2D,1)
        b((N_LYNX, 1, DL)),                   # lx_pw2_b
        # ---- PackedBlock projections / norms ----
        w((D, DL), D),                        # w2l_w    wn_to_lynx: Conv1d(D,2D,1)
        b((1, DL)),                           # w2l_b
        1.0 + b((1, D)),                      # wnn_g    wn_norm: LayerNorm(D)
        b((1, D)),                            # wnn_b
        w((DL, DL), DL),                      # l2w1_w   lynx_to_wn[0]: Conv1d(2D,2D,1)
        b((1, DL)),                           # l2w1_b
        w((DL, D), DL),                       # l2w2_w   lynx_to_wn[2]: Conv1d(2D,D,1)
        b((1, D)),                            # l2w2_b
        w((D, DL), D),                        # lstep_w  lynx_step: Conv1d(D,2D,1)
        b((1, DL)),                           # lstep_b
        1.0 + b((1, D)),                      # nrm_g_wn norm: LayerNorm(3D), first D ch.
        b((1, D)),                            # nrm_b_wn
        1.0 + b((1, DL)),                     # nrm_g_lx norm: LayerNorm(3D), last 2D ch.
        b((1, DL)),                           # nrm_b_lx
    ]
    return params


# --------------------------------- wrapper -------------------------------------
def _pick_vmem_limit_bytes():
    # v7x has 64 MiB/TC, v5e/v6e have 128 MiB: derive the scoped limit with
    # headroom instead of hard-coding the full physical VMEM.
    cap = 128 * 1024 * 1024
    try:
        cap = pltpu.get_tpu_info().vmem_capacity_bytes
    except Exception:
        pass
    return int(min(max(cap - 16 * 1024 * 1024, 32 * 1024 * 1024), 96 * 1024 * 1024))


def packed_block_forward(x, cond, diffstep, params):
    """x: (B, 3*DIM, T), cond: (B, DIM_COND, T), diffstep: (B, DIM) -> (B, 3*DIM, T)."""
    B, _, T = x.shape
    D = DIM

    x_tc = jnp.transpose(x, (0, 2, 1)).astype(jnp.float32)      # (B, T, 3D)
    wn_x = x_tc[:, :, :D]                                       # torch.split glue
    lynx_x = x_tc[:, :, D:]
    cond_tc = jnp.transpose(cond, (0, 2, 1)).astype(jnp.float32)
    dstep = diffstep.astype(jnp.float32)[:, None, :]             # (B, 1, D)

    def batch_spec(shape):
        nd = len(shape)
        return pl.BlockSpec((1,) + tuple(shape[1:]),
                            lambda b, nd=nd: (b,) + (0,) * (nd - 1))

    def full_spec(shape):
        nd = len(shape)
        return pl.BlockSpec(tuple(shape), lambda b, nd=nd: (0,) * nd)

    in_specs = [batch_spec(wn_x.shape), batch_spec(lynx_x.shape),
                batch_spec(cond_tc.shape), batch_spec(dstep.shape)]
    # Weights are grid-invariant (fetched once); at real model size (D=512)
    # they should be single-buffered (pipeline_mode=pl.Buffered(1)) or
    # streamed per layer via a layer grid axis to fit v7x's 64 MiB VMEM.
    in_specs += [full_spec(p.shape) for p in params]

    out_shape = (jax.ShapeDtypeStruct((B, T, D), jnp.float32),
                 jax.ShapeDtypeStruct((B, T, 2 * D), jnp.float32))
    out_specs = (batch_spec((B, T, D)), batch_spec((B, T, 2 * D)))

    out_wn, out_lx = pl.pallas_call(
        _packed_block_kernel,
        grid=(B,),
        in_specs=in_specs,
        out_specs=out_specs,
        out_shape=out_shape,
        compiler_params=pltpu.CompilerParams(
            dimension_semantics=("parallel",),   # batches independent -> split across TCs
            vmem_limit_bytes=_pick_vmem_limit_bytes(),
        ),
    )(wn_x, lynx_x, cond_tc, dstep, *params)

    out = jnp.concatenate([out_wn, out_lx], axis=-1)   # (B, T, 3D) -- torch.cat glue
    return jnp.transpose(out, (0, 2, 1))               # (B, 3D, T) like PyTorch


# ----------------------------------- main --------------------------------------
if __name__ == "__main__":
    key = jax.random.PRNGKey(0)
    k_x, k_c, k_d, k_p = jax.random.split(key, 4)

    B, T = 2, 16
    x = jax.random.normal(k_x, (B, 3 * DIM, T), jnp.float32)       # (2, 96, 16)
    cond = jax.random.normal(k_c, (B, DIM_COND, T), jnp.float32)   # (2, 16, 16)
    diffstep = jax.random.normal(k_d, (B, DIM), jnp.float32)       # (2, 32)
    params = init_params(k_p)

    out = jax.jit(packed_block_forward)(x, cond, diffstep, params)
    out = jax.block_until_ready(out)

    assert out.shape == (B, 3 * DIM, T), out.shape
    assert bool(jnp.all(jnp.isfinite(out)))
    print("KERNEL_OK")
</pallas_src>

<mosaic_0001>
module attributes {stable_mosaic.version = 11 : i64} {
  func.func @_packed_block_kernel(%arg0: i32, %arg1: memref<1x16x32xf32, #tpu.memory_space<vmem>>, %arg2: memref<1x16x64xf32, #tpu.memory_space<vmem>>, %arg3: memref<1x16x16xf32, #tpu.memory_space<vmem>>, %arg4: memref<1x1x32xf32, #tpu.memory_space<vmem>>, %arg5: memref<4x96x64xbf16, #tpu.memory_space<vmem>>, %arg6: memref<4x1x64xf32, #tpu.memory_space<vmem>>, %arg7: memref<32x128xbf16, #tpu.memory_space<vmem>>, %arg8: memref<1x128xf32, #tpu.memory_space<vmem>>, %arg9: memref<16x256xbf16, #tpu.memory_space<vmem>>, %arg10: memref<1x256xf32, #tpu.memory_space<vmem>>, %arg11: memref<4x32x64xbf16, #tpu.memory_space<vmem>>, %arg12: memref<4x1x64xf32, #tpu.memory_space<vmem>>, %arg13: memref<64x128xbf16, #tpu.memory_space<vmem>>, %arg14: memref<1x128xf32, #tpu.memory_space<vmem>>, %arg15: memref<16x128xbf16, #tpu.memory_space<vmem>>, %arg16: memref<1x128xf32, #tpu.memory_space<vmem>>, %arg17: memref<2x1x64xf32, #tpu.memory_space<vmem>>, %arg18: memref<2x1x64xf32, #tpu.memory_space<vmem>>, %arg19: memref<2x64x256xbf16, #tpu.memory_space<vmem>>, %arg20: memref<2x1x256xf32, #tpu.memory_space<vmem>>, %arg21: memref<2x31x128xf32, #tpu.memory_space<vmem>>, %arg22: memref<2x1x128xf32, #tpu.memory_space<vmem>>, %arg23: memref<2x1x128xf32, #tpu.memory_space<vmem>>, %arg24: memref<2x128x64xbf16, #tpu.memory_space<vmem>>, %arg25: memref<2x1x64xf32, #tpu.memory_space<vmem>>, %arg26: memref<32x64xbf16, #tpu.memory_space<vmem>>, %arg27: memref<1x64xf32, #tpu.memory_space<vmem>>, %arg28: memref<1x32xf32, #tpu.memory_space<vmem>>, %arg29: memref<1x32xf32, #tpu.memory_space<vmem>>, %arg30: memref<64x64xbf16, #tpu.memory_space<vmem>>, %arg31: memref<1x64xf32, #tpu.memory_space<vmem>>, %arg32: memref<64x32xbf16, #tpu.memory_space<vmem>>, %arg33: memref<1x32xf32, #tpu.memory_space<vmem>>, %arg34: memref<32x64xbf16, #tpu.memory_space<vmem>>, %arg35: memref<1x64xf32, #tpu.memory_space<vmem>>, %arg36: memref<1x32xf32, #tpu.memory_space<vmem>>, %arg37: memref<1x32xf32, #tpu.memory_space<vmem>>, %arg38: memref<1x64xf32, #tpu.memory_space<vmem>>, %arg39: memref<1x64xf32, #tpu.memory_space<vmem>>, %arg40: memref<1x16x32xf32, #tpu.memory_space<vmem>>, %arg41: memref<1x16x64xf32, #tpu.memory_space<vmem>>) attributes {dimension_semantics = [#tpu.dimension_semantics<parallel>], iteration_bounds = array<i64: 2>, scalar_prefetch = 0 : i64, scratch_operands = 0 : i64, tpu.core_type = #tpu.core_type<tc>, window_params = [{transform_indices = @transform_0, window_bounds = array<i64: 1, 16, 32>}, {transform_indices = @transform_1, window_bounds = array<i64: 1, 16, 64>}, {transform_indices = @transform_2, window_bounds = array<i64: 1, 16, 16>}, {transform_indices = @transform_3, window_bounds = array<i64: 1, 1, 32>}, {pipeline_mode = #tpu.pipeline_mode<synchronous>, transform_indices = @transform_4, window_bounds = array<i64: 4, 96, 64>}, {pipeline_mode = #tpu.pipeline_mode<synchronous>, transform_indices = @transform_5, window_bounds = array<i64: 4, 1, 64>}, {pipeline_mode = #tpu.pipeline_mode<synchronous>, transform_indices = @transform_6, window_bounds = array<i64: 32, 128>}, {pipeline_mode = #tpu.pipeline_mode<synchronous>, transform_indices = @transform_7, window_bounds = array<i64: 1, 128>}, {pipeline_mode = #tpu.pipeline_mode<synchronous>, transform_indices = @transform_8, window_bounds = array<i64: 16, 256>}, {pipeline_mode = #tpu.pipeline_mode<synchronous>, transform_indices = @transform_9, window_bounds = array<i64: 1, 256>}, {pipeline_mode = #tpu.pipeline_mode<synchronous>, transform_indices = @transform_10, window_bounds = array<i64: 4, 32, 64>}, {pipeline_mode = #tpu.pipeline_mode<synchronous>, transform_indices = @transform_11, window_bounds = array<i64: 4, 1, 64>}, {pipeline_mode = #tpu.pipeline_mode<synchronous>, transform_indices = @transform_12, window_bounds = array<i64: 64, 128>}, {pipeline_mode = #tpu.pipeline_mode<synchronous>, transform_indices = @transform_13, window_bounds = array<i64: 1, 128>}, {pipeline_mode = #tpu.pipeline_mode<synchronous>, transform_indices = @transform_14, window_bounds = array<i64: 16, 128>}, {pipeline_mode = #tpu.pipeline_mode<synchronous>, transform_indices = @transform_15, window_bounds = array<i64: 1, 128>}, {pipeline_mode = #tpu.pipeline_mode<synchronous>, transform_indices = @transform_16, window_bounds = array<i64: 2, 1, 64>}, {pipeline_mode = #tpu.pipeline_mode<synchronous>, transform_indices = @transform_17, window_bounds = array<i64: 2, 1, 64>}, {pipeline_mode = #tpu.pipeline_mode<synchronous>, transform_indices = @transform_18, window_bounds = array<i64: 2, 64, 256>}, {pipeline_mode = #tpu.pipeline_mode<synchronous>, transform_indices = @transform_19, window_bounds = array<i64: 2, 1, 256>}, {pipeline_mode = #tpu.pipeline_mode<synchronous>, transform_indices = @transform_20, window_bounds = array<i64: 2, 31, 128>}, {pipeline_mode = #tpu.pipeline_mode<synchronous>, transform_indices = @transform_21, window_bounds = array<i64: 2, 1, 128>}, {pipeline_mode = #tpu.pipeline_mode<synchronous>, transform_indices = @transform_22, window_bounds = array<i64: 2, 1, 128>}, {pipeline_mode = #tpu.pipeline_mode<synchronous>, transform_indices = @transform_23, window_bounds = array<i64: 2, 128, 64>}, {pipeline_mode = #tpu.pipeline_mode<synchronous>, transform_indices = @transform_24, window_bounds = array<i64: 2, 1, 64>}, {pipeline_mode = #tpu.pipeline_mode<synchronous>, transform_indices = @transform_25, window_bounds = array<i64: 32, 64>}, {pipeline_mode = #tpu.pipeline_mode<synchronous>, transform_indices = @transform_26, window_bounds = array<i64: 1, 64>}, {pipeline_mode = #tpu.pipeline_mode<synchronous>, transform_indices = @transform_27, window_bounds = array<i64: 1, 32>}, {pipeline_mode = #tpu.pipeline_mode<synchronous>, transform_indices = @transform_28, window_bounds = array<i64: 1, 32>}, {pipeline_mode = #tpu.pipeline_mode<synchronous>, transform_indices = @transform_29, window_bounds = array<i64: 64, 64>}, {pipeline_mode = #tpu.pipeline_mode<synchronous>, transform_indices = @transform_30, window_bounds = array<i64: 1, 64>}, {pipeline_mode = #tpu.pipeline_mode<synchronous>, transform_indices = @transform_31, window_bounds = array<i64: 64, 32>}, {pipeline_mode = #tpu.pipeline_mode<synchronous>, transform_indices = @transform_32, window_bounds = array<i64: 1, 32>}, {pipeline_mode = #tpu.pipeline_mode<synchronous>, transform_indices = @transform_33, window_bounds = array<i64: 32, 64>}, {pipeline_mode = #tpu.pipeline_mode<synchronous>, transform_indices = @transform_34, window_bounds = array<i64: 1, 64>}, {pipeline_mode = #tpu.pipeline_mode<synchronous>, transform_indices = @transform_35, window_bounds = array<i64: 1, 32>}, {pipeline_mode = #tpu.pipeline_mode<synchronous>, transform_indices = @transform_36, window_bounds = array<i64: 1, 32>}, {pipeline_mode = #tpu.pipeline_mode<synchronous>, transform_indices = @transform_37, window_bounds = array<i64: 1, 64>}, {pipeline_mode = #tpu.pipeline_mode<synchronous>, transform_indices = @transform_38, window_bounds = array<i64: 1, 64>}, {transform_indices = @transform_39, window_bounds = array<i64: 1, 16, 32>}, {transform_indices = @transform_40, window_bounds = array<i64: 1, 16, 64>}]} {
    %c0 = arith.constant 0 : index
    %c0_0 = arith.constant 0 : index
    %c0_1 = arith.constant 0 : index
    %0 = vector.load %arg1[%c0, %c0_0, %c0_1] : memref<1x16x32xf32, #tpu.memory_space<vmem>>, vector<1x16x32xf32>
    %1 = vector.shape_cast %0 : vector<1x16x32xf32> to vector<16x32xf32>
    %c0_2 = arith.constant 0 : index
    %c0_3 = arith.constant 0 : index
    %c0_4 = arith.constant 0 : index
    %2 = vector.load %arg2[%c0_2, %c0_3, %c0_4] : memref<1x16x64xf32, #tpu.memory_space<vmem>>, vector<1x16x64xf32>
    %3 = vector.shape_cast %2 : vector<1x16x64xf32> to vector<16x64xf32>
    %c0_5 = arith.constant 0 : index
    %c0_6 = arith.constant 0 : index
    %c0_7 = arith.constant 0 : index
    %4 = vector.load %arg3[%c0_5, %c0_6, %c0_7] : memref<1x16x16xf32, #tpu.memory_space<vmem>>, vector<1x16x16xf32>
    %5 = vector.shape_cast %4 : vector<1x16x16xf32> to vector<16x16xf32>
    %6 = arith.truncf %5 : vector<16x16xf32> to vector<16x16xbf16>
    %c0_8 = arith.constant 0 : index
    %c0_9 = arith.constant 0 : index
    %c0_10 = arith.constant 0 : index
    %7 = vector.load %arg4[%c0_8, %c0_9, %c0_10] : memref<1x1x32xf32, #tpu.memory_space<vmem>>, vector<1x1x32xf32>
    %8 = vector.shape_cast %7 : vector<1x1x32xf32> to vector<1x32xf32>
    %9 = arith.truncf %8 : vector<1x32xf32> to vector<1x32xbf16>
    %c0_11 = arith.constant 0 : index
    %c0_12 = arith.constant 0 : index
    %10 = vector.load %arg9[%c0_11, %c0_12] : memref<16x256xbf16, #tpu.memory_space<vmem>>, vector<16x256xbf16>
    %cst = arith.constant dense<0.000000e+00> : vector<16x256xf32>
    %11 = tpu.matmul %6, %10, %cst {dimension_numbers = #tpu.dot_dimension_numbers<[1], [0], [0], [1], [0, 0, 1, 1], [], []>} : vector<16x16xbf16>, vector<16x256xbf16>, vector<16x256xf32> -> vector<16x256xf32>
    %c0_13 = arith.constant 0 : index
    %c0_14 = arith.constant 0 : index
    %12 = vector.load %arg10[%c0_13, %c0_14] : memref<1x256xf32, #tpu.memory_space<vmem>>, vector<1x256xf32>
    %13 = vector.broadcast %12 : vector<1x256xf32> to vector<16x256xf32>
    %14 = arith.addf %11, %13 : vector<16x256xf32>
    %c0_15 = arith.constant 0 : index
    %c0_16 = arith.constant 0 : index
    %15 = vector.load %arg7[%c0_15, %c0_16] : memref<32x128xbf16, #tpu.memory_space<vmem>>, vector<32x128xbf16>
    %cst_17 = arith.constant dense<0.000000e+00> : vector<1x128xf32>
    %16 = tpu.matmul %9, %15, %cst_17 {dimension_numbers = #tpu.dot_dimension_numbers<[1], [0], [0], [1], [0, 0, 1, 1], [], []>} : vector<1x32xbf16>, vector<32x128xbf16>, vector<1x128xf32> -> vector<1x128xf32>
    %c0_18 = arith.constant 0 : index
    %c0_19 = arith.constant 0 : index
    %17 = vector.load %arg8[%c0_18, %c0_19] : memref<1x128xf32, #tpu.memory_space<vmem>>, vector<1x128xf32>
    %18 = arith.addf %16, %17 : vector<1x128xf32>
    %c0_20 = arith.constant 0 : index
    %c0_21 = arith.constant 0 : index
    %19 = vector.load %arg34[%c0_20, %c0_21] : memref<32x64xbf16, #tpu.memory_space<vmem>>, vector<32x64xbf16>
    %cst_22 = arith.constant dense<0.000000e+00> : vector<1x64xf32>
    %20 = tpu.matmul %9, %19, %cst_22 {dimension_numbers = #tpu.dot_dimension_numbers<[1], [0], [0], [1], [0, 0, 1, 1], [], []>} : vector<1x32xbf16>, vector<32x64xbf16>, vector<1x64xf32> -> vector<1x64xf32>
    %c0_23 = arith.constant 0 : index
    %c0_24 = arith.constant 0 : index
    %21 = vector.load %arg35[%c0_23, %c0_24] : memref<1x64xf32, #tpu.memory_space<vmem>>, vector<1x64xf32>
    %22 = arith.addf %20, %21 : vector<1x64xf32>
    %23 = arith.truncf %22 : vector<1x64xf32> to vector<1x64xbf16>
    %c0_25 = arith.constant 0 : index
    %c0_26 = arith.constant 0 : index
    %24 = vector.load %arg13[%c0_25, %c0_26] : memref<64x128xbf16, #tpu.memory_space<vmem>>, vector<64x128xbf16>
    %cst_27 = arith.constant dense<0.000000e+00> : vector<1x128xf32>
    %25 = tpu.matmul %23, %24, %cst_27 {dimension_numbers = #tpu.dot_dimension_numbers<[1], [0], [0], [1], [0, 0, 1, 1], [], []>} : vector<1x64xbf16>, vector<64x128xbf16>, vector<1x128xf32> -> vector<1x128xf32>
    %c0_28 = arith.constant 0 : index
    %c0_29 = arith.constant 0 : index
    %26 = vector.load %arg14[%c0_28, %c0_29] : memref<1x128xf32, #tpu.memory_space<vmem>>, vector<1x128xf32>
    %27 = arith.addf %25, %26 : vector<1x128xf32>
    %c0_30 = arith.constant 0 : index
    %c0_31 = arith.constant 0 : index
    %28 = vector.load %arg15[%c0_30, %c0_31] : memref<16x128xbf16, #tpu.memory_space<vmem>>, vector<16x128xbf16>
    %cst_32 = arith.constant dense<0.000000e+00> : vector<16x128xf32>
    %29 = tpu.matmul %6, %28, %cst_32 {dimension_numbers = #tpu.dot_dimension_numbers<[1], [0], [0], [1], [0, 0, 1, 1], [], []>} : vector<16x16xbf16>, vector<16x128xbf16>, vector<16x128xf32> -> vector<16x128xf32>
    %c0_33 = arith.constant 0 : index
    %c0_34 = arith.constant 0 : index
    %30 = vector.load %arg16[%c0_33, %c0_34] : memref<1x128xf32, #tpu.memory_space<vmem>>, vector<1x128xf32>
    %31 = vector.broadcast %30 : vector<1x128xf32> to vector<16x128xf32>
    %32 = arith.addf %29, %31 : vector<16x128xf32>
    %cst_35 = arith.constant 0.000000e+00 : f32
    %33 = vector.broadcast %cst_35 : f32 to vector<8x32xf32>
    %cst_36 = arith.constant 0.000000e+00 : f32
    %34 = vector.broadcast %cst_36 : f32 to vector<16x32xf32>
    %35 = vector.extract_strided_slice %18 {offsets = [0, 0], sizes = [1, 32], strides = [1, 1]} : vector<1x128xf32> to vector<1x32xf32>
    %36 = vector.broadcast %35 : vector<1x32xf32> to vector<16x32xf32>
    %37 = arith.addf %1, %36 : vector<16x32xf32>
    %38 = tpu.concatenate %33, %37, %33 in 0 : vector<8x32xf32>, vector<16x32xf32>, vector<8x32xf32> -> vector<32x32xf32>
    %39 = vector.extract_strided_slice %38 {offsets = [7, 0], sizes = [16, 32], strides = [1, 1]} : vector<32x32xf32> to vector<16x32xf32>
    %40 = vector.extract_strided_slice %38 {offsets = [9, 0], sizes = [16, 32], strides = [1, 1]} : vector<32x32xf32> to vector<16x32xf32>
    %41 = tpu.concatenate %39, %37, %40 in 1 : vector<16x32xf32>, vector<16x32xf32>, vector<16x32xf32> -> vector<16x96xf32>
    %42 = arith.truncf %41 : vector<16x96xf32> to vector<16x96xbf16>
    %43 = vector.extract_strided_slice %14 {offsets = [0, 0], sizes = [16, 64], strides = [1, 1]} : vector<16x256xf32> to vector<16x64xf32>
    %c0_37 = arith.constant 0 : index
    %c0_38 = arith.constant 0 : index
    %c0_39 = arith.constant 0 : index
    %44 = vector.load %arg6[%c0_37, %c0_38, %c0_39] : memref<4x1x64xf32, #tpu.memory_space<vmem>>, vector<1x1x64xf32>
    %45 = vector.shape_cast %44 : vector<1x1x64xf32> to vector<1x64xf32>
    %46 = vector.broadcast %45 : vector<1x64xf32> to vector<16x64xf32>
    %47 = arith.addf %43, %46 : vector<16x64xf32>
    %c0_40 = arith.constant 0 : index
    %c0_41 = arith.constant 0 : index
    %c0_42 = arith.constant 0 : index
    %48 = vector.load %arg5[%c0_40, %c0_41, %c0_42] : memref<4x96x64xbf16, #tpu.memory_space<vmem>>, vector<1x96x64xbf16>
    %49 = vector.shape_cast %48 : vector<1x96x64xbf16> to vector<96x64xbf16>
    %cst_43 = arith.constant dense<0.000000e+00> : vector<16x64xf32>
    %50 = tpu.matmul %42, %49, %cst_43 {dimension_numbers = #tpu.dot_dimension_numbers<[1], [0], [0], [1], [0, 0, 1, 1], [], []>} : vector<16x96xbf16>, vector<96x64xbf16>, vector<16x64xf32> -> vector<16x64xf32>
    %51 = arith.addf %47, %50 : vector<16x64xf32>
    %52 = vector.extract_strided_slice %51 {offsets = [0, 0], sizes = [16, 32], strides = [1, 1]} : vector<16x64xf32> to vector<16x32xf32>
    %53 = arith.negf %52 : vector<16x32xf32>
    %54 = math.exp %53 : vector<16x32xf32>
    %cst_44 = arith.constant 1.000000e+00 : f32
    %55 = vector.broadcast %cst_44 : f32 to vector<16x32xf32>
    %56 = arith.addf %55, %54 : vector<16x32xf32>
    %57 = arith.divf %55, %56 : vector<16x32xf32>
    %58 = vector.extract_strided_slice %51 {offsets = [0, 32], sizes = [16, 32], strides = [1, 1]} : vector<16x64xf32> to vector<16x32xf32>
    %59 = math.tanh %58 : vector<16x32xf32>
    %60 = arith.mulf %57, %59 : vector<16x32xf32>
    %61 = arith.truncf %60 : vector<16x32xf32> to vector<16x32xbf16>
    %c0_45 = arith.constant 0 : index
    %c0_46 = arith.constant 0 : index
    %c0_47 = arith.constant 0 : index
    %62 = vector.load %arg11[%c0_45, %c0_46, %c0_47] : memref<4x32x64xbf16, #tpu.memory_space<vmem>>, vector<1x32x64xbf16>
    %63 = vector.shape_cast %62 : vector<1x32x64xbf16> to vector<32x64xbf16>
    %cst_48 = arith.constant dense<0.000000e+00> : vector<16x64xf32>
    %64 = tpu.matmul %61, %63, %cst_48 {dimension_numbers = #tpu.dot_dimension_numbers<[1], [0], [0], [1], [0, 0, 1, 1], [], []>} : vector<16x32xbf16>, vector<32x64xbf16>, vector<16x64xf32> -> vector<16x64xf32>
    %c0_49 = arith.constant 0 : index
    %c0_50 = arith.constant 0 : index
    %c0_51 = arith.constant 0 : index
    %65 = vector.load %arg12[%c0_49, %c0_50, %c0_51] : memref<4x1x64xf32, #tpu.memory_space<vmem>>, vector<1x1x64xf32>
    %66 = vector.shape_cast %65 : vector<1x1x64xf32> to vector<1x64xf32>
    %67 = vector.broadcast %66 : vector<1x64xf32> to vector<16x64xf32>
    %68 = arith.addf %64, %67 : vector<16x64xf32>
    %69 = vector.extract_strided_slice %68 {offsets = [0, 0], sizes = [16, 32], strides = [1, 1]} : vector<16x64xf32> to vector<16x32xf32>
    %70 = arith.addf %1, %69 : vector<16x32xf32>
    %cst_52 = arith.constant 0.707106769 : f32
    %71 = vector.broadcast %cst_52 : f32 to vector<16x32xf32>
    %72 = arith.mulf %70, %71 : vector<16x32xf32>
    %73 = vector.extract_strided_slice %68 {offsets = [0, 32], sizes = [16, 32], strides = [1, 1]} : vector<16x64xf32> to vector<16x32xf32>
    %74 = arith.addf %34, %73 : vector<16x32xf32>
    %75 = vector.extract_strided_slice %18 {offsets = [0, 32], sizes = [1, 32], strides = [1, 1]} : vector<1x128xf32> to vector<1x32xf32>
    %76 = vector.broadcast %75 : vector<1x32xf32> to vector<16x32xf32>
    %77 = arith.addf %72, %76 : vector<16x32xf32>
    %78 = tpu.concatenate %33, %77, %33 in 0 : vector<8x32xf32>, vector<16x32xf32>, vector<8x32xf32> -> vector<32x32xf32>
    %79 = vector.extract_strided_slice %78 {offsets = [6, 0], sizes = [16, 32], strides = [1, 1]} : vector<32x32xf32> to vector<16x32xf32>
    %80 = vector.extract_strided_slice %78 {offsets = [10, 0], sizes = [16, 32], strides = [1, 1]} : vector<32x32xf32> to vector<16x32xf32>
    %81 = tpu.concatenate %79, %77, %80 in 1 : vector<16x32xf32>, vector<16x32xf32>, vector<16x32xf32> -> vector<16x96xf32>
    %82 = arith.truncf %81 : vector<16x96xf32> to vector<16x96xbf16>
    %83 = vector.extract_strided_slice %14 {offsets = [0, 64], sizes = [16, 64], strides = [1, 1]} : vector<16x256xf32> to vector<16x64xf32>
    %c1 = arith.constant 1 : index
    %c0_53 = arith.constant 0 : index
    %c0_54 = arith.constant 0 : index
    %84 = vector.load %arg6[%c1, %c0_53, %c0_54] : memref<4x1x64xf32, #tpu.memory_space<vmem>>, vector<1x1x64xf32>
    %85 = vector.shape_cast %84 : vector<1x1x64xf32> to vector<1x64xf32>
    %86 = vector.broadcast %85 : vector<1x64xf32> to vector<16x64xf32>
    %87 = arith.addf %83, %86 : vector<16x64xf32>
    %c1_55 = arith.constant 1 : index
    %c0_56 = arith.constant 0 : index
    %c0_57 = arith.constant 0 : index
    %88 = vector.load %arg5[%c1_55, %c0_56, %c0_57] : memref<4x96x64xbf16, #tpu.memory_space<vmem>>, vector<1x96x64xbf16>
    %89 = vector.shape_cast %88 : vector<1x96x64xbf16> to vector<96x64xbf16>
    %cst_58 = arith.constant dense<0.000000e+00> : vector<16x64xf32>
    %90 = tpu.matmul %82, %89, %cst_58 {dimension_numbers = #tpu.dot_dimension_numbers<[1], [0], [0], [1], [0, 0, 1, 1], [], []>} : vector<16x96xbf16>, vector<96x64xbf16>, vector<16x64xf32> -> vector<16x64xf32>
    %91 = arith.addf %87, %90 : vector<16x64xf32>
    %92 = vector.extract_strided_slice %91 {offsets = [0, 0], sizes = [16, 32], strides = [1, 1]} : vector<16x64xf32> to vector<16x32xf32>
    %93 = arith.negf %92 : vector<16x32xf32>
    %94 = math.exp %93 : vector<16x32xf32>
    %cst_59 = arith.constant 1.000000e+00 : f32
    %95 = vector.broadcast %cst_59 : f32 to vector<16x32xf32>
    %96 = arith.addf %95, %94 : vector<16x32xf32>
    %97 = arith.divf %95, %96 : vector<16x32xf32>
    %98 = vector.extract_strided_slice %91 {offsets = [0, 32], sizes = [16, 32], strides = [1, 1]} : vector<16x64xf32> to vector<16x32xf32>
    %99 = math.tanh %98 : vector<16x32xf32>
    %100 = arith.mulf %97, %99 : vector<16x32xf32>
    %101 = arith.truncf %100 : vector<16x32xf32> to vector<16x32xbf16>
    %c1_60 = arith.constant 1 : index
    %c0_61 = arith.constant 0 : index
    %c0_62 = arith.constant 0 : index
    %102 = vector.load %arg11[%c1_60, %c0_61, %c0_62] : memref<4x32x64xbf16, #tpu.memory_space<vmem>>, vector<1x32x64xbf16>
    %103 = vector.shape_cast %102 : vector<1x32x64xbf16> to vector<32x64xbf16>
    %cst_63 = arith.constant dense<0.000000e+00> : vector<16x64xf32>
    %104 = tpu.matmul %101, %103, %cst_63 {dimension_numbers = #tpu.dot_dimension_numbers<[1], [0], [0], [1], [0, 0, 1, 1], [], []>} : vector<16x32xbf16>, vector<32x64xbf16>, vector<16x64xf32> -> vector<16x64xf32>
    %c1_64 = arith.constant 1 : index
    %c0_65 = arith.constant 0 : index
    %c0_66 = arith.constant 0 : index
    %105 = vector.load %arg12[%c1_64, %c0_65, %c0_66] : memref<4x1x64xf32, #tpu.memory_space<vmem>>, vector<1x1x64xf32>
    %106 = vector.shape_cast %105 : vector<1x1x64xf32> to vector<1x64xf32>
    %107 = vector.broadcast %106 : vector<1x64xf32> to vector<16x64xf32>
    %108 = arith.addf %104, %107 : vector<16x64xf32>
    %109 = vector.extract_strided_slice %108 {offsets = [0, 0], sizes = [16, 32], strides = [1, 1]} : vector<16x64xf32> to vector<16x32xf32>
    %110 = arith.addf %72, %109 : vector<16x32xf32>
    %cst_67 = arith.constant 0.707106769 : f32
    %111 = vector.broadcast %cst_67 : f32 to vector<16x32xf32>
    %112 = arith.mulf %110, %111 : vector<16x32xf32>
    %113 = vector.extract_strided_slice %108 {offsets = [0, 32], sizes = [16, 32], strides = [1, 1]} : vector<16x64xf32> to vector<16x32xf32>
    %114 = arith.addf %74, %113 : vector<16x32xf32>
    %115 = vector.extract_strided_slice %18 {offsets = [0, 64], sizes = [1, 32], strides = [1, 1]} : vector<1x128xf32> to vector<1x32xf32>
    %116 = vector.broadcast %115 : vector<1x32xf32> to vector<16x32xf32>
    %117 = arith.addf %112, %116 : vector<16x32xf32>
    %118 = tpu.concatenate %33, %117, %33 in 0 : vector<8x32xf32>, vector<16x32xf32>, vector<8x32xf32> -> vector<32x32xf32>
    %119 = vector.extract_strided_slice %118 {offsets = [4, 0], sizes = [16, 32], strides = [1, 1]} : vector<32x32xf32> to vector<16x32xf32>
    %120 = vector.extract_strided_slice %118 {offsets = [12, 0], sizes = [16, 32], strides = [1, 1]} : vector<32x32xf32> to vector<16x32xf32>
    %121 = tpu.concatenate %119, %117, %120 in 1 : vector<16x32xf32>, vector<16x32xf32>, vector<16x32xf32> -> vector<16x96xf32>
    %122 = arith.truncf %121 : vector<16x96xf32> to vector<16x96xbf16>
    %123 = vector.extract_strided_slice %14 {offsets = [0, 128], sizes = [16, 64], strides = [1, 1]} : vector<16x256xf32> to vector<16x64xf32>
    %c2 = arith.constant 2 : index
    %c0_68 = arith.constant 0 : index
    %c0_69 = arith.constant 0 : index
    %124 = vector.load %arg6[%c2, %c0_68, %c0_69] : memref<4x1x64xf32, #tpu.memory_space<vmem>>, vector<1x1x64xf32>
    %125 = vector.shape_cast %124 : vector<1x1x64xf32> to vector<1x64xf32>
    %126 = vector.broadcast %125 : vector<1x64xf32> to vector<16x64xf32>
    %127 = arith.addf %123, %126 : vector<16x64xf32>
    %c2_70 = arith.constant 2 : index
    %c0_71 = arith.constant 0 : index
    %c0_72 = arith.constant 0 : index
    %128 = vector.load %arg5[%c2_70, %c0_71, %c0_72] : memref<4x96x64xbf16, #tpu.memory_space<vmem>>, vector<1x96x64xbf16>
    %129 = vector.shape_cast %128 : vector<1x96x64xbf16> to vector<96x64xbf16>
    %cst_73 = arith.constant dense<0.000000e+00> : vector<16x64xf32>
    %130 = tpu.matmul %122, %129, %cst_73 {dimension_numbers = #tpu.dot_dimension_numbers<[1], [0], [0], [1], [0, 0, 1, 1], [], []>} : vector<16x96xbf16>, vector<96x64xbf16>, vector<16x64xf32> -> vector<16x64xf32>
    %131 = arith.addf %127, %130 : vector<16x64xf32>
    %132 = vector.extract_strided_slice %131 {offsets = [0, 0], sizes = [16, 32], strides = [1, 1]} : vector<16x64xf32> to vector<16x32xf32>
    %133 = arith.negf %132 : vector<16x32xf32>
    %134 = math.exp %133 : vector<16x32xf32>
    %cst_74 = arith.constant 1.000000e+00 : f32
    %135 = vector.broadcast %cst_74 : f32 to vector<16x32xf32>
    %136 = arith.addf %135, %134 : vector<16x32xf32>
    %137 = arith.divf %135, %136 : vector<16x32xf32>
    %138 = vector.extract_strided_slice %131 {offsets = [0, 32], sizes = [16, 32], strides = [1, 1]} : vector<16x64xf32> to vector<16x32xf32>
    %139 = math.tanh %138 : vector<16x32xf32>
    %140 = arith.mulf %137, %139 : vector<16x32xf32>
    %141 = arith.truncf %140 : vector<16x32xf32> to vector<16x32xbf16>
    %c2_75 = arith.constant 2 : index
    %c0_76 = arith.constant 0 : index
    %c0_77 = arith.constant 0 : index
    %142 = vector.load %arg11[%c2_75, %c0_76, %c0_77] : memref<4x32x64xbf16, #tpu.memory_space<vmem>>, vector<1x32x64xbf16>
    %143 = vector.shape_cast %142 : vector<1x32x64xbf16> to vector<32x64xbf16>
    %cst_78 = arith.constant dense<0.000000e+00> : vector<16x64xf32>
    %144 = tpu.matmul %141, %143, %cst_78 {dimension_numbers = #tpu.dot_dimension_numbers<[1], [0], [0], [1], [0, 0, 1, 1], [], []>} : vector<16x32xbf16>, vector<32x64xbf16>, vector<16x64xf32> -> vector<16x64xf32>
    %c2_79 = arith.constant 2 : index
    %c0_80 = arith.constant 0 : index
    %c0_81 = arith.constant 0 : index
    %145 = vector.load %arg12[%c2_79, %c0_80, %c0_81] : memref<4x1x64xf32, #tpu.memory_space<vmem>>, vector<1x1x64xf32>
    %146 = vector.shape_cast %145 : vector<1x1x64xf32> to vector<1x64xf32>
    %147 = vector.broadcast %146 : vector<1x64xf32> to vector<16x64xf32>
    %148 = arith.addf %144, %147 : vector<16x64xf32>
    %149 = vector.extract_strided_slice %148 {offsets = [0, 0], sizes = [16, 32], strides = [1, 1]} : vector<16x64xf32> to vector<16x32xf32>
    %150 = arith.addf %112, %149 : vector<16x32xf32>
    %cst_82 = arith.constant 0.707106769 : f32
    %151 = vector.broadcast %cst_82 : f32 to vector<16x32xf32>
    %152 = arith.mulf %150, %151 : vector<16x32xf32>
    %153 = vector.extract_strided_slice %148 {offsets = [0, 32], sizes = [16, 32], strides = [1, 1]} : vector<16x64xf32> to vector<16x32xf32>
    %154 = arith.addf %114, %153 : vector<16x32xf32>
    %155 = vector.extract_strided_slice %18 {offsets = [0, 96], sizes = [1, 32], strides = [1, 1]} : vector<1x128xf32> to vector<1x32xf32>
    %156 = vector.broadcast %155 : vector<1x32xf32> to vector<16x32xf32>
    %157 = arith.addf %152, %156 : vector<16x32xf32>
    %158 = tpu.concatenate %33, %157, %33 in 0 : vector<8x32xf32>, vector<16x32xf32>, vector<8x32xf32> -> vector<32x32xf32>
    %159 = vector.extract_strided_slice %158 {offsets = [0, 0], sizes = [16, 32], strides = [1, 1]} : vector<32x32xf32> to vector<16x32xf32>
    %160 = vector.extract_strided_slice %158 {offsets = [16, 0], sizes = [16, 32], strides = [1, 1]} : vector<32x32xf32> to vector<16x32xf32>
    %161 = tpu.concatenate %159, %157, %160 in 1 : vector<16x32xf32>, vector<16x32xf32>, vector<16x32xf32> -> vector<16x96xf32>
    %162 = arith.truncf %161 : vector<16x96xf32> to vector<16x96xbf16>
    %163 = vector.extract_strided_slice %14 {offsets = [0, 192], sizes = [16, 64], strides = [1, 1]} : vector<16x256xf32> to vector<16x64xf32>
    %c3 = arith.constant 3 : index
    %c0_83 = arith.constant 0 : index
    %c0_84 = arith.constant 0 : index
    %164 = vector.load %arg6[%c3, %c0_83, %c0_84] : memref<4x1x64xf32, #tpu.memory_space<vmem>>, vector<1x1x64xf32>
    %165 = vector.shape_cast %164 : vector<1x1x64xf32> to vector<1x64xf32>
    %166 = vector.broadcast %165 : vector<1x64xf32> to vector<16x64xf32>
    %167 = arith.addf %163, %166 : vector<16x64xf32>
    %c3_85 = arith.constant 3 : index
    %c0_86 = arith.constant 0 : index
    %c0_87 = arith.constant 0 : index
    %168 = vector.load %arg5[%c3_85, %c0_86, %c0_87] : memref<4x96x64xbf16, #tpu.memory_space<vmem>>, vector<1x96x64xbf16>
    %169 = vector.shape_cast %168 : vector<1x96x64xbf16> to vector<96x64xbf16>
    %cst_88 = arith.constant dense<0.000000e+00> : vector<16x64xf32>
    %170 = tpu.matmul %162, %169, %cst_88 {dimension_numbers = #tpu.dot_dimension_numbers<[1], [0], [0], [1], [0, 0, 1, 1], [], []>} : vector<16x96xbf16>, vector<96x64xbf16>, vector<16x64xf32> -> vector<16x64xf32>
    %171 = arith.addf %167, %170 : vector<16x64xf32>
    %172 = vector.extract_strided_slice %171 {offsets = [0, 0], sizes = [16, 32], strides = [1, 1]} : vector<16x64xf32> to vector<16x32xf32>
    %173 = arith.negf %172 : vector<16x32xf32>
    %174 = math.exp %173 : vector<16x32xf32>
    %cst_89 = arith.constant 1.000000e+00 : f32
    %175 = vector.broadcast %cst_89 : f32 to vector<16x32xf32>
    %176 = arith.addf %175, %174 : vector<16x32xf32>
    %177 = arith.divf %175, %176 : vector<16x32xf32>
    %178 = vector.extract_strided_slice %171 {offsets = [0, 32], sizes = [16, 32], strides = [1, 1]} : vector<16x64xf32> to vector<16x32xf32>
    %179 = math.tanh %178 : vector<16x32xf32>
    %180 = arith.mulf %177, %179 : vector<16x32xf32>
    %181 = arith.truncf %180 : vector<16x32xf32> to vector<16x32xbf16>
    %c3_90 = arith.constant 3 : index
    %c0_91 = arith.constant 0 : index
    %c0_92 = arith.constant 0 : index
    %182 = vector.load %arg11[%c3_90, %c0_91, %c0_92] : memref<4x32x64xbf16, #tpu.memory_space<vmem>>, vector<1x32x64xbf16>
    %183 = vector.shape_cast %182 : vector<1x32x64xbf16> to vector<32x64xbf16>
    %cst_93 = arith.constant dense<0.000000e+00> : vector<16x64xf32>
    %184 = tpu.matmul %181, %183, %cst_93 {dimension_numbers = #tpu.dot_dimension_numbers<[1], [0], [0], [1], [0, 0, 1, 1], [], []>} : vector<16x32xbf16>, vector<32x64xbf16>, vector<16x64xf32> -> vector<16x64xf32>
    %c3_94 = arith.constant 3 : index
    %c0_95 = arith.constant 0 : index
    %c0_96 = arith.constant 0 : index
    %185 = vector.load %arg12[%c3_94, %c0_95, %c0_96] : memref<4x1x64xf32, #tpu.memory_space<vmem>>, vector<1x1x64xf32>
    %186 = vector.shape_cast %185 : vector<1x1x64xf32> to vector<1x64xf32>
    %187 = vector.broadcast %186 : vector<1x64xf32> to vector<16x64xf32>
    %188 = arith.addf %184, %187 : vector<16x64xf32>
    %189 = vector.extract_strided_slice %188 {offsets = [0, 0], sizes = [16, 32], strides = [1, 1]} : vector<16x64xf32> to vector<16x32xf32>
    %190 = arith.addf %152, %189 : vector<16x32xf32>
    %cst_97 = arith.constant 0.707106769 : f32
    %191 = vector.broadcast %cst_97 : f32 to vector<16x32xf32>
    %192 = arith.mulf %190, %191 : vector<16x32xf32>
    %193 = vector.extract_strided_slice %188 {offsets = [0, 32], sizes = [16, 32], strides = [1, 1]} : vector<16x64xf32> to vector<16x32xf32>
    %194 = arith.addf %154, %193 : vector<16x32xf32>
    %cst_98 = arith.constant 5.000000e-01 : f32
    %195 = vector.broadcast %cst_98 : f32 to vector<16x32xf32>
    %196 = arith.mulf %194, %195 : vector<16x32xf32>
    %cst_99 = arith.constant 0.000000e+00 : f32
    %197 = vector.broadcast %cst_99 : f32 to vector<16x128xf32>
    %198 = vector.extract_strided_slice %27 {offsets = [0, 0], sizes = [1, 64], strides = [1, 1]} : vector<1x128xf32> to vector<1x64xf32>
    %199 = vector.broadcast %198 : vector<1x64xf32> to vector<16x64xf32>
    %200 = arith.addf %3, %199 : vector<16x64xf32>
    %201 = vector.extract_strided_slice %32 {offsets = [0, 0], sizes = [16, 64], strides = [1, 1]} : vector<16x128xf32> to vector<16x64xf32>
    %202 = arith.addf %200, %201 : vector<16x64xf32>
    %c0_100 = arith.constant 0 : index
    %c0_101 = arith.constant 0 : index
    %c0_102 = arith.constant 0 : index
    %203 = vector.load %arg17[%c0_100, %c0_101, %c0_102] : memref<2x1x64xf32, #tpu.memory_space<vmem>>, vector<1x1x64xf32>
    %204 = vector.shape_cast %203 : vector<1x1x64xf32> to vector<1x64xf32>
    %c0_103 = arith.constant 0 : index
    %c0_104 = arith.constant 0 : index
    %c0_105 = arith.constant 0 : index
    %205 = vector.load %arg18[%c0_103, %c0_104, %c0_105] : memref<2x1x64xf32, #tpu.memory_space<vmem>>, vector<1x1x64xf32>
    %206 = vector.shape_cast %205 : vector<1x1x64xf32> to vector<1x64xf32>
    %cst_106 = arith.constant dense<0.000000e+00> : vector<16xf32>
    %207 = vector.multi_reduction <add>, %202, %cst_106 [1] : vector<16x64xf32> to vector<16xf32>
    %208 = vector.shape_cast %207 : vector<16xf32> to vector<16x1xf32>
    %cst_107 = arith.constant 6.400000e+01 : f32
    %209 = vector.broadcast %cst_107 : f32 to vector<16x1xf32>
    %210 = arith.divf %208, %209 : vector<16x1xf32>
    %211 = vector.broadcast %210 : vector<16x1xf32> to vector<16x64xf32>
    %212 = arith.subf %202, %211 : vector<16x64xf32>
    %213 = arith.mulf %212, %212 : vector<16x64xf32>
    %cst_108 = arith.constant dense<0.000000e+00> : vector<16xf32>
    %214 = vector.multi_reduction <add>, %213, %cst_108 [1] : vector<16x64xf32> to vector<16xf32>
    %215 = vector.shape_cast %214 : vector<16xf32> to vector<16x1xf32>
    %cst_109 = arith.constant 6.400000e+01 : f32
    %216 = vector.broadcast %cst_109 : f32 to vector<16x1xf32>
    %217 = arith.divf %215, %216 : vector<16x1xf32>
    %218 = vector.broadcast %210 : vector<16x1xf32> to vector<16x64xf32>
    %219 = arith.subf %202, %218 : vector<16x64xf32>
    %cst_110 = arith.constant 9.99999974E-6 : f32
    %220 = vector.broadcast %cst_110 : f32 to vector<16x1xf32>
    %221 = arith.addf %217, %220 : vector<16x1xf32>
    %222 = math.rsqrt %221 : vector<16x1xf32>
    %223 = vector.broadcast %222 : vector<16x1xf32> to vector<16x64xf32>
    %224 = arith.mulf %219, %223 : vector<16x64xf32>
    %225 = vector.broadcast %204 : vector<1x64xf32> to vector<16x64xf32>
    %226 = arith.mulf %224, %225 : vector<16x64xf32>
    %227 = vector.broadcast %206 : vector<1x64xf32> to vector<16x64xf32>
    %228 = arith.addf %226, %227 : vector<16x64xf32>
    %229 = arith.truncf %228 : vector<16x64xf32> to vector<16x64xbf16>
    %c0_111 = arith.constant 0 : index
    %c0_112 = arith.constant 0 : index
    %c0_113 = arith.constant 0 : index
    %230 = vector.load %arg19[%c0_111, %c0_112, %c0_113] : memref<2x64x256xbf16, #tpu.memory_space<vmem>>, vector<1x64x256xbf16>
    %231 = vector.shape_cast %230 : vector<1x64x256xbf16> to vector<64x256xbf16>
    %cst_114 = arith.constant dense<0.000000e+00> : vector<16x256xf32>
    %232 = tpu.matmul %229, %231, %cst_114 {dimension_numbers = #tpu.dot_dimension_numbers<[1], [0], [0], [1], [0, 0, 1, 1], [], []>} : vector<16x64xbf16>, vector<64x256xbf16>, vector<16x256xf32> -> vector<16x256xf32>
    %c0_115 = arith.constant 0 : index
    %c0_116 = arith.constant 0 : index
    %c0_117 = arith.constant 0 : index
    %233 = vector.load %arg20[%c0_115, %c0_116, %c0_117] : memref<2x1x256xf32, #tpu.memory_space<vmem>>, vector<1x1x256xf32>
    %234 = vector.shape_cast %233 : vector<1x1x256xf32> to vector<1x256xf32>
    %235 = vector.broadcast %234 : vector<1x256xf32> to vector<16x256xf32>
    %236 = arith.addf %232, %235 : vector<16x256xf32>
    %237 = vector.extract_strided_slice %236 {offsets = [0, 0], sizes = [16, 128], strides = [1, 1]} : vector<16x256xf32> to vector<16x128xf32>
    %238 = vector.extract_strided_slice %236 {offsets = [0, 128], sizes = [16, 128], strides = [1, 1]} : vector<16x256xf32> to vector<16x128xf32>
    %239 = arith.negf %238 : vector<16x128xf32>
    %240 = math.exp %239 : vector<16x128xf32>
    %cst_118 = arith.constant 1.000000e+00 : f32
    %241 = vector.broadcast %cst_118 : f32 to vector<16x128xf32>
    %242 = arith.addf %241, %240 : vector<16x128xf32>
    %243 = arith.divf %241, %242 : vector<16x128xf32>
    %244 = arith.mulf %237, %243 : vector<16x128xf32>
    %245 = tpu.concatenate %197, %244, %197 in 0 : vector<16x128xf32>, vector<16x128xf32>, vector<16x128xf32> -> vector<48x128xf32>
    %c0_119 = arith.constant 0 : index
    %c0_120 = arith.constant 0 : index
    %c0_121 = arith.constant 0 : index
    %246 = vector.load %arg21[%c0_119, %c0_120, %c0_121] : memref<2x31x128xf32, #tpu.memory_space<vmem>>, vector<1x31x128xf32>
    %247 = vector.shape_cast %246 : vector<1x31x128xf32> to vector<31x128xf32>
    %cst_122 = arith.constant 0.000000e+00 : f32
    %248 = vector.broadcast %cst_122 : f32 to vector<16x128xf32>
    %249 = vector.extract_strided_slice %245 {offsets = [1, 0], sizes = [16, 128], strides = [1, 1]} : vector<48x128xf32> to vector<16x128xf32>
    %250 = vector.extract_strided_slice %247 {offsets = [0, 0], sizes = [1, 128], strides = [1, 1]} : vector<31x128xf32> to vector<1x128xf32>
    %251 = vector.broadcast %250 : vector<1x128xf32> to vector<16x128xf32>
    %252 = arith.mulf %249, %251 : vector<16x128xf32>
    %253 = arith.addf %248, %252 : vector<16x128xf32>
    %254 = vector.extract_strided_slice %245 {offsets = [2, 0], sizes = [16, 128], strides = [1, 1]} : vector<48x128xf32> to vector<16x128xf32>
    %255 = vector.extract_strided_slice %247 {offsets = [1, 0], sizes = [1, 128], strides = [1, 1]} : vector<31x128xf32> to vector<1x128xf32>
    %256 = vector.broadcast %255 : vector<1x128xf32> to vector<16x128xf32>
    %257 = arith.mulf %254, %256 : vector<16x128xf32>
    %258 = arith.addf %253, %257 : vector<16x128xf32>
    %259 = vector.extract_strided_slice %245 {offsets = [3, 0], sizes = [16, 128], strides = [1, 1]} : vector<48x128xf32> to vector<16x128xf32>
    %260 = vector.extract_strided_slice %247 {offsets = [2, 0], sizes = [1, 128], strides = [1, 1]} : vector<31x128xf32> to vector<1x128xf32>
    %261 = vector.broadcast %260 : vector<1x128xf32> to vector<16x128xf32>
    %262 = arith.mulf %259, %261 : vector<16x128xf32>
    %263 = arith.addf %258, %262 : vector<16x128xf32>
    %264 = vector.extract_strided_slice %245 {offsets = [4, 0], sizes = [16, 128], strides = [1, 1]} : vector<48x128xf32> to vector<16x128xf32>
    %265 = vector.extract_strided_slice %247 {offsets = [3, 0], sizes = [1, 128], strides = [1, 1]} : vector<31x128xf32> to vector<1x128xf32>
    %266 = vector.broadcast %265 : vector<1x128xf32> to vector<16x128xf32>
    %267 = arith.mulf %264, %266 : vector<16x128xf32>
    %268 = arith.addf %263, %267 : vector<16x128xf32>
    %269 = vector.extract_strided_slice %245 {offsets = [5, 0], sizes = [16, 128], strides = [1, 1]} : vector<48x128xf32> to vector<16x128xf32>
    %270 = vector.extract_strided_slice %247 {offsets = [4, 0], sizes = [1, 128], strides = [1, 1]} : vector<31x128xf32> to vector<1x128xf32>
    %271 = vector.broadcast %270 : vector<1x128xf32> to vector<16x128xf32>
    %272 = arith.mulf %269, %271 : vector<16x128xf32>
    %273 = arith.addf %268, %272 : vector<16x128xf32>
    %274 = vector.extract_strided_slice %245 {offsets = [6, 0], sizes = [16, 128], strides = [1, 1]} : vector<48x128xf32> to vector<16x128xf32>
    %275 = vector.extract_strided_slice %247 {offsets = [5, 0], sizes = [1, 128], strides = [1, 1]} : vector<31x128xf32> to vector<1x128xf32>
    %276 = vector.broadcast %275 : vector<1x128xf32> to vector<16x128xf32>
    %277 = arith.mulf %274, %276 : vector<16x128xf32>
    %278 = arith.addf %273, %277 : vector<16x128xf32>
    %279 = vector.extract_strided_slice %245 {offsets = [7, 0], sizes = [16, 128], strides = [1, 1]} : vector<48x128xf32> to vector<16x128xf32>
    %280 = vector.extract_strided_slice %247 {offsets = [6, 0], sizes = [1, 128], strides = [1, 1]} : vector<31x128xf32> to vector<1x128xf32>
    %281 = vector.broadcast %280 : vector<1x128xf32> to vector<16x128xf32>
    %282 = arith.mulf %279, %281 : vector<16x128xf32>
    %283 = arith.addf %278, %282 : vector<16x128xf32>
    %284 = vector.extract_strided_slice %245 {offsets = [8, 0], sizes = [16, 128], strides = [1, 1]} : vector<48x128xf32> to vector<16x128xf32>
    %285 = vector.extract_strided_slice %247 {offsets = [7, 0], sizes = [1, 128], strides = [1, 1]} : vector<31x128xf32> to vector<1x128xf32>
    %286 = vector.broadcast %285 : vector<1x128xf32> to vector<16x128xf32>
    %287 = arith.mulf %284, %286 : vector<16x128xf32>
    %288 = arith.addf %283, %287 : vector<16x128xf32>
    %289 = vector.extract_strided_slice %245 {offsets = [9, 0], sizes = [16, 128], strides = [1, 1]} : vector<48x128xf32> to vector<16x128xf32>
    %290 = vector.extract_strided_slice %247 {offsets = [8, 0], sizes = [1, 128], strides = [1, 1]} : vector<31x128xf32> to vector<1x128xf32>
    %291 = vector.broadcast %290 : vector<1x128xf32> to vector<16x128xf32>
    %292 = arith.mulf %289, %291 : vector<16x128xf32>
    %293 = arith.addf %288, %292 : vector<16x128xf32>
    %294 = vector.extract_strided_slice %245 {offsets = [10, 0], sizes = [16, 128], strides = [1, 1]} : vector<48x128xf32> to vector<16x128xf32>
    %295 = vector.extract_strided_slice %247 {offsets = [9, 0], sizes = [1, 128], strides = [1, 1]} : vector<31x128xf32> to vector<1x128xf32>
    %296 = vector.broadcast %295 : vector<1x128xf32> to vector<16x128xf32>
    %297 = arith.mulf %294, %296 : vector<16x128xf32>
    %298 = arith.addf %293, %297 : vector<16x128xf32>
    %299 = vector.extract_strided_slice %245 {offsets = [11, 0], sizes = [16, 128], strides = [1, 1]} : vector<48x128xf32> to vector<16x128xf32>
    %300 = vector.extract_strided_slice %247 {offsets = [10, 0], sizes = [1, 128], strides = [1, 1]} : vector<31x128xf32> to vector<1x128xf32>
    %301 = vector.broadcast %300 : vector<1x128xf32> to vector<16x128xf32>
    %302 = arith.mulf %299, %301 : vector<16x128xf32>
    %303 = arith.addf %298, %302 : vector<16x128xf32>
    %304 = vector.extract_strided_slice %245 {offsets = [12, 0], sizes = [16, 128], strides = [1, 1]} : vector<48x128xf32> to vector<16x128xf32>
    %305 = vector.extract_strided_slice %247 {offsets = [11, 0], sizes = [1, 128], strides = [1, 1]} : vector<31x128xf32> to vector<1x128xf32>
    %306 = vector.broadcast %305 : vector<1x128xf32> to vector<16x128xf32>
    %307 = arith.mulf %304, %306 : vector<16x128xf32>
    %308 = arith.addf %303, %307 : vector<16x128xf32>
    %309 = vector.extract_strided_slice %245 {offsets = [13, 0], sizes = [16, 128], strides = [1, 1]} : vector<48x128xf32> to vector<16x128xf32>
    %310 = vector.extract_strided_slice %247 {offsets = [12, 0], sizes = [1, 128], strides = [1, 1]} : vector<31x128xf32> to vector<1x128xf32>
    %311 = vector.broadcast %310 : vector<1x128xf32> to vector<16x128xf32>
    %312 = arith.mulf %309, %311 : vector<16x128xf32>
    %313 = arith.addf %308, %312 : vector<16x128xf32>
    %314 = vector.extract_strided_slice %245 {offsets = [14, 0], sizes = [16, 128], strides = [1, 1]} : vector<48x128xf32> to vector<16x128xf32>
    %315 = vector.extract_strided_slice %247 {offsets = [13, 0], sizes = [1, 128], strides = [1, 1]} : vector<31x128xf32> to vector<1x128xf32>
    %316 = vector.broadcast %315 : vector<1x128xf32> to vector<16x128xf32>
    %317 = arith.mulf %314, %316 : vector<16x128xf32>
    %318 = arith.addf %313, %317 : vector<16x128xf32>
    %319 = vector.extract_strided_slice %245 {offsets = [15, 0], sizes = [16, 128], strides = [1, 1]} : vector<48x128xf32> to vector<16x128xf32>
    %320 = vector.extract_strided_slice %247 {offsets = [14, 0], sizes = [1, 128], strides = [1, 1]} : vector<31x128xf32> to vector<1x128xf32>
    %321 = vector.broadcast %320 : vector<1x128xf32> to vector<16x128xf32>
    %322 = arith.mulf %319, %321 : vector<16x128xf32>
    %323 = arith.addf %318, %322 : vector<16x128xf32>
    %324 = vector.extract_strided_slice %245 {offsets = [16, 0], sizes = [16, 128], strides = [1, 1]} : vector<48x128xf32> to vector<16x128xf32>
    %325 = vector.extract_strided_slice %247 {offsets = [15, 0], sizes = [1, 128], strides = [1, 1]} : vector<31x128xf32> to vector<1x128xf32>
    %326 = vector.broadcast %325 : vector<1x128xf32> to vector<16x128xf32>
    %327 = arith.mulf %324, %326 : vector<16x128xf32>
    %328 = arith.addf %323, %327 : vector<16x128xf32>
    %329 = vector.extract_strided_slice %245 {offsets = [17, 0], sizes = [16, 128], strides = [1, 1]} : vector<48x128xf32> to vector<16x128xf32>
    %330 = vector.extract_strided_slice %247 {offsets = [16, 0], sizes = [1, 128], strides = [1, 1]} : vector<31x128xf32> to vector<1x128xf32>
    %331 = vector.broadcast %330 : vector<1x128xf32> to vector<16x128xf32>
    %332 = arith.mulf %329, %331 : vector<16x128xf32>
    %333 = arith.addf %328, %332 : vector<16x128xf32>
    %334 = vector.extract_strided_slice %245 {offsets = [18, 0], sizes = [16, 128], strides = [1, 1]} : vector<48x128xf32> to vector<16x128xf32>
    %335 = vector.extract_strided_slice %247 {offsets = [17, 0], sizes = [1, 128], strides = [1, 1]} : vector<31x128xf32> to vector<1x128xf32>
    %336 = vector.broadcast %335 : vector<1x128xf32> to vector<16x128xf32>
    %337 = arith.mulf %334, %336 : vector<16x128xf32>
    %338 = arith.addf %333, %337 : vector<16x128xf32>
    %339 = vector.extract_strided_slice %245 {offsets = [19, 0], sizes = [16, 128], strides = [1, 1]} : vector<48x128xf32> to vector<16x128xf32>
    %340 = vector.extract_strided_slice %247 {offsets = [18, 0], sizes = [1, 128], strides = [1, 1]} : vector<31x128xf32> to vector<1x128xf32>
    %341 = vector.broadcast %340 : vector<1x128xf32> to vector<16x128xf32>
    %342 = arith.mulf %339, %341 : vector<16x128xf32>
    %343 = arith.addf %338, %342 : vector<16x128xf32>
    %344 = vector.extract_strided_slice %245 {offsets = [20, 0], sizes = [16, 128], strides = [1, 1]} : vector<48x128xf32> to vector<16x128xf32>
    %345 = vector.extract_strided_slice %247 {offsets = [19, 0], sizes = [1, 128], strides = [1, 1]} : vector<31x128xf32> to vector<1x128xf32>
    %346 = vector.broadcast %345 : vector<1x128xf32> to vector<16x128xf32>
    %347 = arith.mulf %344, %346 : vector<16x128xf32>
    %348 = arith.addf %343, %347 : vector<16x128xf32>
    %349 = vector.extract_strided_slice %245 {offsets = [21, 0], sizes = [16, 128], strides = [1, 1]} : vector<48x128xf32> to vector<16x128xf32>
    %350 = vector.extract_strided_slice %247 {offsets = [20, 0], sizes = [1, 128], strides = [1, 1]} : vector<31x128xf32> to vector<1x128xf32>
    %351 = vector.broadcast %350 : vector<1x128xf32> to vector<16x128xf32>
    %352 = arith.mulf %349, %351 : vector<16x128xf32>
    %353 = arith.addf %348, %352 : vector<16x128xf32>
    %354 = vector.extract_strided_slice %245 {offsets = [22, 0], sizes = [16, 128], strides = [1, 1]} : vector<48x128xf32> to vector<16x128xf32>
    %355 = vector.extract_strided_slice %247 {offsets = [21, 0], sizes = [1, 128], strides = [1, 1]} : vector<31x128xf32> to vector<1x128xf32>
    %356 = vector.broadcast %355 : vector<1x128xf32> to vector<16x128xf32>
    %357 = arith.mulf %354, %356 : vector<16x128xf32>
    %358 = arith.addf %353, %357 : vector<16x128xf32>
    %359 = vector.extract_strided_slice %245 {offsets = [23, 0], sizes = [16, 128], strides = [1, 1]} : vector<48x128xf32> to vector<16x128xf32>
    %360 = vector.extract_strided_slice %247 {offsets = [22, 0], sizes = [1, 128], strides = [1, 1]} : vector<31x128xf32> to vector<1x128xf32>
    %361 = vector.broadcast %360 : vector<1x128xf32> to vector<16x128xf32>
    %362 = arith.mulf %359, %361 : vector<16x128xf32>
    %363 = arith.addf %358, %362 : vector<16x128xf32>
    %364 = vector.extract_strided_slice %245 {offsets = [24, 0], sizes = [16, 128], strides = [1, 1]} : vector<48x128xf32> to vector<16x128xf32>
    %365 = vector.extract_strided_slice %247 {offsets = [23, 0], sizes = [1, 128], strides = [1, 1]} : vector<31x128xf32> to vector<1x128xf32>
    %366 = vector.broadcast %365 : vector<1x128xf32> to vector<16x128xf32>
    %367 = arith.mulf %364, %366 : vector<16x128xf32>
    %368 = arith.addf %363, %367 : vector<16x128xf32>
    %369 = vector.extract_strided_slice %245 {offsets = [25, 0], sizes = [16, 128], strides = [1, 1]} : vector<48x128xf32> to vector<16x128xf32>
    %370 = vector.extract_strided_slice %247 {offsets = [24, 0], sizes = [1, 128], strides = [1, 1]} : vector<31x128xf32> to vector<1x128xf32>
    %371 = vector.broadcast %370 : vector<1x128xf32> to vector<16x128xf32>
    %372 = arith.mulf %369, %371 : vector<16x128xf32>
    %373 = arith.addf %368, %372 : vector<16x128xf32>
    %374 = vector.extract_strided_slice %245 {offsets = [26, 0], sizes = [16, 128], strides = [1, 1]} : vector<48x128xf32> to vector<16x128xf32>
    %375 = vector.extract_strided_slice %247 {offsets = [25, 0], sizes = [1, 128], strides = [1, 1]} : vector<31x128xf32> to vector<1x128xf32>
    %376 = vector.broadcast %375 : vector<1x128xf32> to vector<16x128xf32>
    %377 = arith.mulf %374, %376 : vector<16x128xf32>
    %378 = arith.addf %373, %377 : vector<16x128xf32>
    %379 = vector.extract_strided_slice %245 {offsets = [27, 0], sizes = [16, 128], strides = [1, 1]} : vector<48x128xf32> to vector<16x128xf32>
    %380 = vector.extract_strided_slice %247 {offsets = [26, 0], sizes = [1, 128], strides = [1, 1]} : vector<31x128xf32> to vector<1x128xf32>
    %381 = vector.broadcast %380 : vector<1x128xf32> to vector<16x128xf32>
    %382 = arith.mulf %379, %381 : vector<16x128xf32>
    %383 = arith.addf %378, %382 : vector<16x128xf32>
    %384 = vector.extract_strided_slice %245 {offsets = [28, 0], sizes = [16, 128], strides = [1, 1]} : vector<48x128xf32> to vector<16x128xf32>
    %385 = vector.extract_strided_slice %247 {offsets = [27, 0], sizes = [1, 128], strides = [1, 1]} : vector<31x128xf32> to vector<1x128xf32>
    %386 = vector.broadcast %385 : vector<1x128xf32> to vector<16x128xf32>
    %387 = arith.mulf %384, %386 : vector<16x128xf32>
    %388 = arith.addf %383, %387 : vector<16x128xf32>
    %389 = vector.extract_strided_slice %245 {offsets = [29, 0], sizes = [16, 128], strides = [1, 1]} : vector<48x128xf32> to vector<16x128xf32>
    %390 = vector.extract_strided_slice %247 {offsets = [28, 0], sizes = [1, 128], strides = [1, 1]} : vector<31x128xf32> to vector<1x128xf32>
    %391 = vector.broadcast %390 : vector<1x128xf32> to vector<16x128xf32>
    %392 = arith.mulf %389, %391 : vector<16x128xf32>
    %393 = arith.addf %388, %392 : vector<16x128xf32>
    %394 = vector.extract_strided_slice %245 {offsets = [30, 0], sizes = [16, 128], strides = [1, 1]} : vector<48x128xf32> to vector<16x128xf32>
    %395 = vector.extract_strided_slice %247 {offsets = [29, 0], sizes = [1, 128], strides = [1, 1]} : vector<31x128xf32> to vector<1x128xf32>
    %396 = vector.broadcast %395 : vector<1x128xf32> to vector<16x128xf32>
    %397 = arith.mulf %394, %396 : vector<16x128xf32>
    %398 = arith.addf %393, %397 : vector<16x128xf32>
    %399 = vector.extract_strided_slice %245 {offsets = [31, 0], sizes = [16, 128], strides = [1, 1]} : vector<48x128xf32> to vector<16x128xf32>
    %400 = vector.extract_strided_slice %247 {offsets = [30, 0], sizes = [1, 128], strides = [1, 1]} : vector<31x128xf32> to vector<1x128xf32>
    %401 = vector.broadcast %400 : vector<1x128xf32> to vector<16x128xf32>
    %402 = arith.mulf %399, %401 : vector<16x128xf32>
    %403 = arith.addf %398, %402 : vector<16x128xf32>
    %c0_123 = arith.constant 0 : index
    %c0_124 = arith.constant 0 : index
    %c0_125 = arith.constant 0 : index
    %404 = vector.load %arg22[%c0_123, %c0_124, %c0_125] : memref<2x1x128xf32, #tpu.memory_space<vmem>>, vector<1x1x128xf32>
    %405 = vector.shape_cast %404 : vector<1x1x128xf32> to vector<1x128xf32>
    %406 = vector.broadcast %405 : vector<1x128xf32> to vector<16x128xf32>
    %407 = arith.addf %403, %406 : vector<16x128xf32>
    %c0_126 = arith.constant 0 : index
    %c0_127 = arith.constant 0 : index
    %c0_128 = arith.constant 0 : index
    %408 = vector.load %arg23[%c0_126, %c0_127, %c0_128] : memref<2x1x128xf32, #tpu.memory_space<vmem>>, vector<1x1x128xf32>
    %409 = vector.shape_cast %408 : vector<1x1x128xf32> to vector<1x128xf32>
    %cst_129 = arith.constant 0.000000e+00 : f32
    %410 = vector.broadcast %cst_129 : f32 to vector<16x128xf32>
    %411 = arith.cmpf oge, %407, %410 : vector<16x128xf32>
    %412 = vector.broadcast %409 : vector<1x128xf32> to vector<16x128xf32>
    %413 = arith.mulf %412, %407 : vector<16x128xf32>
    %414 = arith.select %411, %407, %413 : vector<16x128xi1>, vector<16x128xf32>
    %415 = arith.truncf %414 : vector<16x128xf32> to vector<16x128xbf16>
    %c0_130 = arith.constant 0 : index
    %c0_131 = arith.constant 0 : index
    %c0_132 = arith.constant 0 : index
    %416 = vector.load %arg24[%c0_130, %c0_131, %c0_132] : memref<2x128x64xbf16, #tpu.memory_space<vmem>>, vector<1x128x64xbf16>
    %417 = vector.shape_cast %416 : vector<1x128x64xbf16> to vector<128x64xbf16>
    %cst_133 = arith.constant dense<0.000000e+00> : vector<16x64xf32>
    %418 = tpu.matmul %415, %417, %cst_133 {dimension_numbers = #tpu.dot_dimension_numbers<[1], [0], [0], [1], [0, 0, 1, 1], [], []>} : vector<16x128xbf16>, vector<128x64xbf16>, vector<16x64xf32> -> vector<16x64xf32>
    %c0_134 = arith.constant 0 : index
    %c0_135 = arith.constant 0 : index
    %c0_136 = arith.constant 0 : index
    %419 = vector.load %arg25[%c0_134, %c0_135, %c0_136] : memref<2x1x64xf32, #tpu.memory_space<vmem>>, vector<1x1x64xf32>
    %420 = vector.shape_cast %419 : vector<1x1x64xf32> to vector<1x64xf32>
    %421 = vector.broadcast %420 : vector<1x64xf32> to vector<16x64xf32>
    %422 = arith.addf %418, %421 : vector<16x64xf32>
    %423 = arith.addf %422, %3 : vector<16x64xf32>
    %424 = vector.extract_strided_slice %27 {offsets = [0, 64], sizes = [1, 64], strides = [1, 1]} : vector<1x128xf32> to vector<1x64xf32>
    %425 = vector.broadcast %424 : vector<1x64xf32> to vector<16x64xf32>
    %426 = arith.addf %423, %425 : vector<16x64xf32>
    %427 = vector.extract_strided_slice %32 {offsets = [0, 64], sizes = [16, 64], strides = [1, 1]} : vector<16x128xf32> to vector<16x64xf32>
    %428 = arith.addf %426, %427 : vector<16x64xf32>
    %c1_137 = arith.constant 1 : index
    %c0_138 = arith.constant 0 : index
    %c0_139 = arith.constant 0 : index
    %429 = vector.load %arg17[%c1_137, %c0_138, %c0_139] : memref<2x1x64xf32, #tpu.memory_space<vmem>>, vector<1x1x64xf32>
    %430 = vector.shape_cast %429 : vector<1x1x64xf32> to vector<1x64xf32>
    %c1_140 = arith.constant 1 : index
    %c0_141 = arith.constant 0 : index
    %c0_142 = arith.constant 0 : index
    %431 = vector.load %arg18[%c1_140, %c0_141, %c0_142] : memref<2x1x64xf32, #tpu.memory_space<vmem>>, vector<1x1x64xf32>
    %432 = vector.shape_cast %431 : vector<1x1x64xf32> to vector<1x64xf32>
    %cst_143 = arith.constant dense<0.000000e+00> : vector<16xf32>
    %433 = vector.multi_reduction <add>, %428, %cst_143 [1] : vector<16x64xf32> to vector<16xf32>
    %434 = vector.shape_cast %433 : vector<16xf32> to vector<16x1xf32>
    %cst_144 = arith.constant 6.400000e+01 : f32
    %435 = vector.broadcast %cst_144 : f32 to vector<16x1xf32>
    %436 = arith.divf %434, %435 : vector<16x1xf32>
    %437 = vector.broadcast %436 : vector<16x1xf32> to vector<16x64xf32>
    %438 = arith.subf %428, %437 : vector<16x64xf32>
    %439 = arith.mulf %438, %438 : vector<16x64xf32>
    %cst_145 = arith.constant dense<0.000000e+00> : vector<16xf32>
    %440 = vector.multi_reduction <add>, %439, %cst_145 [1] : vector<16x64xf32> to vector<16xf32>
    %441 = vector.shape_cast %440 : vector<16xf32> to vector<16x1xf32>
    %cst_146 = arith.constant 6.400000e+01 : f32
    %442 = vector.broadcast %cst_146 : f32 to vector<16x1xf32>
    %443 = arith.divf %441, %442 : vector<16x1xf32>
    %444 = vector.broadcast %436 : vector<16x1xf32> to vector<16x64xf32>
    %445 = arith.subf %428, %444 : vector<16x64xf32>
    %cst_147 = arith.constant 9.99999974E-6 : f32
    %446 = vector.broadcast %cst_147 : f32 to vector<16x1xf32>
    %447 = arith.addf %443, %446 : vector<16x1xf32>
    %448 = math.rsqrt %447 : vector<16x1xf32>
    %449 = vector.broadcast %448 : vector<16x1xf32> to vector<16x64xf32>
    %450 = arith.mulf %445, %449 : vector<16x64xf32>
    %451 = vector.broadcast %430 : vector<1x64xf32> to vector<16x64xf32>
    %452 = arith.mulf %450, %451 : vector<16x64xf32>
    %453 = vector.broadcast %432 : vector<1x64xf32> to vector<16x64xf32>
    %454 = arith.addf %452, %453 : vector<16x64xf32>
    %455 = arith.truncf %454 : vector<16x64xf32> to vector<16x64xbf16>
    %c1_148 = arith.constant 1 : index
    %c0_149 = arith.constant 0 : index
    %c0_150 = arith.constant 0 : index
    %456 = vector.load %arg19[%c1_148, %c0_149, %c0_150] : memref<2x64x256xbf16, #tpu.memory_space<vmem>>, vector<1x64x256xbf16>
    %457 = vector.shape_cast %456 : vector<1x64x256xbf16> to vector<64x256xbf16>
    %cst_151 = arith.constant dense<0.000000e+00> : vector<16x256xf32>
    %458 = tpu.matmul %455, %457, %cst_151 {dimension_numbers = #tpu.dot_dimension_numbers<[1], [0], [0], [1], [0, 0, 1, 1], [], []>} : vector<16x64xbf16>, vector<64x256xbf16>, vector<16x256xf32> -> vector<16x256xf32>
    %c1_152 = arith.constant 1 : index
    %c0_153 = arith.constant 0 : index
    %c0_154 = arith.constant 0 : index
    %459 = vector.load %arg20[%c1_152, %c0_153, %c0_154] : memref<2x1x256xf32, #tpu.memory_space<vmem>>, vector<1x1x256xf32>
    %460 = vector.shape_cast %459 : vector<1x1x256xf32> to vector<1x256xf32>
    %461 = vector.broadcast %460 : vector<1x256xf32> to vector<16x256xf32>
    %462 = arith.addf %458, %461 : vector<16x256xf32>
    %463 = vector.extract_strided_slice %462 {offsets = [0, 0], sizes = [16, 128], strides = [1, 1]} : vector<16x256xf32> to vector<16x128xf32>
    %464 = vector.extract_strided_slice %462 {offsets = [0, 128], sizes = [16, 128], strides = [1, 1]} : vector<16x256xf32> to vector<16x128xf32>
    %465 = arith.negf %464 : vector<16x128xf32>
    %466 = math.exp %465 : vector<16x128xf32>
    %cst_155 = arith.constant 1.000000e+00 : f32
    %467 = vector.broadcast %cst_155 : f32 to vector<16x128xf32>
    %468 = arith.addf %467, %466 : vector<16x128xf32>
    %469 = arith.divf %467, %468 : vector<16x128xf32>
    %470 = arith.mulf %463, %469 : vector<16x128xf32>
    %471 = tpu.concatenate %197, %470, %197 in 0 : vector<16x128xf32>, vector<16x128xf32>, vector<16x128xf32> -> vector<48x128xf32>
    %c1_156 = arith.constant 1 : index
    %c0_157 = arith.constant 0 : index
    %c0_158 = arith.constant 0 : index
    %472 = vector.load %arg21[%c1_156, %c0_157, %c0_158] : memref<2x31x128xf32, #tpu.memory_space<vmem>>, vector<1x31x128xf32>
    %473 = vector.shape_cast %472 : vector<1x31x128xf32> to vector<31x128xf32>
    %cst_159 = arith.constant 0.000000e+00 : f32
    %474 = vector.broadcast %cst_159 : f32 to vector<16x128xf32>
    %475 = vector.extract_strided_slice %471 {offsets = [1, 0], sizes = [16, 128], strides = [1, 1]} : vector<48x128xf32> to vector<16x128xf32>
    %476 = vector.extract_strided_slice %473 {offsets = [0, 0], sizes = [1, 128], strides = [1, 1]} : vector<31x128xf32> to vector<1x128xf32>
    %477 = vector.broadcast %476 : vector<1x128xf32> to vector<16x128xf32>
    %478 = arith.mulf %475, %477 : vector<16x128xf32>
    %479 = arith.addf %474, %478 : vector<16x128xf32>
    %480 = vector.extract_strided_slice %471 {offsets = [2, 0], sizes = [16, 128], strides = [1, 1]} : vector<48x128xf32> to vector<16x128xf32>
    %481 = vector.extract_strided_slice %473 {offsets = [1, 0], sizes = [1, 128], strides = [1, 1]} : vector<31x128xf32> to vector<1x128xf32>
    %482 = vector.broadcast %481 : vector<1x128xf32> to vector<16x128xf32>
    %483 = arith.mulf %480, %482 : vector<16x128xf32>
    %484 = arith.addf %479, %483 : vector<16x128xf32>
    %485 = vector.extract_strided_slice %471 {offsets = [3, 0], sizes = [16, 128], strides = [1, 1]} : vector<48x128xf32> to vector<16x128xf32>
    %486 = vector.extract_strided_slice %473 {offsets = [2, 0], sizes = [1, 128], strides = [1, 1]} : vector<31x128xf32> to vector<1x128xf32>
    %487 = vector.broadcast %486 : vector<1x128xf32> to vector<16x128xf32>
    %488 = arith.mulf %485, %487 : vector<16x128xf32>
    %489 = arith.addf %484, %488 : vector<16x128xf32>
    %490 = vector.extract_strided_slice %471 {offsets = [4, 0], sizes = [16, 128], strides = [1, 1]} : vector<48x128xf32> to vector<16x128xf32>
    %491 = vector.extract_strided_slice %473 {offsets = [3, 0], sizes = [1, 128], strides = [1, 1]} : vector<31x128xf32> to vector<1x128xf32>
    %492 = vector.broadcast %491 : vector<1x128xf32> to vector<16x128xf32>
    %493 = arith.mulf %490, %492 : vector<16x128xf32>
    %494 = arith.addf %489, %493 : vector<16x128xf32>
    %495 = vector.extract_strided_slice %471 {offsets = [5, 0], sizes = [16, 128], strides = [1, 1]} : vector<48x128xf32> to vector<16x128xf32>
    %496 = vector.extract_strided_slice %473 {offsets = [4, 0], sizes = [1, 128], strides = [1, 1]} : vector<31x128xf32> to vector<1x128xf32>
    %497 = vector.broadcast %496 : vector<1x128xf32> to vector<16x128xf32>
    %498 = arith.mulf %495, %497 : vector<16x128xf32>
    %499 = arith.addf %494, %498 : vector<16x128xf32>
    %500 = vector.extract_strided_slice %471 {offsets = [6, 0], sizes = [16, 128], strides = [1, 1]} : vector<48x128xf32> to vector<16x128xf32>
    %501 = vector.extract_strided_slice %473 {offsets = [5, 0], sizes = [1, 128], strides = [1, 1]} : vector<31x128xf32> to vector<1x128xf32>
    %502 = vector.broadcast %501 : vector<1x128xf32> to vector<16x128xf32>
    %503 = arith.mulf %500, %502 : vector<16x128xf32>
    %504 = arith.addf %499, %503 : vector<16x128xf32>
    %505 = vector.extract_strided_slice %471 {offsets = [7, 0], sizes = [16, 128], strides = [1, 1]} : vector<48x128xf32> to vector<16x128xf32>
    %506 = vector.extract_strided_slice %473 {offsets = [6, 0], sizes = [1, 128], strides = [1, 1]} : vector<31x128xf32> to vector<1x128xf32>
    %507 = vector.broadcast %506 : vector<1x128xf32> to vector<16x128xf32>
    %508 = arith.mulf %505, %507 : vector<16x128xf32>
    %509 = arith.addf %504, %508 : vector<16x128xf32>
    %510 = vector.extract_strided_slice %471 {offsets = [8, 0], sizes = [16, 128], strides = [1, 1]} : vector<48x128xf32> to vector<16x128xf32>
    %511 = vector.extract_strided_slice %473 {offsets = [7, 0], sizes = [1, 128], strides = [1, 1]} : vector<31x128xf32> to vector<1x128xf32>
    %512 = vector.broadcast %511 : vector<1x128xf32> to vector<16x128xf32>
    %513 = arith.mulf %510, %512 : vector<16x128xf32>
    %514 = arith.addf %509, %513 : vector<16x128xf32>
    %515 = vector.extract_strided_slice %471 {offsets = [9, 0], sizes = [16, 128], strides = [1, 1]} : vector<48x128xf32> to vector<16x128xf32>
    %516 = vector.extract_strided_slice %473 {offsets = [8, 0], sizes = [1, 128], strides = [1, 1]} : vector<31x128xf32> to vector<1x128xf32>
    %517 = vector.broadcast %516 : vector<1x128xf32> to vector<16x128xf32>
    %518 = arith.mulf %515, %517 : vector<16x128xf32>
    %519 = arith.addf %514, %518 : vector<16x128xf32>
    %520 = vector.extract_strided_slice %471 {offsets = [10, 0], sizes = [16, 128], strides = [1, 1]} : vector<48x128xf32> to vector<16x128xf32>
    %521 = vector.extract_strided_slice %473 {offsets = [9, 0], sizes = [1, 128], strides = [1, 1]} : vector<31x128xf32> to vector<1x128xf32>
    %522 = vector.broadcast %521 : vector<1x128xf32> to vector<16x128xf32>
    %523 = arith.mulf %520, %522 : vector<16x128xf32>
    %524 = arith.addf %519, %523 : vector<16x128xf32>
    %525 = vector.extract_strided_slice %471 {offsets = [11, 0], sizes = [16, 128], strides = [1, 1]} : vector<48x128xf32> to vector<16x128xf32>
    %526 = vector.extract_strided_slice %473 {offsets = [10, 0], sizes = [1, 128], strides = [1, 1]} : vector<31x128xf32> to vector<1x128xf32>
    %527 = vector.broadcast %526 : vector<1x128xf32> to vector<16x128xf32>
    %528 = arith.mulf %525, %527 : vector<16x128xf32>
    %529 = arith.addf %524, %528 : vector<16x128xf32>
    %530 = vector.extract_strided_slice %471 {offsets = [12, 0], sizes = [16, 128], strides = [1, 1]} : vector<48x128xf32> to vector<16x128xf32>
    %531 = vector.extract_strided_slice %473 {offsets = [11, 0], sizes = [1, 128], strides = [1, 1]} : vector<31x128xf32> to vector<1x128xf32>
    %532 = vector.broadcast %531 : vector<1x128xf32> to vector<16x128xf32>
    %533 = arith.mulf %530, %532 : vector<16x128xf32>
    %534 = arith.addf %529, %533 : vector<16x128xf32>
    %535 = vector.extract_strided_slice %471 {offsets = [13, 0], sizes = [16, 128], strides = [1, 1]} : vector<48x128xf32> to vector<16x128xf32>
    %536 = vector.extract_strided_slice %473 {offsets = [12, 0], sizes = [1, 128], strides = [1, 1]} : vector<31x128xf32> to vector<1x128xf32>
    %537 = vector.broadcast %536 : vector<1x128xf32> to vector<16x128xf32>
    %538 = arith.mulf %535, %537 : vector<16x128xf32>
    %539 = arith.addf %534, %538 : vector<16x128xf32>
    %540 = vector.extract_strided_slice %471 {offsets = [14, 0], sizes = [16, 128], strides = [1, 1]} : vector<48x128xf32> to vector<16x128xf32>
    %541 = vector.extract_strided_slice %473 {offsets = [13, 0], sizes = [1, 128], strides = [1, 1]} : vector<31x128xf32> to vector<1x128xf32>
    %542 = vector.broadcast %541 : vector<1x128xf32> to vector<16x128xf32>
    %543 = arith.mulf %540, %542 : vector<16x128xf32>
    %544 = arith.addf %539, %543 : vector<16x128xf32>
    %545 = vector.extract_strided_slice %471 {offsets = [15, 0], sizes = [16, 128], strides = [1, 1]} : vector<48x128xf32> to vector<16x128xf32>
    %546 = vector.extract_strided_slice %473 {offsets = [14, 0], sizes = [1, 128], strides = [1, 1]} : vector<31x128xf32> to vector<1x128xf32>
    %547 = vector.broadcast %546 : vector<1x128xf32> to vector<16x128xf32>
    %548 = arith.mulf %545, %547 : vector<16x128xf32>
    %549 = arith.addf %544, %548 : vector<16x128xf32>
    %550 = vector.extract_strided_slice %471 {offsets = [16, 0], sizes = [16, 128], strides = [1, 1]} : vector<48x128xf32> to vector<16x128xf32>
    %551 = vector.extract_strided_slice %473 {offsets = [15, 0], sizes = [1, 128], strides = [1, 1]} : vector<31x128xf32> to vector<1x128xf32>
    %552 = vector.broadcast %551 : vector<1x128xf32> to vector<16x128xf32>
    %553 = arith.mulf %550, %552 : vector<16x128xf32>
    %554 = arith.addf %549, %553 : vector<16x128xf32>
    %555 = vector.extract_strided_slice %471 {offsets = [17, 0], sizes = [16, 128], strides = [1, 1]} : vector<48x128xf32> to vector<16x128xf32>
    %556 = vector.extract_strided_slice %473 {offsets = [16, 0], sizes = [1, 128], strides = [1, 1]} : vector<31x128xf32> to vector<1x128xf32>
    %557 = vector.broadcast %556 : vector<1x128xf32> to vector<16x128xf32>
    %558 = arith.mulf %555, %557 : vector<16x128xf32>
    %559 = arith.addf %554, %558 : vector<16x128xf32>
    %560 = vector.extract_strided_slice %471 {offsets = [18, 0], sizes = [16, 128], strides = [1, 1]} : vector<48x128xf32> to vector<16x128xf32>
    %561 = vector.extract_strided_slice %473 {offsets = [17, 0], sizes = [1, 128], strides = [1, 1]} : vector<31x128xf32> to vector<1x128xf32>
    %562 = vector.broadcast %561 : vector<1x128xf32> to vector<16x128xf32>
    %563 = arith.mulf %560, %562 : vector<16x128xf32>
    %564 = arith.addf %559, %563 : vector<16x128xf32>
    %565 = vector.extract_strided_slice %471 {offsets = [19, 0], sizes = [16, 128], strides = [1, 1]} : vector<48x128xf32> to vector<16x128xf32>
    %566 = vector.extract_strided_slice %473 {offsets = [18, 0], sizes = [1, 128], strides = [1, 1]} : vector<31x128xf32> to vector<1x128xf32>
    %567 = vector.broadcast %566 : vector<1x128xf32> to vector<16x128xf32>
    %568 = arith.mulf %565, %567 : vector<16x128xf32>
    %569 = arith.addf %564, %568 : vector<16x128xf32>
    %570 = vector.extract_strided_slice %471 {offsets = [20, 0], sizes = [16, 128], strides = [1, 1]} : vector<48x128xf32> to vector<16x128xf32>
    %571 = vector.extract_strided_slice %473 {offsets = [19, 0], sizes = [1, 128], strides = [1, 1]} : vector<31x128xf32> to vector<1x128xf32>
    %572 = vector.broadcast %571 : vector<1x128xf32> to vector<16x128xf32>
    %573 = arith.mulf %570, %572 : vector<16x128xf32>
    %574 = arith.addf %569, %573 : vector<16x128xf32>
    %575 = vector.extract_strided_slice %471 {offsets = [21, 0], sizes = [16, 128], strides = [1, 1]} : vector<48x128xf32> to vector<16x128xf32>
    %576 = vector.extract_strided_slice %473 {offsets = [20, 0], sizes = [1, 128], strides = [1, 1]} : vector<31x128xf32> to vector<1x128xf32>
    %577 = vector.broadcast %576 : vector<1x128xf32> to vector<16x128xf32>
    %578 = arith.mulf %575, %577 : vector<16x128xf32>
    %579 = arith.addf %574, %578 : vector<16x128xf32>
    %580 = vector.extract_strided_slice %471 {offsets = [22, 0], sizes = [16, 128], strides = [1, 1]} : vector<48x128xf32> to vector<16x128xf32>
    %581 = vector.extract_strided_slice %473 {offsets = [21, 0], sizes = [1, 128], strides = [1, 1]} : vector<31x128xf32> to vector<1x128xf32>
    %582 = vector.broadcast %581 : vector<1x128xf32> to vector<16x128xf32>
    %583 = arith.mulf %580, %582 : vector<16x128xf32>
    %584 = arith.addf %579, %583 : vector<16x128xf32>
    %585 = vector.extract_strided_slice %471 {offsets = [23, 0], sizes = [16, 128], strides = [1, 1]} : vector<48x128xf32> to vector<16x128xf32>
    %586 = vector.extract_strided_slice %473 {offsets = [22, 0], sizes = [1, 128], strides = [1, 1]} : vector<31x128xf32> to vector<1x128xf32>
    %587 = vector.broadcast %586 : vector<1x128xf32> to vector<16x128xf32>
    %588 = arith.mulf %585, %587 : vector<16x128xf32>
    %589 = arith.addf %584, %588 : vector<16x128xf32>
    %590 = vector.extract_strided_slice %471 {offsets = [24, 0], sizes = [16, 128], strides = [1, 1]} : vector<48x128xf32> to vector<16x128xf32>
    %591 = vector.extract_strided_slice %473 {offsets = [23, 0], sizes = [1, 128], strides = [1, 1]} : vector<31x128xf32> to vector<1x128xf32>
    %592 = vector.broadcast %591 : vector<1x128xf32> to vector<16x128xf32>
    %593 = arith.mulf %590, %592 : vector<16x128xf32>
    %594 = arith.addf %589, %593 : vector<16x128xf32>
    %595 = vector.extract_strided_slice %471 {offsets = [25, 0], sizes = [16, 128], strides = [1, 1]} : vector<48x128xf32> to vector<16x128xf32>
    %596 = vector.extract_strided_slice %473 {offsets = [24, 0], sizes = [1, 128], strides = [1, 1]} : vector<31x128xf32> to vector<1x128xf32>
    %597 = vector.broadcast %596 : vector<1x128xf32> to vector<16x128xf32>
    %598 = arith.mulf %595, %597 : vector<16x128xf32>
    %599 = arith.addf %594, %598 : vector<16x128xf32>
    %600 = vector.extract_strided_slice %471 {offsets = [26, 0], sizes = [16, 128], strides = [1, 1]} : vector<48x128xf32> to vector<16x128xf32>
    %601 = vector.extract_strided_slice %473 {offsets = [25, 0], sizes = [1, 128], strides = [1, 1]} : vector<31x128xf32> to vector<1x128xf32>
    %602 = vector.broadcast %601 : vector<1x128xf32> to vector<16x128xf32>
    %603 = arith.mulf %600, %602 : vector<16x128xf32>
    %604 = arith.addf %599, %603 : vector<16x128xf32>
    %605 = vector.extract_strided_slice %471 {offsets = [27, 0], sizes = [16, 128], strides = [1, 1]} : vector<48x128xf32> to vector<16x128xf32>
    %606 = vector.extract_strided_slice %473 {offsets = [26, 0], sizes = [1, 128], strides = [1, 1]} : vector<31x128xf32> to vector<1x128xf32>
    %607 = vector.broadcast %606 : vector<1x128xf32> to vector<16x128xf32>
    %608 = arith.mulf %605, %607 : vector<16x128xf32>
    %609 = arith.addf %604, %608 : vector<16x128xf32>
    %610 = vector.extract_strided_slice %471 {offsets = [28, 0], sizes = [16, 128], strides = [1, 1]} : vector<48x128xf32> to vector<16x128xf32>
    %611 = vector.extract_strided_slice %473 {offsets = [27, 0], sizes = [1, 128], strides = [1, 1]} : vector<31x128xf32> to vector<1x128xf32>
    %612 = vector.broadcast %611 : vector<1x128xf32> to vector<16x128xf32>
    %613 = arith.mulf %610, %612 : vector<16x128xf32>
    %614 = arith.addf %609, %613 : vector<16x128xf32>
    %615 = vector.extract_strided_slice %471 {offsets = [29, 0], sizes = [16, 128], strides = [1, 1]} : vector<48x128xf32> to vector<16x128xf32>
    %616 = vector.extract_strided_slice %473 {offsets = [28, 0], sizes = [1, 128], strides = [1, 1]} : vector<31x128xf32> to vector<1x128xf32>
    %617 = vector.broadcast %616 : vector<1x128xf32> to vector<16x128xf32>
    %618 = arith.mulf %615, %617 : vector<16x128xf32>
    %619 = arith.addf %614, %618 : vector<16x128xf32>
    %620 = vector.extract_strided_slice %471 {offsets = [30, 0], sizes = [16, 128], strides = [1, 1]} : vector<48x128xf32> to vector<16x128xf32>
    %621 = vector.extract_strided_slice %473 {offsets = [29, 0], sizes = [1, 128], strides = [1, 1]} : vector<31x128xf32> to vector<1x128xf32>
    %622 = vector.broadcast %621 : vector<1x128xf32> to vector<16x128xf32>
    %623 = arith.mulf %620, %622 : vector<16x128xf32>
    %624 = arith.addf %619, %623 : vector<16x128xf32>
    %625 = vector.extract_strided_slice %471 {offsets = [31, 0], sizes = [16, 128], strides = [1, 1]} : vector<48x128xf32> to vector<16x128xf32>
    %626 = vector.extract_strided_slice %473 {offsets = [30, 0], sizes = [1, 128], strides = [1, 1]} : vector<31x128xf32> to vector<1x128xf32>
    %627 = vector.broadcast %626 : vector<1x128xf32> to vector<16x128xf32>
    %628 = arith.mulf %625, %627 : vector<16x128xf32>
    %629 = arith.addf %624, %628 : vector<16x128xf32>
    %c1_160 = arith.constant 1 : index
    %c0_161 = arith.constant 0 : index
    %c0_162 = arith.constant 0 : index
    %630 = vector.load %arg22[%c1_160, %c0_161, %c0_162] : memref<2x1x128xf32, #tpu.memory_space<vmem>>, vector<1x1x128xf32>
    %631 = vector.shape_cast %630 : vector<1x1x128xf32> to vector<1x128xf32>
    %632 = vector.broadcast %631 : vector<1x128xf32> to vector<16x128xf32>
    %633 = arith.addf %629, %632 : vector<16x128xf32>
    %c1_163 = arith.constant 1 : index
    %c0_164 = arith.constant 0 : index
    %c0_165 = arith.constant 0 : index
    %634 = vector.load %arg23[%c1_163, %c0_164, %c0_165] : memref<2x1x128xf32, #tpu.memory_space<vmem>>, vector<1x1x128xf32>
    %635 = vector.shape_cast %634 : vector<1x1x128xf32> to vector<1x128xf32>
    %cst_166 = arith.constant 0.000000e+00 : f32
    %636 = vector.broadcast %cst_166 : f32 to vector<16x128xf32>
    %637 = arith.cmpf oge, %633, %636 : vector<16x128xf32>
    %638 = vector.broadcast %635 : vector<1x128xf32> to vector<16x128xf32>
    %639 = arith.mulf %638, %633 : vector<16x128xf32>
    %640 = arith.select %637, %633, %639 : vector<16x128xi1>, vector<16x128xf32>
    %641 = arith.truncf %640 : vector<16x128xf32> to vector<16x128xbf16>
    %c1_167 = arith.constant 1 : index
    %c0_168 = arith.constant 0 : index
    %c0_169 = arith.constant 0 : index
    %642 = vector.load %arg24[%c1_167, %c0_168, %c0_169] : memref<2x128x64xbf16, #tpu.memory_space<vmem>>, vector<1x128x64xbf16>
    %643 = vector.shape_cast %642 : vector<1x128x64xbf16> to vector<128x64xbf16>
    %cst_170 = arith.constant dense<0.000000e+00> : vector<16x64xf32>
    %644 = tpu.matmul %641, %643, %cst_170 {dimension_numbers = #tpu.dot_dimension_numbers<[1], [0], [0], [1], [0, 0, 1, 1], [], []>} : vector<16x128xbf16>, vector<128x64xbf16>, vector<16x64xf32> -> vector<16x64xf32>
    %c1_171 = arith.constant 1 : index
    %c0_172 = arith.constant 0 : index
    %c0_173 = arith.constant 0 : index
    %645 = vector.load %arg25[%c1_171, %c0_172, %c0_173] : memref<2x1x64xf32, #tpu.memory_space<vmem>>, vector<1x1x64xf32>
    %646 = vector.shape_cast %645 : vector<1x1x64xf32> to vector<1x64xf32>
    %647 = vector.broadcast %646 : vector<1x64xf32> to vector<16x64xf32>
    %648 = arith.addf %644, %647 : vector<16x64xf32>
    %649 = arith.addf %648, %423 : vector<16x64xf32>
    %c0_174 = arith.constant 0 : index
    %c0_175 = arith.constant 0 : index
    %650 = vector.load %arg28[%c0_174, %c0_175] : memref<1x32xf32, #tpu.memory_space<vmem>>, vector<1x32xf32>
    %c0_176 = arith.constant 0 : index
    %c0_177 = arith.constant 0 : index
    %651 = vector.load %arg29[%c0_176, %c0_177] : memref<1x32xf32, #tpu.memory_space<vmem>>, vector<1x32xf32>
    %cst_178 = arith.constant dense<0.000000e+00> : vector<16xf32>
    %652 = vector.multi_reduction <add>, %196, %cst_178 [1] : vector<16x32xf32> to vector<16xf32>
    %653 = vector.shape_cast %652 : vector<16xf32> to vector<16x1xf32>
    %cst_179 = arith.constant 3.200000e+01 : f32
    %654 = vector.broadcast %cst_179 : f32 to vector<16x1xf32>
    %655 = arith.divf %653, %654 : vector<16x1xf32>
    %656 = vector.broadcast %655 : vector<16x1xf32> to vector<16x32xf32>
    %657 = arith.subf %196, %656 : vector<16x32xf32>
    %658 = arith.mulf %657, %657 : vector<16x32xf32>
    %cst_180 = arith.constant dense<0.000000e+00> : vector<16xf32>
    %659 = vector.multi_reduction <add>, %658, %cst_180 [1] : vector<16x32xf32> to vector<16xf32>
    %660 = vector.shape_cast %659 : vector<16xf32> to vector<16x1xf32>
    %cst_181 = arith.constant 3.200000e+01 : f32
    %661 = vector.broadcast %cst_181 : f32 to vector<16x1xf32>
    %662 = arith.divf %660, %661 : vector<16x1xf32>
    %663 = vector.broadcast %655 : vector<16x1xf32> to vector<16x32xf32>
    %664 = arith.subf %196, %663 : vector<16x32xf32>
    %cst_182 = arith.constant 9.99999974E-6 : f32
    %665 = vector.broadcast %cst_182 : f32 to vector<16x1xf32>
    %666 = arith.addf %662, %665 : vector<16x1xf32>
    %667 = math.rsqrt %666 : vector<16x1xf32>
    %668 = vector.broadcast %667 : vector<16x1xf32> to vector<16x32xf32>
    %669 = arith.mulf %664, %668 : vector<16x32xf32>
    %670 = vector.broadcast %650 : vector<1x32xf32> to vector<16x32xf32>
    %671 = arith.mulf %669, %670 : vector<16x32xf32>
    %672 = vector.broadcast %651 : vector<1x32xf32> to vector<16x32xf32>
    %673 = arith.addf %671, %672 : vector<16x32xf32>
    %674 = arith.truncf %649 : vector<16x64xf32> to vector<16x64xbf16>
    %c0_183 = arith.constant 0 : index
    %c0_184 = arith.constant 0 : index
    %675 = vector.load %arg30[%c0_183, %c0_184] : memref<64x64xbf16, #tpu.memory_space<vmem>>, vector<64x64xbf16>
    %cst_185 = arith.constant dense<0.000000e+00> : vector<16x64xf32>
    %676 = tpu.matmul %674, %675, %cst_185 {dimension_numbers = #tpu.dot_dimension_numbers<[1], [0], [0], [1], [0, 0, 1, 1], [], []>} : vector<16x64xbf16>, vector<64x64xbf16>, vector<16x64xf32> -> vector<16x64xf32>
    %c0_186 = arith.constant 0 : index
    %c0_187 = arith.constant 0 : index
    %677 = vector.load %arg31[%c0_186, %c0_187] : memref<1x64xf32, #tpu.memory_space<vmem>>, vector<1x64xf32>
    %678 = vector.broadcast %677 : vector<1x64xf32> to vector<16x64xf32>
    %679 = arith.addf %676, %678 : vector<16x64xf32>
    %680 = arith.negf %679 : vector<16x64xf32>
    %681 = math.exp %680 : vector<16x64xf32>
    %cst_188 = arith.constant 1.000000e+00 : f32
    %682 = vector.broadcast %cst_188 : f32 to vector<16x64xf32>
    %683 = arith.addf %682, %681 : vector<16x64xf32>
    %684 = arith.divf %682, %683 : vector<16x64xf32>
    %685 = arith.mulf %679, %684 : vector<16x64xf32>
    %686 = arith.truncf %685 : vector<16x64xf32> to vector<16x64xbf16>
    %c0_189 = arith.constant 0 : index
    %c0_190 = arith.constant 0 : index
    %687 = vector.load %arg32[%c0_189, %c0_190] : memref<64x32xbf16, #tpu.memory_space<vmem>>, vector<64x32xbf16>
    %cst_191 = arith.constant dense<0.000000e+00> : vector<16x32xf32>
    %688 = tpu.matmul %686, %687, %cst_191 {dimension_numbers = #tpu.dot_dimension_numbers<[1], [0], [0], [1], [0, 0, 1, 1], [], []>} : vector<16x64xbf16>, vector<64x32xbf16>, vector<16x32xf32> -> vector<16x32xf32>
    %c0_192 = arith.constant 0 : index
    %c0_193 = arith.constant 0 : index
    %689 = vector.load %arg33[%c0_192, %c0_193] : memref<1x32xf32, #tpu.memory_space<vmem>>, vector<1x32xf32>
    %690 = vector.broadcast %689 : vector<1x32xf32> to vector<16x32xf32>
    %691 = arith.addf %688, %690 : vector<16x32xf32>
    %692 = arith.addf %192, %691 : vector<16x32xf32>
    %693 = arith.truncf %673 : vector<16x32xf32> to vector<16x32xbf16>
    %c0_194 = arith.constant 0 : index
    %c0_195 = arith.constant 0 : index
    %694 = vector.load %arg26[%c0_194, %c0_195] : memref<32x64xbf16, #tpu.memory_space<vmem>>, vector<32x64xbf16>
    %cst_196 = arith.constant dense<0.000000e+00> : vector<16x64xf32>
    %695 = tpu.matmul %693, %694, %cst_196 {dimension_numbers = #tpu.dot_dimension_numbers<[1], [0], [0], [1], [0, 0, 1, 1], [], []>} : vector<16x32xbf16>, vector<32x64xbf16>, vector<16x64xf32> -> vector<16x64xf32>
    %696 = arith.addf %649, %695 : vector<16x64xf32>
    %c0_197 = arith.constant 0 : index
    %c0_198 = arith.constant 0 : index
    %697 = vector.load %arg27[%c0_197, %c0_198] : memref<1x64xf32, #tpu.memory_space<vmem>>, vector<1x64xf32>
    %698 = vector.broadcast %697 : vector<1x64xf32> to vector<16x64xf32>
    %699 = arith.addf %696, %698 : vector<16x64xf32>
    %cst_199 = arith.constant dense<0.000000e+00> : vector<16xf32>
    %700 = vector.multi_reduction <add>, %692, %cst_199 [1] : vector<16x32xf32> to vector<16xf32>
    %701 = vector.shape_cast %700 : vector<16xf32> to vector<16x1xf32>
    %cst_200 = arith.constant dense<0.000000e+00> : vector<16xf32>
    %702 = vector.multi_reduction <add>, %699, %cst_200 [1] : vector<16x64xf32> to vector<16xf32>
    %703 = vector.shape_cast %702 : vector<16xf32> to vector<16x1xf32>
    %704 = arith.addf %701, %703 : vector<16x1xf32>
    %cst_201 = arith.constant 9.600000e+01 : f32
    %705 = vector.broadcast %cst_201 : f32 to vector<16x1xf32>
    %706 = arith.divf %704, %705 : vector<16x1xf32>
    %707 = vector.broadcast %706 : vector<16x1xf32> to vector<16x32xf32>
    %708 = arith.subf %692, %707 : vector<16x32xf32>
    %709 = arith.mulf %708, %708 : vector<16x32xf32>
    %cst_202 = arith.constant dense<0.000000e+00> : vector<16xf32>
    %710 = vector.multi_reduction <add>, %709, %cst_202 [1] : vector<16x32xf32> to vector<16xf32>
    %711 = vector.shape_cast %710 : vector<16xf32> to vector<16x1xf32>
    %712 = vector.broadcast %706 : vector<16x1xf32> to vector<16x64xf32>
    %713 = arith.subf %699, %712 : vector<16x64xf32>
    %714 = arith.mulf %713, %713 : vector<16x64xf32>
    %cst_203 = arith.constant dense<0.000000e+00> : vector<16xf32>
    %715 = vector.multi_reduction <add>, %714, %cst_203 [1] : vector<16x64xf32> to vector<16xf32>
    %716 = vector.shape_cast %715 : vector<16xf32> to vector<16x1xf32>
    %717 = arith.addf %711, %716 : vector<16x1xf32>
    %cst_204 = arith.constant 9.600000e+01 : f32
    %718 = vector.broadcast %cst_204 : f32 to vector<16x1xf32>
    %719 = arith.divf %717, %718 : vector<16x1xf32>
    %cst_205 = arith.constant 9.99999974E-6 : f32
    %720 = vector.broadcast %cst_205 : f32 to vector<16x1xf32>
    %721 = arith.addf %719, %720 : vector<16x1xf32>
    %722 = math.rsqrt %721 : vector<16x1xf32>
    %723 = vector.broadcast %706 : vector<16x1xf32> to vector<16x32xf32>
    %724 = arith.subf %692, %723 : vector<16x32xf32>
    %725 = vector.broadcast %722 : vector<16x1xf32> to vector<16x32xf32>
    %726 = arith.mulf %724, %725 : vector<16x32xf32>
    %c0_206 = arith.constant 0 : index
    %c0_207 = arith.constant 0 : index
    %727 = vector.load %arg36[%c0_206, %c0_207] : memref<1x32xf32, #tpu.memory_space<vmem>>, vector<1x32xf32>
    %728 = vector.broadcast %727 : vector<1x32xf32> to vector<16x32xf32>
    %729 = arith.mulf %726, %728 : vector<16x32xf32>
    %c0_208 = arith.constant 0 : index
    %c0_209 = arith.constant 0 : index
    %730 = vector.load %arg37[%c0_208, %c0_209] : memref<1x32xf32, #tpu.memory_space<vmem>>, vector<1x32xf32>
    %731 = vector.broadcast %730 : vector<1x32xf32> to vector<16x32xf32>
    %732 = arith.addf %729, %731 : vector<16x32xf32>
    %c0_210 = arith.constant 0 : index
    %c0_211 = arith.constant 0 : index
    %c0_212 = arith.constant 0 : index
    %733 = vector.load %arg40[%c0_210, %c0_211, %c0_212] : memref<1x16x32xf32, #tpu.memory_space<vmem>>, vector<1x16x32xf32>
    %734 = vector.shape_cast %733 : vector<1x16x32xf32> to vector<16x32xf32>
    %735 = vector.shape_cast %732 : vector<16x32xf32> to vector<1x16x32xf32>
    tpu.vector_store %arg40[%c0_210, %c0_211, %c0_212], %735 {strides = array<i32>} : memref<1x16x32xf32, #tpu.memory_space<vmem>>, vector<1x16x32xf32>,
    %736 = vector.broadcast %706 : vector<16x1xf32> to vector<16x64xf32>
    %737 = arith.subf %699, %736 : vector<16x64xf32>
    %738 = vector.broadcast %722 : vector<16x1xf32> to vector<16x64xf32>
    %739 = arith.mulf %737, %738 : vector<16x64xf32>
    %c0_213 = arith.constant 0 : index
    %c0_214 = arith.constant 0 : index
    %740 = vector.load %arg38[%c0_213, %c0_214] : memref<1x64xf32, #tpu.memory_space<vmem>>, vector<1x64xf32>
    %741 = vector.broadcast %740 : vector<1x64xf32> to vector<16x64xf32>
    %742 = arith.mulf %739, %741 : vector<16x64xf32>
    %c0_215 = arith.constant 0 : index
    %c0_216 = arith.constant 0 : index
    %743 = vector.load %arg39[%c0_215, %c0_216] : memref<1x64xf32, #tpu.memory_space<vmem>>, vector<1x64xf32>
    %744 = vector.broadcast %743 : vector<1x64xf32> to vector<16x64xf32>
    %745 = arith.addf %742, %744 : vector<16x64xf32>
    %c0_217 = arith.constant 0 : index
    %c0_218 = arith.constant 0 : index
    %c0_219 = arith.constant 0 : index
    %746 = vector.load %arg41[%c0_217, %c0_218, %c0_219] : memref<1x16x64xf32, #tpu.memory_space<vmem>>, vector<1x16x64xf32>
    %747 = vector.shape_cast %746 : vector<1x16x64xf32> to vector<16x64xf32>
    %748 = vector.shape_cast %745 : vector<16x64xf32> to vector<1x16x64xf32>
    tpu.vector_store %arg41[%c0_217, %c0_218, %c0_219], %748 {strides = array<i32>} : memref<1x16x64xf32, #tpu.memory_space<vmem>>, vector<1x16x64xf32>,
    return
  }
  func.func @transform_0(%arg0: i32) -> (i32, i32, i32) {
    %c0_i32 = arith.constant 0 : i32
    %c0_i32_0 = arith.constant 0 : i32
    %c0_i32_1 = arith.constant 0 : i32
    return %arg0, %c0_i32, %c0_i32_0 : i32, i32, i32
  }
  func.func @transform_1(%arg0: i32) -> (i32, i32, i32) {
    %c0_i32 = arith.constant 0 : i32
    %c0_i32_0 = arith.constant 0 : i32
    %c0_i32_1 = arith.constant 0 : i32
    return %arg0, %c0_i32, %c0_i32_0 : i32, i32, i32
  }
  func.func @transform_2(%arg0: i32) -> (i32, i32, i32) {
    %c0_i32 = arith.constant 0 : i32
    %c0_i32_0 = arith.constant 0 : i32
    %c0_i32_1 = arith.constant 0 : i32
    return %arg0, %c0_i32, %c0_i32_0 : i32, i32, i32
  }
  func.func @transform_3(%arg0: i32) -> (i32, i32, i32) {
    %c0_i32 = arith.constant 0 : i32
    %c0_i32_0 = arith.constant 0 : i32
    %c0_i32_1 = arith.constant 0 : i32
    return %arg0, %c0_i32, %c0_i32_0 : i32, i32, i32
  }
  func.func @transform_4(%arg0: i32) -> (i32, i32, i32) {
    %c0_i32 = arith.constant 0 : i32
    %c0_i32_0 = arith.constant 0 : i32
    %c0_i32_1 = arith.constant 0 : i32
    %c0_i32_2 = arith.constant 0 : i32
    return %c0_i32, %c0_i32_0, %c0_i32_1 : i32, i32, i32
  }
  func.func @transform_5(%arg0: i32) -> (i32, i32, i32) {
    %c0_i32 = arith.constant 0 : i32
    %c0_i32_0 = arith.constant 0 : i32
    %c0_i32_1 = arith.constant 0 : i32
    %c0_i32_2 = arith.constant 0 : i32
    return %c0_i32, %c0_i32_0, %c0_i32_1 : i32, i32, i32
  }
  func.func @transform_6(%arg0: i32) -> (i32, i32) {
    %c0_i32 = arith.constant 0 : i32
    %c0_i32_0 = arith.constant 0 : i32
    %c0_i32_1 = arith.constant 0 : i32
    return %c0_i32, %c0_i32_0 : i32, i32
  }
  func.func @transform_7(%arg0: i32) -> (i32, i32) {
    %c0_i32 = arith.constant 0 : i32
    %c0_i32_0 = arith.constant 0 : i32
    %c0_i32_1 = arith.constant 0 : i32
    return %c0_i32, %c0_i32_0 : i32, i32
  }
  func.func @transform_8(%arg0: i32) -> (i32, i32) {
    %c0_i32 = arith.constant 0 : i32
    %c0_i32_0 = arith.constant 0 : i32
    %c0_i32_1 = arith.constant 0 : i32
    return %c0_i32, %c0_i32_0 : i32, i32
  }
  func.func @transform_9(%arg0: i32) -> (i32, i32) {
    %c0_i32 = arith.constant 0 : i32
    %c0_i32_0 = arith.constant 0 : i32
    %c0_i32_1 = arith.constant 0 : i32
    return %c0_i32, %c0_i32_0 : i32, i32
  }
  func.func @transform_10(%arg0: i32) -> (i32, i32, i32) {
    %c0_i32 = arith.constant 0 : i32
    %c0_i32_0 = arith.constant 0 : i32
    %c0_i32_1 = arith.constant 0 : i32
    %c0_i32_2 = arith.constant 0 : i32
    return %c0_i32, %c0_i32_0, %c0_i32_1 : i32, i32, i32
  }
  func.func @transform_11(%arg0: i32) -> (i32, i32, i32) {
    %c0_i32 = arith.constant 0 : i32
    %c0_i32_0 = arith.constant 0 : i32
    %c0_i32_1 = arith.constant 0 : i32
    %c0_i32_2 = arith.constant 0 : i32
    return %c0_i32, %c0_i32_0, %c0_i32_1 : i32, i32, i32
  }
  func.func @transform_12(%arg0: i32) -> (i32, i32) {
    %c0_i32 = arith.constant 0 : i32
    %c0_i32_0 = arith.constant 0 : i32
    %c0_i32_1 = arith.constant 0 : i32
    return %c0_i32, %c0_i32_0 : i32, i32
  }
  func.func @transform_13(%arg0: i32) -> (i32, i32) {
    %c0_i32 = arith.constant 0 : i32
    %c0_i32_0 = arith.constant 0 : i32
    %c0_i32_1 = arith.constant 0 : i32
    return %c0_i32, %c0_i32_0 : i32, i32
  }
  func.func @transform_14(%arg0: i32) -> (i32, i32) {
    %c0_i32 = arith.constant 0 : i32
    %c0_i32_0 = arith.constant 0 : i32
    %c0_i32_1 = arith.constant 0 : i32
    return %c0_i32, %c0_i32_0 : i32, i32
  }
  func.func @transform_15(%arg0: i32) -> (i32, i32) {
    %c0_i32 = arith.constant 0 : i32
    %c0_i32_0 = arith.constant 0 : i32
    %c0_i32_1 = arith.constant 0 : i32
    return %c0_i32, %c0_i32_0 : i32, i32
  }
  func.func @transform_16(%arg0: i32) -> (i32, i32, i32) {
    %c0_i32 = arith.constant 0 : i32
    %c0_i32_0 = arith.constant 0 : i32
    %c0_i32_1 = arith.constant 0 : i32
    %c0_i32_2 = arith.constant 0 : i32
    return %c0_i32, %c0_i32_0, %c0_i32_1 : i32, i32, i32
  }
  func.func @transform_17(%arg0: i32) -> (i32, i32, i32) {
    %c0_i32 = arith.constant 0 : i32
    %c0_i32_0 = arith.constant 0 : i32
    %c0_i32_1 = arith.constant 0 : i32
    %c0_i32_2 = arith.constant 0 : i32
    return %c0_i32, %c0_i32_0, %c0_i32_1 : i32, i32, i32
  }
  func.func @transform_18(%arg0: i32) -> (i32, i32, i32) {
    %c0_i32 = arith.constant 0 : i32
    %c0_i32_0 = arith.constant 0 : i32
    %c0_i32_1 = arith.constant 0 : i32
    %c0_i32_2 = arith.constant 0 : i32
    return %c0_i32, %c0_i32_0, %c0_i32_1 : i32, i32, i32
  }
  func.func @transform_19(%arg0: i32) -> (i32, i32, i32) {
    %c0_i32 = arith.constant 0 : i32
    %c0_i32_0 = arith.constant 0 : i32
    %c0_i32_1 = arith.constant 0 : i32
    %c0_i32_2 = arith.constant 0 : i32
    return %c0_i32, %c0_i32_0, %c0_i32_1 : i32, i32, i32
  }
  func.func @transform_20(%arg0: i32) -> (i32, i32, i32) {
    %c0_i32 = arith.constant 0 : i32
    %c0_i32_0 = arith.constant 0 : i32
    %c0_i32_1 = arith.constant 0 : i32
    %c0_i32_2 = arith.constant 0 : i32
    return %c0_i32, %c0_i32_0, %c0_i32_1 : i32, i32, i32
  }
  func.func @transform_21(%arg0: i32) -> (i32, i32, i32) {
    %c0_i32 = arith.constant 0 : i32
    %c0_i32_0 = arith.constant 0 : i32
    %c0_i32_1 = arith.constant 0 : i32
    %c0_i32_2 = arith.constant 0 : i32
    return %c0_i32, %c0_i32_0, %c0_i32_1 : i32, i32, i32
  }
  func.func @transform_22(%arg0: i32) -> (i32, i32, i32) {
    %c0_i32 = arith.constant 0 : i32
    %c0_i32_0 = arith.constant 0 : i32
    %c0_i32_1 = arith.constant 0 : i32
    %c0_i32_2 = arith.constant 0 : i32
    return %c0_i32, %c0_i32_0, %c0_i32_1 : i32, i32, i32
  }
  func.func @transform_23(%arg0: i32) -> (i32, i32, i32) {
    %c0_i32 = arith.constant 0 : i32
    %c0_i32_0 = arith.constant 0 : i32
    %c0_i32_1 = arith.constant 0 : i32
    %c0_i32_2 = arith.constant 0 : i32
    return %c0_i32, %c0_i32_0, %c0_i32_1 : i32, i32, i32
  }
  func.func @transform_24(%arg0: i32) -> (i32, i32, i32) {
    %c0_i32 = arith.constant 0 : i32
    %c0_i32_0 = arith.constant 0 : i32
    %c0_i32_1 = arith.constant 0 : i32
    %c0_i32_2 = arith.constant 0 : i32
    return %c0_i32, %c0_i32_0, %c0_i32_1 : i32, i32, i32
  }
  func.func @transform_25(%arg0: i32) -> (i32, i32) {
    %c0_i32 = arith.constant 0 : i32
    %c0_i32_0 = arith.constant 0 : i32
    %c0_i32_1 = arith.constant 0 : i32
    return %c0_i32, %c0_i32_0 : i32, i32
  }
  func.func @transform_26(%arg0: i32) -> (i32, i32) {
    %c0_i32 = arith.constant 0 : i32
    %c0_i32_0 = arith.constant 0 : i32
    %c0_i32_1 = arith.constant 0 : i32
    return %c0_i32, %c0_i32_0 : i32, i32
  }
  func.func @transform_27(%arg0: i32) -> (i32, i32) {
    %c0_i32 = arith.constant 0 : i32
    %c0_i32_0 = arith.constant 0 : i32
    %c0_i32_1 = arith.constant 0 : i32
    return %c0_i32, %c0_i32_0 : i32, i32
  }
  func.func @transform_28(%arg0: i32) -> (i32, i32) {
    %c0_i32 = arith.constant 0 : i32
    %c0_i32_0 = arith.constant 0 : i32
    %c0_i32_1 = arith.constant 0 : i32
    return %c0_i32, %c0_i32_0 : i32, i32
  }
  func.func @transform_29(%arg0: i32) -> (i32, i32) {
    %c0_i32 = arith.constant 0 : i32
    %c0_i32_0 = arith.constant 0 : i32
    %c0_i32_1 = arith.constant 0 : i32
    return %c0_i32, %c0_i32_0 : i32, i32
  }
  func.func @transform_30(%arg0: i32) -> (i32, i32) {
    %c0_i32 = arith.constant 0 : i32
    %c0_i32_0 = arith.constant 0 : i32
    %c0_i32_1 = arith.constant 0 : i32
    return %c0_i32, %c0_i32_0 : i32, i32
  }
  func.func @transform_31(%arg0: i32) -> (i32, i32) {
    %c0_i32 = arith.constant 0 : i32
    %c0_i32_0 = arith.constant 0 : i32
    %c0_i32_1 = arith.constant 0 : i32
    return %c0_i32, %c0_i32_0 : i32, i32
  }
  func.func @transform_32(%arg0: i32) -> (i32, i32) {
    %c0_i32 = arith.constant 0 : i32
    %c0_i32_0 = arith.constant 0 : i32
    %c0_i32_1 = arith.constant 0 : i32
    return %c0_i32, %c0_i32_0 : i32, i32
  }
  func.func @transform_33(%arg0: i32) -> (i32, i32) {
    %c0_i32 = arith.constant 0 : i32
    %c0_i32_0 = arith.constant 0 : i32
    %c0_i32_1 = arith.constant 0 : i32
    return %c0_i32, %c0_i32_0 : i32, i32
  }
  func.func @transform_34(%arg0: i32) -> (i32, i32) {
    %c0_i32 = arith.constant 0 : i32
    %c0_i32_0 = arith.constant 0 : i32
    %c0_i32_1 = arith.constant 0 : i32
    return %c0_i32, %c0_i32_0 : i32, i32
  }
  func.func @transform_35(%arg0: i32) -> (i32, i32) {
    %c0_i32 = arith.constant 0 : i32
    %c0_i32_0 = arith.constant 0 : i32
    %c0_i32_1 = arith.constant 0 : i32
    return %c0_i32, %c0_i32_0 : i32, i32
  }
  func.func @transform_36(%arg0: i32) -> (i32, i32) {
    %c0_i32 = arith.constant 0 : i32
    %c0_i32_0 = arith.constant 0 : i32
    %c0_i32_1 = arith.constant 0 : i32
    return %c0_i32, %c0_i32_0 : i32, i32
  }
  func.func @transform_37(%arg0: i32) -> (i32, i32) {
    %c0_i32 = arith.constant 0 : i32
    %c0_i32_0 = arith.constant 0 : i32
    %c0_i32_1 = arith.constant 0 : i32
    return %c0_i32, %c0_i32_0 : i32, i32
  }
  func.func @transform_38(%arg0: i32) -> (i32, i32) {
    %c0_i32 = arith.constant 0 : i32
    %c0_i32_0 = arith.constant 0 : i32
    %c0_i32_1 = arith.constant 0 : i32
    return %c0_i32, %c0_i32_0 : i32, i32
  }
  func.func @transform_39(%arg0: i32) -> (i32, i32, i32) {
    %c0_i32 = arith.constant 0 : i32
    %c0_i32_0 = arith.constant 0 : i32
    %c0_i32_1 = arith.constant 0 : i32
    return %arg0, %c0_i32, %c0_i32_0 : i32, i32, i32
  }
  func.func @transform_40(%arg0: i32) -> (i32, i32, i32) {
    %c0_i32 = arith.constant 0 : i32
    %c0_i32_0 = arith.constant 0 : i32
    %c0_i32_1 = arith.constant 0 : i32
    return %arg0, %c0_i32, %c0_i32_0 : i32, i32, i32
  }
}

</mosaic_0001>

<llo_original>
// kernel: packed_block_forward.1
$region0: #{packed_block_forward.1}
  #allocation0 [shape = 'u32[]', space=smem, size = 0x4, offset = 0x4, fixed_abs, tag = 'smem constant byte address 0x4 - core index']
  #allocation1 [shape = 'u32[72,128]{1,0:T(1,128)}', space=vmem, size = 0x9000, scoped, tag = 'internal scratch']
  %s0 = inlined_call_operand.smem [shape: u32[41], index: -1, kind: input, shape index: {}]
  %s1 = sld [smem:[%s0]]
  %s2 = scalar_lea.smem %s0, 1
  %s3 = sld [smem:[%s2]]
  %s4 = scalar_lea.smem %s0, 2
  %s5 = sld [smem:[%s4]]
  %s6 = scalar_lea.smem %s0, 3
  %s7 = sld [smem:[%s6]]
  %s8 = scalar_lea.smem %s0, 4
  %s9 = sld [smem:[%s8]]
  %s10 = scalar_lea.smem %s0, 5
  %s11 = sld [smem:[%s10]]
  %s12 = scalar_lea.smem %s0, 6
  %s13 = sld [smem:[%s12]]
  %s14 = scalar_lea.smem %s0, 7
  %s15 = sld [smem:[%s14]]
  %s16 = scalar_lea.smem %s0, 8
  %s17 = sld [smem:[%s16]]
  %s18 = scalar_lea.smem %s0, 9
  %s19 = sld [smem:[%s18]]
  %s20 = scalar_lea.smem %s0, 10
  %s21 = sld [smem:[%s20]]
  %s22 = scalar_lea.smem %s0, 11
  %s23 = sld [smem:[%s22]]
  %s24 = scalar_lea.smem %s0, 12
  %s25 = sld [smem:[%s24]]
  %s26 = scalar_lea.smem %s0, 13
  %s27 = sld [smem:[%s26]]
  %s28 = scalar_lea.smem %s0, 14
  %s29 = sld [smem:[%s28]]
  %s30 = scalar_lea.smem %s0, 15
  %s31 = sld [smem:[%s30]]
  %s32 = scalar_lea.smem %s0, 16
  %s33 = sld [smem:[%s32]]
  %s34 = scalar_lea.smem %s0, 17
  %s35 = sld [smem:[%s34]]
  %s36 = scalar_lea.smem %s0, 18
  %s37 = sld [smem:[%s36]]
  %s38 = scalar_lea.smem %s0, 19
  %s39 = sld [smem:[%s38]]
  %s40 = scalar_lea.smem %s0, 20
  %s41 = sld [smem:[%s40]]
  %s42 = scalar_lea.smem %s0, 21
  %s43 = sld [smem:[%s42]]
  %s44 = scalar_lea.smem %s0, 22
  %s45 = sld [smem:[%s44]]
  %s46 = scalar_lea.smem %s0, 23
  %s47 = sld [smem:[%s46]]
  %s48 = scalar_lea.smem %s0, 24
  %s49 = sld [smem:[%s48]]
  %s50 = scalar_lea.smem %s0, 25
  %s51 = sld [smem:[%s50]]
  %s52 = scalar_lea.smem %s0, 26
  %s53 = sld [smem:[%s52]]
  %s54 = scalar_lea.smem %s0, 27
  %s55 = sld [smem:[%s54]]
  %s56 = scalar_lea.smem %s0, 28
  %s57 = sld [smem:[%s56]]
  %s58 = scalar_lea.smem %s0, 29
  %s59 = sld [smem:[%s58]]
  %s60 = scalar_lea.smem %s0, 30
  %s61 = sld [smem:[%s60]]
  %s62 = scalar_lea.smem %s0, 31
  %s63 = sld [smem:[%s62]]
  %s64 = scalar_lea.smem %s0, 32
  %s65 = sld [smem:[%s64]]
  %s66 = scalar_lea.smem %s0, 33
  %s67 = sld [smem:[%s66]]
  %s68 = scalar_lea.smem %s0, 34
  %s69 = sld [smem:[%s68]]
  %s70 = scalar_lea.smem %s0, 35
  %s71 = sld [smem:[%s70]]
  %s72 = scalar_lea.smem %s0, 36
  %s73 = sld [smem:[%s72]]
  %s74 = scalar_lea.smem %s0, 37
  %s75 = sld [smem:[%s74]]
  %s76 = scalar_lea.smem %s0, 38
  %s77 = sld [smem:[%s76]]
  %s78 = scalar_lea.smem %s0, 39
  %s79 = sld [smem:[%s78]]
  %s80 = scalar_lea.smem %s0, 40
  %s81 = sld [smem:[%s80]]
  %82 = xla_tuple %s79, %s81
  %s83 = sld [smem:[#allocation0]]
  $region197: #{packed_block_forward.1} parent=0
    _
  %s85 = ssub.s32 1, %s83
  %s86 = scalar_select 0, %s85, %s83
  loop: start=0, step=1, limit=4
  $region2: #{packed_block_forward.1} parent=0 // loop_pre_header
    _
  $region3: #{packed_block_forward.1} parent=0 // loop_header
    %s88 = sphi 0, %s92
    %p89 = scmp.ge.s32.totalorder %s88, 4
    %s98 = sphi 0, %s100
    %s101 = sphi 0, %s98
    %s102 = sphi 0, %s101
    %s118 = sphi 0, %s102
    %s124 = sphi 0, %s126
    %s127 = sphi 0, %s124
    %s128 = sphi 0, %s127
    %s144 = sphi 0, %s128
    %s150 = sphi 0, %s152
    %s153 = sphi 0, %s150
    %s154 = sphi 0, %s153
    %s170 = sphi 0, %s154
    %s176 = sphi 0, %s178
    %s179 = sphi 0, %s176
    %s180 = sphi 0, %s179
    %s196 = sphi 0, %s180
    %s200 = sphi 0, %s200
    %s202 = sphi 0, %s200
    %s203 = sphi 0, %s202
    %s217 = sphi 0, %s203
    %s221 = sphi 0, %s221
    %s223 = sphi 0, %s221
    %s224 = sphi 0, %s223
    %s238 = sphi 0, %s224
    %s242 = sphi 0, %s242
    %s244 = sphi 0, %s242
    %s245 = sphi 0, %s244
    %s259 = sphi 0, %s245
    %s263 = sphi 0, %s263
    %s265 = sphi 0, %s263
    %s266 = sphi 0, %s265
    %s280 = sphi 0, %s266
    %s284 = sphi 0, %s284
    %s286 = sphi 0, %s284
    %s287 = sphi 0, %s286
    %s301 = sphi 0, %s287
    %s305 = sphi 0, %s305
    %s307 = sphi 0, %s305
    %s308 = sphi 0, %s307
    %s322 = sphi 0, %s308
    %s326 = sphi 0, %s326
    %s328 = sphi 0, %s326
    %s329 = sphi 0, %s328
    %s343 = sphi 0, %s329
    %s347 = sphi 0, %s347
    %s349 = sphi 0, %s347
    %s350 = sphi 0, %s349
    %s364 = sphi 0, %s350
    %s368 = sphi 0, %s368
    %s370 = sphi 0, %s368
    %s371 = sphi 0, %s370
    %s385 = sphi 0, %s371
    %s389 = sphi 0, %s389
    %s391 = sphi 0, %s389
    %s392 = sphi 0, %s391
    %s406 = sphi 0, %s392
    %s410 = sphi 0, %s410
    %s412 = sphi 0, %s410
    %s413 = sphi 0, %s412
    %s427 = sphi 0, %s413
    %s431 = sphi 0, %s431
    %s433 = sphi 0, %s431
    %s434 = sphi 0, %s433
    %s448 = sphi 0, %s434
    %s452 = sphi 0, %s452
    %s454 = sphi 0, %s452
    %s455 = sphi 0, %s454
    %s469 = sphi 0, %s455
    %s473 = sphi 0, %s473
    %s475 = sphi 0, %s473
    %s476 = sphi 0, %s475
    %s490 = sphi 0, %s476
    %s494 = sphi 0, %s494
    %s496 = sphi 0, %s494
    %s497 = sphi 0, %s496
    %s511 = sphi 0, %s497
    %s515 = sphi 0, %s515
    %s517 = sphi 0, %s515
    %s518 = sphi 0, %s517
    %s532 = sphi 0, %s518
    %s536 = sphi 0, %s536
    %s538 = sphi 0, %s536
    %s539 = sphi 0, %s538
    %s553 = sphi 0, %s539
    %s557 = sphi 0, %s557
    %s559 = sphi 0, %s557
    %s560 = sphi 0, %s559
    %s574 = sphi 0, %s560
    %s578 = sphi 0, %s578
    %s580 = sphi 0, %s578
    %s581 = sphi 0, %s580
    %s595 = sphi 0, %s581
    %s599 = sphi 0, %s599
    %s601 = sphi 0, %s599
    %s602 = sphi 0, %s601
    %s616 = sphi 0, %s602
    %s620 = sphi 0, %s620
    %s622 = sphi 0, %s620
    %s623 = sphi 0, %s622
    %s637 = sphi 0, %s623
    %s641 = sphi 0, %s641
    %s643 = sphi 0, %s641
    %s644 = sphi 0, %s643
    %s658 = sphi 0, %s644
    %s662 = sphi 0, %s662
    %s664 = sphi 0, %s662
    %s665 = sphi 0, %s664
    %s679 = sphi 0, %s665
    %s683 = sphi 0, %s683
    %s685 = sphi 0, %s683
    %s686 = sphi 0, %s685
    %s700 = sphi 0, %s686
    %s704 = sphi 0, %s704
    %s706 = sphi 0, %s704
    %s707 = sphi 0, %s706
    %s721 = sphi 0, %s707
    %s725 = sphi 0, %s725
    %s727 = sphi 0, %s725
    %s728 = sphi 0, %s727
    %s742 = sphi 0, %s728
    %s746 = sphi 0, %s746
    %s748 = sphi 0, %s746
    %s749 = sphi 0, %s748
    %s763 = sphi 0, %s749
    %s767 = sphi 0, %s767
    %s769 = sphi 0, %s767
    %s770 = sphi 0, %s769
    %s784 = sphi 0, %s770
    %s788 = sphi 0, %s788
    %s790 = sphi 0, %s788
    %s791 = sphi 0, %s790
    %s805 = sphi 0, %s791
    %s809 = sphi 0, %s809
    %s811 = sphi 0, %s809
    %s812 = sphi 0, %s811
    %s826 = sphi 0, %s812
    %s830 = sphi 0, %s830
    %s832 = sphi 0, %s830
    %s833 = sphi 0, %s832
    %s847 = sphi 0, %s833
    %s851 = sphi 0, %s851
    %s853 = sphi 0, %s851
    %s854 = sphi 0, %s853
    %s868 = sphi 0, %s854
    %s872 = sphi 0, %s872
    %s874 = sphi 0, %s872
    %s875 = sphi 0, %s874
    %s889 = sphi 0, %s875
    %s893 = sphi 0, %s893
    %s895 = sphi 0, %s893
    %s896 = sphi 0, %s895
    %s910 = sphi 0, %s896
    %s914 = sphi 0, %s914
    %s916 = sphi 0, %s914
    %s917 = sphi 0, %s916
    %s931 = sphi 0, %s917
    %s937 = sphi 0, %s939
    %s940 = sphi 0, %s937
    %s941 = sphi 0, %s940
    %s957 = sphi 0, %s941
    %s963 = sphi 0, %s965
    %s966 = sphi 0, %s963
    %s967 = sphi 0, %s966
    %s983 = sphi 0, %s967
  $region4: #{packed_block_forward.1} parent=0 // loop_header_branch
    %91 = sbr.rel (%p89) target = $region8
  $region5: #{packed_block_forward.1} parent=0 // loop_body
    %s93 = ssub.s32 %s88, 1
    %s94 = ssub.s32 %s88, 2
    %s95 = sadd.s32 %s88, 1
    %s96 = ssub.s32 %s88, %s95
    %p97 = scmp.eq.s32.totalorder %s96, 0
    %s99 = sadd.s32 %s98, 1
    %s100 = scalar_select %p97, %s98, %s99
    %p103 = pneg %p97
    %p104 = scmp.eq.s32.totalorder %s88, 1
    %p105 = por %p103, %p104
    %p106 = scmp.ne.s32.totalorder %s98, %s101
    %p107 = scmp.eq.s32.totalorder %s88, 0
    %p108 = por %p106, %p107
    %p109 = scmp.ne.s32.totalorder %s98, %s101
    %p110 = scmp.eq.s32.totalorder %s93, 1
    %p111 = por %p109, %p110
    %p112 = scmp.ne.s32.totalorder %s101, %s102
    %p113 = scmp.eq.s32.totalorder %s93, 0
    %p114 = por %p112, %p113
    %p115 = scmp.ne.s32.totalorder %s101, %s102
    %p116 = scmp.eq.s32.totalorder %s94, 1
    %p117 = por %p115, %p116
    %p119 = scmp.ne.s32.totalorder %s102, %s118
    %p120 = scmp.eq.s32.totalorder %s94, 0
    %p121 = por %p119, %p120
    %s122 = ssub.s32 %s88, %s95
    %p123 = scmp.eq.s32.totalorder %s122, 0
    %s125 = sadd.s32 %s124, 1
    %s126 = scalar_select %p123, %s124, %s125
    %p129 = pneg %p123
    %p130 = scmp.eq.s32.totalorder %s88, 1
    %p131 = por %p129, %p130
    %p132 = scmp.ne.s32.totalorder %s124, %s127
    %p133 = scmp.eq.s32.totalorder %s88, 0
    %p134 = por %p132, %p133
    %p135 = scmp.ne.s32.totalorder %s124, %s127
    %p136 = scmp.eq.s32.totalorder %s93, 1
    %p137 = por %p135, %p136
    %p138 = scmp.ne.s32.totalorder %s127, %s128
    %p139 = scmp.eq.s32.totalorder %s93, 0
    %p140 = por %p138, %p139
    %p141 = scmp.ne.s32.totalorder %s127, %s128
    %p142 = scmp.eq.s32.totalorder %s94, 1
    %p143 = por %p141, %p142
    %p145 = scmp.ne.s32.totalorder %s128, %s144
    %p146 = scmp.eq.s32.totalorder %s94, 0
    %p147 = por %p145, %p146
    %s148 = ssub.s32 %s88, %s95
    %p149 = scmp.eq.s32.totalorder %s148, 0
    %s151 = sadd.s32 %s150, 1
    %s152 = scalar_select %p149, %s150, %s151
    %p155 = pneg %p149
    %p156 = scmp.eq.s32.totalorder %s88, 1
    %p157 = por %p155, %p156
    %p158 = scmp.ne.s32.totalorder %s150, %s153
    %p159 = scmp.eq.s32.totalorder %s88, 0
    %p160 = por %p158, %p159
    %p161 = scmp.ne.s32.totalorder %s150, %s153
    %p162 = scmp.eq.s32.totalorder %s93, 1
    %p163 = por %p161, %p162
    %p164 = scmp.ne.s32.totalorder %s153, %s154
    %p165 = scmp.eq.s32.totalorder %s93, 0
    %p166 = por %p164, %p165
    %p167 = scmp.ne.s32.totalorder %s153, %s154
    %p168 = scmp.eq.s32.totalorder %s94, 1
    %p169 = por %p167, %p168
    %p171 = scmp.ne.s32.totalorder %s154, %s170
    %p172 = scmp.eq.s32.totalorder %s94, 0
    %p173 = por %p171, %p172
    %s174 = ssub.s32 %s88, %s95
    %p175 = scmp.eq.s32.totalorder %s174, 0
    %s177 = sadd.s32 %s176, 1
    %s178 = scalar_select %p175, %s176, %s177
    %p181 = pneg %p175
    %p182 = scmp.eq.s32.totalorder %s88, 1
    %p183 = por %p181, %p182
    %p184 = scmp.ne.s32.totalorder %s176, %s179
    %p185 = scmp.eq.s32.totalorder %s88, 0
    %p186 = por %p184, %p185
    %p187 = scmp.ne.s32.totalorder %s176, %s179
    %p188 = scmp.eq.s32.totalorder %s93, 1
    %p189 = por %p187, %p188
    %p190 = scmp.ne.s32.totalorder %s179, %s180
    %p191 = scmp.eq.s32.totalorder %s93, 0
    %p192 = por %p190, %p191
    %p193 = scmp.ne.s32.totalorder %s179, %s180
    %p194 = scmp.eq.s32.totalorder %s94, 1
    %p195 = por %p193, %p194
    %p197 = scmp.ne.s32.totalorder %s180, %s196
    %p198 = scmp.eq.s32.totalorder %s94, 0
    %p199 = por %p197, %p198
    %s201 = sadd.s32 %s200, 1
    %p204 = scmp.eq.s32.totalorder %s88, 1
    %p205 = scmp.ne.s32.totalorder %s200, %s202
    %p206 = scmp.eq.s32.totalorder %s88, 0
    %p207 = por %p205, %p206
    %p208 = scmp.ne.s32.totalorder %s200, %s202
    %p209 = scmp.eq.s32.totalorder %s93, 1
    %p210 = por %p208, %p209
    %p211 = scmp.ne.s32.totalorder %s202, %s203
    %p212 = scmp.eq.s32.totalorder %s93, 0
    %p213 = por %p211, %p212
    %p214 = scmp.ne.s32.totalorder %s202, %s203
    %p215 = scmp.eq.s32.totalorder %s94, 1
    %p216 = por %p214, %p215
    %p218 = scmp.ne.s32.totalorder %s203, %s217
    %p219 = scmp.eq.s32.totalorder %s94, 0
    %p220 = por %p218, %p219
    %s222 = sadd.s32 %s221, 1
    %p225 = scmp.eq.s32.totalorder %s88, 1
    %p226 = scmp.ne.s32.totalorder %s221, %s223
    %p227 = scmp.eq.s32.totalorder %s88, 0
    %p228 = por %p226, %p227
    %p229 = scmp.ne.s32.totalorder %s221, %s223
    %p230 = scmp.eq.s32.totalorder %s93, 1
    %p231 = por %p229, %p230
    %p232 = scmp.ne.s32.totalorder %s223, %s224
    %p233 = scmp.eq.s32.totalorder %s93, 0
    %p234 = por %p232, %p233
    %p235 = scmp.ne.s32.totalorder %s223, %s224
    %p236 = scmp.eq.s32.totalorder %s94, 1
    %p237 = por %p235, %p236
    %p239 = scmp.ne.s32.totalorder %s224, %s238
    %p240 = scmp.eq.s32.totalorder %s94, 0
    %p241 = por %p239, %p240
    %s243 = sadd.s32 %s242, 1
    %p246 = scmp.eq.s32.totalorder %s88, 1
    %p247 = scmp.ne.s32.totalorder %s242, %s244
    %p248 = scmp.eq.s32.totalorder %s88, 0
    %p249 = por %p247, %p248
    %p250 = scmp.ne.s32.totalorder %s242, %s244
    %p251 = scmp.eq.s32.totalorder %s93, 1
    %p252 = por %p250, %p251
    %p253 = scmp.ne.s32.totalorder %s244, %s245
    %p254 = scmp.eq.s32.totalorder %s93, 0
    %p255 = por %p253, %p254
    %p256 = scmp.ne.s32.totalorder %s244, %s245
    %p257 = scmp.eq.s32.totalorder %s94, 1
    %p258 = por %p256, %p257
    %p260 = scmp.ne.s32.totalorder %s245, %s259
    %p261 = scmp.eq.s32.totalorder %s94, 0
    %p262 = por %p260, %p261
    %s264 = sadd.s32 %s263, 1
    %p267 = scmp.eq.s32.totalorder %s88, 1
    %p268 = scmp.ne.s32.totalorder %s263, %s265
    %p269 = scmp.eq.s32.totalorder %s88, 0
    %p270 = por %p268, %p269
    %p271 = scmp.ne.s32.totalorder %s263, %s265
    %p272 = scmp.eq.s32.totalorder %s93, 1
    %p273 = por %p271, %p272
    %p274 = scmp.ne.s32.totalorder %s265, %s266
    %p275 = scmp.eq.s32.totalorder %s93, 0
    %p276 = por %p274, %p275
    %p277 = scmp.ne.s32.totalorder %s265, %s266
    %p278 = scmp.eq.s32.totalorder %s94, 1
    %p279 = por %p277, %p278
    %p281 = scmp.ne.s32.totalorder %s266, %s280
    %p282 = scmp.eq.s32.totalorder %s94, 0
    %p283 = por %p281, %p282
    %s285 = sadd.s32 %s284, 1
    %p288 = scmp.eq.s32.totalorder %s88, 1
    %p289 = scmp.ne.s32.totalorder %s284, %s286
    %p290 = scmp.eq.s32.totalorder %s88, 0
    %p291 = por %p289, %p290
    %p292 = scmp.ne.s32.totalorder %s284, %s286
    %p293 = scmp.eq.s32.totalorder %s93, 1
    %p294 = por %p292, %p293
    %p295 = scmp.ne.s32.totalorder %s286, %s287
    %p296 = scmp.eq.s32.totalorder %s93, 0
    %p297 = por %p295, %p296
    %p298 = scmp.ne.s32.totalorder %s286, %s287
    %p299 = scmp.eq.s32.totalorder %s94, 1
    %p300 = por %p298, %p299
    %p302 = scmp.ne.s32.totalorder %s287, %s301
    %p303 = scmp.eq.s32.totalorder %s94, 0
    %p304 = por %p302, %p303
    %s306 = sadd.s32 %s305, 1
    %p309 = scmp.eq.s32.totalorder %s88, 1
    %p310 = scmp.ne.s32.totalorder %s305, %s307
    %p311 = scmp.eq.s32.totalorder %s88, 0
    %p312 = por %p310, %p311
    %p313 = scmp.ne.s32.totalorder %s305, %s307
    %p314 = scmp.eq.s32.totalorder %s93, 1
    %p315 = por %p313, %p314
    %p316 = scmp.ne.s32.totalorder %s307, %s308
    %p317 = scmp.eq.s32.totalorder %s93, 0
    %p318 = por %p316, %p317
    %p319 = scmp.ne.s32.totalorder %s307, %s308
    %p320 = scmp.eq.s32.totalorder %s94, 1
    %p321 = por %p319, %p320
    %p323 = scmp.ne.s32.totalorder %s308, %s322
    %p324 = scmp.eq.s32.totalorder %s94, 0
    %p325 = por %p323, %p324
    %s327 = sadd.s32 %s326, 1
    %p330 = scmp.eq.s32.totalorder %s88, 1
    %p331 = scmp.ne.s32.totalorder %s326, %s328
    %p332 = scmp.eq.s32.totalorder %s88, 0
    %p333 = por %p331, %p332
    %p334 = scmp.ne.s32.totalorder %s326, %s328
    %p335 = scmp.eq.s32.totalorder %s93, 1
    %p336 = por %p334, %p335
    %p337 = scmp.ne.s32.totalorder %s328, %s329
    %p338 = scmp.eq.s32.totalorder %s93, 0
    %p339 = por %p337, %p338
    %p340 = scmp.ne.s32.totalorder %s328, %s329
    %p341 = scmp.eq.s32.totalorder %s94, 1
    %p342 = por %p340, %p341
    %p344 = scmp.ne.s32.totalorder %s329, %s343
    %p345 = scmp.eq.s32.totalorder %s94, 0
    %p346 = por %p344, %p345
    %s348 = sadd.s32 %s347, 1
    %p351 = scmp.eq.s32.totalorder %s88, 1
    %p352 = scmp.ne.s32.totalorder %s347, %s349
    %p353 = scmp.eq.s32.totalorder %s88, 0
    %p354 = por %p352, %p353
    %p355 = scmp.ne.s32.totalorder %s347, %s349
    %p356 = scmp.eq.s32.totalorder %s93, 1
    %p357 = por %p355, %p356
    %p358 = scmp.ne.s32.totalorder %s349, %s350
    %p359 = scmp.eq.s32.totalorder %s93, 0
    %p360 = por %p358, %p359
    %p361 = scmp.ne.s32.totalorder %s349, %s350
    %p362 = scmp.eq.s32.totalorder %s94, 1
    %p363 = por %p361, %p362
    %p365 = scmp.ne.s32.totalorder %s350, %s364
    %p366 = scmp.eq.s32.totalorder %s94, 0
    %p367 = por %p365, %p366
    %s369 = sadd.s32 %s368, 1
    %p372 = scmp.eq.s32.totalorder %s88, 1
    %p373 = scmp.ne.s32.totalorder %s368, %s370
    %p374 = scmp.eq.s32.totalorder %s88, 0
    %p375 = por %p373, %p374
    %p376 = scmp.ne.s32.totalorder %s368, %s370
    %p377 = scmp.eq.s32.totalorder %s93, 1
    %p378 = por %p376, %p377
    %p379 = scmp.ne.s32.totalorder %s370, %s371
    %p380 = scmp.eq.s32.totalorder %s93, 0
    %p381 = por %p379, %p380
    %p382 = scmp.ne.s32.totalorder %s370, %s371
    %p383 = scmp.eq.s32.totalorder %s94, 1
    %p384 = por %p382, %p383
    %p386 = scmp.ne.s32.totalorder %s371, %s385
    %p387 = scmp.eq.s32.totalorder %s94, 0
    %p388 = por %p386, %p387
    %s390 = sadd.s32 %s389, 1
    %p393 = scmp.eq.s32.totalorder %s88, 1
    %p394 = scmp.ne.s32.totalorder %s389, %s391
    %p395 = scmp.eq.s32.totalorder %s88, 0
    %p396 = por %p394, %p395
    %p397 = scmp.ne.s32.totalorder %s389, %s391
    %p398 = scmp.eq.s32.totalorder %s93, 1
    %p399 = por %p397, %p398
    %p400 = scmp.ne.s32.totalorder %s391, %s392
    %p401 = scmp.eq.s32.totalorder %s93, 0
    %p402 = por %p400, %p401
    %p403 = scmp.ne.s32.totalorder %s391, %s392
    %p404 = scmp.eq.s32.totalorder %s94, 1
    %p405 = por %p403, %p404
    %p407 = scmp.ne.s32.totalorder %s392, %s406
    %p408 = scmp.eq.s32.totalorder %s94, 0
    %p409 = por %p407, %p408
    %s411 = sadd.s32 %s410, 1
    %p414 = scmp.eq.s32.totalorder %s88, 1
    %p415 = scmp.ne.s32.totalorder %s410, %s412
    %p416 = scmp.eq.s32.totalorder %s88, 0
    %p417 = por %p415, %p416
    %p418 = scmp.ne.s32.totalorder %s410, %s412
    %p419 = scmp.eq.s32.totalorder %s93, 1
    %p420 = por %p418, %p419
    %p421 = scmp.ne.s32.totalorder %s412, %s413
    %p422 = scmp.eq.s32.totalorder %s93, 0
    %p423 = por %p421, %p422
    %p424 = scmp.ne.s32.totalorder %s412, %s413
    %p425 = scmp.eq.s32.totalorder %s94, 1
    %p426 = por %p424, %p425
    %p428 = scmp.ne.s32.totalorder %s413, %s427
    %p429 = scmp.eq.s32.totalorder %s94, 0
    %p430 = por %p428, %p429
    %s432 = sadd.s32 %s431, 1
    %p435 = scmp.eq.s32.totalorder %s88, 1
    %p436 = scmp.ne.s32.totalorder %s431, %s433
    %p437 = scmp.eq.s32.totalorder %s88, 0
    %p438 = por %p436, %p437
    %p439 = scmp.ne.s32.totalorder %s431, %s433
    %p440 = scmp.eq.s32.totalorder %s93, 1
    %p441 = por %p439, %p440
    %p442 = scmp.ne.s32.totalorder %s433, %s434
    %p443 = scmp.eq.s32.totalorder %s93, 0
    %p444 = por %p442, %p443
    %p445 = scmp.ne.s32.totalorder %s433, %s434
    %p446 = scmp.eq.s32.totalorder %s94, 1
    %p447 = por %p445, %p446
    %p449 = scmp.ne.s32.totalorder %s434, %s448
    %p450 = scmp.eq.s32.totalorder %s94, 0
    %p451 = por %p449, %p450
    %s453 = sadd.s32 %s452, 1
    %p456 = scmp.eq.s32.totalorder %s88, 1
    %p457 = scmp.ne.s32.totalorder %s452, %s454
    %p458 = scmp.eq.s32.totalorder %s88, 0
    %p459 = por %p457, %p458
    %p460 = scmp.ne.s32.totalorder %s452, %s454
    %p461 = scmp.eq.s32.totalorder %s93, 1
    %p462 = por %p460, %p461
    %p463 = scmp.ne.s32.totalorder %s454, %s455
    %p464 = scmp.eq.s32.totalorder %s93, 0
    %p465 = por %p463, %p464
    %p466 = scmp.ne.s32.totalorder %s454, %s455
    %p467 = scmp.eq.s32.totalorder %s94, 1
    %p468 = por %p466, %p467
    %p470 = scmp.ne.s32.totalorder %s455, %s469
    %p471 = scmp.eq.s32.totalorder %s94, 0
    %p472 = por %p470, %p471
    %s474 = sadd.s32 %s473, 1
    %p477 = scmp.eq.s32.totalorder %s88, 1
    %p478 = scmp.ne.s32.totalorder %s473, %s475
    %p479 = scmp.eq.s32.totalorder %s88, 0
    %p480 = por %p478, %p479
    %p481 = scmp.ne.s32.totalorder %s473, %s475
    %p482 = scmp.eq.s32.totalorder %s93, 1
    %p483 = por %p481, %p482
    %p484 = scmp.ne.s32.totalorder %s475, %s476
    %p485 = scmp.eq.s32.totalorder %s93, 0
    %p486 = por %p484, %p485
    %p487 = scmp.ne.s32.totalorder %s475, %s476
    %p488 = scmp.eq.s32.totalorder %s94, 1
    %p489 = por %p487, %p488
    %p491 = scmp.ne.s32.totalorder %s476, %s490
    %p492 = scmp.eq.s32.totalorder %s94, 0
    %p493 = por %p491, %p492
    %s495 = sadd.s32 %s494, 1
    %p498 = scmp.eq.s32.totalorder %s88, 1
    %p499 = scmp.ne.s32.totalorder %s494, %s496
    %p500 = scmp.eq.s32.totalorder %s88, 0
    %p501 = por %p499, %p500
    %p502 = scmp.ne.s32.totalorder %s494, %s496
    %p503 = scmp.eq.s32.totalorder %s93, 1
    %p504 = por %p502, %p503
    %p505 = scmp.ne.s32.totalorder %s496, %s497
    %p506 = scmp.eq.s32.totalorder %s93, 0
    %p507 = por %p505, %p506
    %p508 = scmp.ne.s32.totalorder %s496, %s497
    %p509 = scmp.eq.s32.totalorder %s94, 1
    %p510 = por %p508, %p509
    %p512 = scmp.ne.s32.totalorder %s497, %s511
    %p513 = scmp.eq.s32.totalorder %s94, 0
    %p514 = por %p512, %p513
    %s516 = sadd.s32 %s515, 1
    %p519 = scmp.eq.s32.totalorder %s88, 1
    %p520 = scmp.ne.s32.totalorder %s515, %s517
    %p521 = scmp.eq.s32.totalorder %s88, 0
    %p522 = por %p520, %p521
    %p523 = scmp.ne.s32.totalorder %s515, %s517
    %p524 = scmp.eq.s32.totalorder %s93, 1
    %p525 = por %p523, %p524
    %p526 = scmp.ne.s32.totalorder %s517, %s518
    %p527 = scmp.eq.s32.totalorder %s93, 0
    %p528 = por %p526, %p527
    %p529 = scmp.ne.s32.totalorder %s517, %s518
    %p530 = scmp.eq.s32.totalorder %s94, 1
    %p531 = por %p529, %p530
    %p533 = scmp.ne.s32.totalorder %s518, %s532
    %p534 = scmp.eq.s32.totalorder %s94, 0
    %p535 = por %p533, %p534
    %s537 = sadd.s32 %s536, 1
    %p540 = scmp.eq.s32.totalorder %s88, 1
    %p541 = scmp.ne.s32.totalorder %s536, %s538
    %p542 = scmp.eq.s32.totalorder %s88, 0
    %p543 = por %p541, %p542
    %p544 = scmp.ne.s32.totalorder %s536, %s538
    %p545 = scmp.eq.s32.totalorder %s93, 1
    %p546 = por %p544, %p545
    %p547 = scmp.ne.s32.totalorder %s538, %s539
    %p548 = scmp.eq.s32.totalorder %s93, 0
    %p549 = por %p547, %p548
    %p550 = scmp.ne.s32.totalorder %s538, %s539
    %p551 = scmp.eq.s32.totalorder %s94, 1
    %p552 = por %p550, %p551
    %p554 = scmp.ne.s32.totalorder %s539, %s553
    %p555 = scmp.eq.s32.totalorder %s94, 0
    %p556 = por %p554, %p555
    %s558 = sadd.s32 %s557, 1
    %p561 = scmp.eq.s32.totalorder %s88, 1
    %p562 = scmp.ne.s32.totalorder %s557, %s559
    %p563 = scmp.eq.s32.totalorder %s88, 0
    %p564 = por %p562, %p563
    %p565 = scmp.ne.s32.totalorder %s557, %s559
    %p566 = scmp.eq.s32.totalorder %s93, 1
    %p567 = por %p565, %p566
    %p568 = scmp.ne.s32.totalorder %s559, %s560
    %p569 = scmp.eq.s32.totalorder %s93, 0
    %p570 = por %p568, %p569
    %p571 = scmp.ne.s32.totalorder %s559, %s560
    %p572 = scmp.eq.s32.totalorder %s94, 1
    %p573 = por %p571, %p572
    %p575 = scmp.ne.s32.totalorder %s560, %s574
    %p576 = scmp.eq.s32.totalorder %s94, 0
    %p577 = por %p575, %p576
    %s579 = sadd.s32 %s578, 1
    %p582 = scmp.eq.s32.totalorder %s88, 1
    %p583 = scmp.ne.s32.totalorder %s578, %s580
    %p584 = scmp.eq.s32.totalorder %s88, 0
    %p585 = por %p583, %p584
    %p586 = scmp.ne.s32.totalorder %s578, %s580
    %p587 = scmp.eq.s32.totalorder %s93, 1
    %p588 = por %p586, %p587
    %p589 = scmp.ne.s32.totalorder %s580, %s581
    %p590 = scmp.eq.s32.totalorder %s93, 0
    %p591 = por %p589, %p590
    %p592 = scmp.ne.s32.totalorder %s580, %s581
    %p593 = scmp.eq.s32.totalorder %s94, 1
    %p594 = por %p592, %p593
    %p596 = scmp.ne.s32.totalorder %s581, %s595
    %p597 = scmp.eq.s32.totalorder %s94, 0
    %p598 = por %p596, %p597
    %s600 = sadd.s32 %s599, 1
    %p603 = scmp.eq.s32.totalorder %s88, 1
    %p604 = scmp.ne.s32.totalorder %s599, %s601
    %p605 = scmp.eq.s32.totalorder %s88, 0
    %p606 = por %p604, %p605
    %p607 = scmp.ne.s32.totalorder %s599, %s601
    %p608 = scmp.eq.s32.totalorder %s93, 1
    %p609 = por %p607, %p608
    %p610 = scmp.ne.s32.totalorder %s601, %s602
    %p611 = scmp.eq.s32.totalorder %s93, 0
    %p612 = por %p610, %p611
    %p613 = scmp.ne.s32.totalorder %s601, %s602
    %p614 = scmp.eq.s32.totalorder %s94, 1
    %p615 = por %p613, %p614
    %p617 = scmp.ne.s32.totalorder %s602, %s616
    %p618 = scmp.eq.s32.totalorder %s94, 0
    %p619 = por %p617, %p618
    %s621 = sadd.s32 %s620, 1
    %p624 = scmp.eq.s32.totalorder %s88, 1
    %p625 = scmp.ne.s32.totalorder %s620, %s622
    %p626 = scmp.eq.s32.totalorder %s88, 0
    %p627 = por %p625, %p626
    %p628 = scmp.ne.s32.totalorder %s620, %s622
    %p629 = scmp.eq.s32.totalorder %s93, 1
    %p630 = por %p628, %p629
    %p631 = scmp.ne.s32.totalorder %s622, %s623
    %p632 = scmp.eq.s32.totalorder %s93, 0
    %p633 = por %p631, %p632
    %p634 = scmp.ne.s32.totalorder %s622, %s623
    %p635 = scmp.eq.s32.totalorder %s94, 1
    %p636 = por %p634, %p635
    %p638 = scmp.ne.s32.totalorder %s623, %s637
    %p639 = scmp.eq.s32.totalorder %s94, 0
    %p640 = por %p638, %p639
    %s642 = sadd.s32 %s641, 1
    %p645 = scmp.eq.s32.totalorder %s88, 1
    %p646 = scmp.ne.s32.totalorder %s641, %s643
    %p647 = scmp.eq.s32.totalorder %s88, 0
    %p648 = por %p646, %p647
    %p649 = scmp.ne.s32.totalorder %s641, %s643
    %p650 = scmp.eq.s32.totalorder %s93, 1
    %p651 = por %p649, %p650
    %p652 = scmp.ne.s32.totalorder %s643, %s644
    %p653 = scmp.eq.s32.totalorder %s93, 0
    %p654 = por %p652, %p653
    %p655 = scmp.ne.s32.totalorder %s643, %s644
    %p656 = scmp.eq.s32.totalorder %s94, 1
    %p657 = por %p655, %p656
    %p659 = scmp.ne.s32.totalorder %s644, %s658
    %p660 = scmp.eq.s32.totalorder %s94, 0
    %p661 = por %p659, %p660
    %s663 = sadd.s32 %s662, 1
    %p666 = scmp.eq.s32.totalorder %s88, 1
    %p667 = scmp.ne.s32.totalorder %s662, %s664
    %p668 = scmp.eq.s32.totalorder %s88, 0
    %p669 = por %p667, %p668
    %p670 = scmp.ne.s32.totalorder %s662, %s664
    %p671 = scmp.eq.s32.totalorder %s93, 1
    %p672 = por %p670, %p671
    %p673 = scmp.ne.s32.totalorder %s664, %s665
    %p674 = scmp.eq.s32.totalorder %s93, 0
    %p675 = por %p673, %p674
    %p676 = scmp.ne.s32.totalorder %s664, %s665
    %p677 = scmp.eq.s32.totalorder %s94, 1
    %p678 = por %p676, %p677
    %p680 = scmp.ne.s32.totalorder %s665, %s679
    %p681 = scmp.eq.s32.totalorder %s94, 0
    %p682 = por %p680, %p681
    %s684 = sadd.s32 %s683, 1
    %p687 = scmp.eq.s32.totalorder %s88, 1
    %p688 = scmp.ne.s32.totalorder %s683, %s685
    %p689 = scmp.eq.s32.totalorder %s88, 0
    %p690 = por %p688, %p689
    %p691 = scmp.ne.s32.totalorder %s683, %s685
    %p692 = scmp.eq.s32.totalorder %s93, 1
    %p693 = por %p691, %p692
    %p694 = scmp.ne.s32.totalorder %s685, %s686
    %p695 = scmp.eq.s32.totalorder %s93, 0
    %p696 = por %p694, %p695
    %p697 = scmp.ne.s32.totalorder %s685, %s686
    %p698 = scmp.eq.s32.totalorder %s94, 1
    %p699 = por %p697, %p698
    %p701 = scmp.ne.s32.totalorder %s686, %s700
    %p702 = scmp.eq.s32.totalorder %s94, 0
    %p703 = por %p701, %p702
    %s705 = sadd.s32 %s704, 1
    %p708 = scmp.eq.s32.totalorder %s88, 1
    %p709 = scmp.ne.s32.totalorder %s704, %s706
    %p710 = scmp.eq.s32.totalorder %s88, 0
    %p711 = por %p709, %p710
    %p712 = scmp.ne.s32.totalorder %s704, %s706
    %p713 = scmp.eq.s32.totalorder %s93, 1
    %p714 = por %p712, %p713
    %p715 = scmp.ne.s32.totalorder %s706, %s707
    %p716 = scmp.eq.s32.totalorder %s93, 0
    %p717 = por %p715, %p716
    %p718 = scmp.ne.s32.totalorder %s706, %s707
    %p719 = scmp.eq.s32.totalorder %s94, 1
    %p720 = por %p718, %p719
    %p722 = scmp.ne.s32.totalorder %s707, %s721
    %p723 = scmp.eq.s32.totalorder %s94, 0
    %p724 = por %p722, %p723
    %s726 = sadd.s32 %s725, 1
    %p729 = scmp.eq.s32.totalorder %s88, 1
    %p730 = scmp.ne.s32.totalorder %s725, %s727
    %p731 = scmp.eq.s32.totalorder %s88, 0
    %p732 = por %p730, %p731
    %p733 = scmp.ne.s32.totalorder %s725, %s727
    %p734 = scmp.eq.s32.totalorder %s93, 1
    %p735 = por %p733, %p734
    %p736 = scmp.ne.s32.totalorder %s727, %s728
    %p737 = scmp.eq.s32.totalorder %s93, 0
    %p738 = por %p736, %p737
    %p739 = scmp.ne.s32.totalorder %s727, %s728
    %p740 = scmp.eq.s32.totalorder %s94, 1
    %p741 = por %p739, %p740
    %p743 = scmp.ne.s32.totalorder %s728, %s742
    %p744 = scmp.eq.s32.totalorder %s94, 0
    %p745 = por %p743, %p744
    %s747 = sadd.s32 %s746, 1
    %p750 = scmp.eq.s32.totalorder %s88, 1
    %p751 = scmp.ne.s32.totalorder %s746, %s748
    %p752 = scmp.eq.s32.totalorder %s88, 0
    %p753 = por %p751, %p752
    %p754 = scmp.ne.s32.totalorder %s746, %s748
    %p755 = scmp.eq.s32.totalorder %s93, 1
    %p756 = por %p754, %p755
    %p757 = scmp.ne.s32.totalorder %s748, %s749
    %p758 = scmp.eq.s32.totalorder %s93, 0
    %p759 = por %p757, %p758
    %p760 = scmp.ne.s32.totalorder %s748, %s749
    %p761 = scmp.eq.s32.totalorder %s94, 1
    %p762 = por %p760, %p761
    %p764 = scmp.ne.s32.totalorder %s749, %s763
    %p765 = scmp.eq.s32.totalorder %s94, 0
    %p766 = por %p764, %p765
    %s768 = sadd.s32 %s767, 1
    %p771 = scmp.eq.s32.totalorder %s88, 1
    %p772 = scmp.ne.s32.totalorder %s767, %s769
    %p773 = scmp.eq.s32.totalorder %s88, 0
    %p774 = por %p772, %p773
    %p775 = scmp.ne.s32.totalorder %s767, %s769
    %p776 = scmp.eq.s32.totalorder %s93, 1
    %p777 = por %p775, %p776
    %p778 = scmp.ne.s32.totalorder %s769, %s770
    %p779 = scmp.eq.s32.totalorder %s93, 0
    %p780 = por %p778, %p779
    %p781 = scmp.ne.s32.totalorder %s769, %s770
    %p782 = scmp.eq.s32.totalorder %s94, 1
    %p783 = por %p781, %p782
    %p785 = scmp.ne.s32.totalorder %s770, %s784
    %p786 = scmp.eq.s32.totalorder %s94, 0
    %p787 = por %p785, %p786
    %s789 = sadd.s32 %s788, 1
    %p792 = scmp.eq.s32.totalorder %s88, 1
    %p793 = scmp.ne.s32.totalorder %s788, %s790
    %p794 = scmp.eq.s32.totalorder %s88, 0
    %p795 = por %p793, %p794
    %p796 = scmp.ne.s32.totalorder %s788, %s790
    %p797 = scmp.eq.s32.totalorder %s93, 1
    %p798 = por %p796, %p797
    %p799 = scmp.ne.s32.totalorder %s790, %s791
    %p800 = scmp.eq.s32.totalorder %s93, 0
    %p801 = por %p799, %p800
    %p802 = scmp.ne.s32.totalorder %s790, %s791
    %p803 = scmp.eq.s32.totalorder %s94, 1
    %p804 = por %p802, %p803
    %p806 = scmp.ne.s32.totalorder %s791, %s805
    %p807 = scmp.eq.s32.totalorder %s94, 0
    %p808 = por %p806, %p807
    %s810 = sadd.s32 %s809, 1
    %p813 = scmp.eq.s32.totalorder %s88, 1
    %p814 = scmp.ne.s32.totalorder %s809, %s811
    %p815 = scmp.eq.s32.totalorder %s88, 0
    %p816 = por %p814, %p815
    %p817 = scmp.ne.s32.totalorder %s809, %s811
    %p818 = scmp.eq.s32.totalorder %s93, 1
    %p819 = por %p817, %p818
    %p820 = scmp.ne.s32.totalorder %s811, %s812
    %p821 = scmp.eq.s32.totalorder %s93, 0
    %p822 = por %p820, %p821
    %p823 = scmp.ne.s32.totalorder %s811, %s812
    %p824 = scmp.eq.s32.totalorder %s94, 1
    %p825 = por %p823, %p824
    %p827 = scmp.ne.s32.totalorder %s812, %s826
    %p828 = scmp.eq.s32.totalorder %s94, 0
    %p829 = por %p827, %p828
    %s831 = sadd.s32 %s830, 1
    %p834 = scmp.eq.s32.totalorder %s88, 1
    %p835 = scmp.ne.s32.totalorder %s830, %s832
    %p836 = scmp.eq.s32.totalorder %s88, 0
    %p837 = por %p835, %p836
    %p838 = scmp.ne.s32.totalorder %s830, %s832
    %p839 = scmp.eq.s32.totalorder %s93, 1
    %p840 = por %p838, %p839
    %p841 = scmp.ne.s32.totalorder %s832, %s833
    %p842 = scmp.eq.s32.totalorder %s93, 0
    %p843 = por %p841, %p842
    %p844 = scmp.ne.s32.totalorder %s832, %s833
    %p845 = scmp.eq.s32.totalorder %s94, 1
    %p846 = por %p844, %p845
    %p848 = scmp.ne.s32.totalorder %s833, %s847
    %p849 = scmp.eq.s32.totalorder %s94, 0
    %p850 = por %p848, %p849
    %s852 = sadd.s32 %s851, 1
    %p855 = scmp.eq.s32.totalorder %s88, 1
    %p856 = scmp.ne.s32.totalorder %s851, %s853
    %p857 = scmp.eq.s32.totalorder %s88, 0
    %p858 = por %p856, %p857
    %p859 = scmp.ne.s32.totalorder %s851, %s853
    %p860 = scmp.eq.s32.totalorder %s93, 1
    %p861 = por %p859, %p860
    %p862 = scmp.ne.s32.totalorder %s853, %s854
    %p863 = scmp.eq.s32.totalorder %s93, 0
    %p864 = por %p862, %p863
    %p865 = scmp.ne.s32.totalorder %s853, %s854
    %p866 = scmp.eq.s32.totalorder %s94, 1
    %p867 = por %p865, %p866
    %p869 = scmp.ne.s32.totalorder %s854, %s868
    %p870 = scmp.eq.s32.totalorder %s94, 0
    %p871 = por %p869, %p870
    %s873 = sadd.s32 %s872, 1
    %p876 = scmp.eq.s32.totalorder %s88, 1
    %p877 = scmp.ne.s32.totalorder %s872, %s874
    %p878 = scmp.eq.s32.totalorder %s88, 0
    %p879 = por %p877, %p878
    %p880 = scmp.ne.s32.totalorder %s872, %s874
    %p881 = scmp.eq.s32.totalorder %s93, 1
    %p882 = por %p880, %p881
    %p883 = scmp.ne.s32.totalorder %s874, %s875
    %p884 = scmp.eq.s32.totalorder %s93, 0
    %p885 = por %p883, %p884
    %p886 = scmp.ne.s32.totalorder %s874, %s875
    %p887 = scmp.eq.s32.totalorder %s94, 1
    %p888 = por %p886, %p887
    %p890 = scmp.ne.s32.totalorder %s875, %s889
    %p891 = scmp.eq.s32.totalorder %s94, 0
    %p892 = por %p890, %p891
    %s894 = sadd.s32 %s893, 1
    %p897 = scmp.eq.s32.totalorder %s88, 1
    %p898 = scmp.ne.s32.totalorder %s893, %s895
    %p899 = scmp.eq.s32.totalorder %s88, 0
    %p900 = por %p898, %p899
    %p901 = scmp.ne.s32.totalorder %s893, %s895
    %p902 = scmp.eq.s32.totalorder %s93, 1
    %p903 = por %p901, %p902
    %p904 = scmp.ne.s32.totalorder %s895, %s896
    %p905 = scmp.eq.s32.totalorder %s93, 0
    %p906 = por %p904, %p905
    %p907 = scmp.ne.s32.totalorder %s895, %s896
    %p908 = scmp.eq.s32.totalorder %s94, 1
    %p909 = por %p907, %p908
    %p911 = scmp.ne.s32.totalorder %s896, %s910
    %p912 = scmp.eq.s32.totalorder %s94, 0
    %p913 = por %p911, %p912
    %s915 = sadd.s32 %s914, 1
    %p918 = scmp.eq.s32.totalorder %s88, 1
    %p919 = scmp.ne.s32.totalorder %s914, %s916
    %p920 = scmp.eq.s32.totalorder %s88, 0
    %p921 = por %p919, %p920
    %p922 = scmp.ne.s32.totalorder %s914, %s916
    %p923 = scmp.eq.s32.totalorder %s93, 1
    %p924 = por %p922, %p923
    %p925 = scmp.ne.s32.totalorder %s916, %s917
    %p926 = scmp.eq.s32.totalorder %s93, 0
    %p927 = por %p925, %p926
    %p928 = scmp.ne.s32.totalorder %s916, %s917
    %p929 = scmp.eq.s32.totalorder %s94, 1
    %p930 = por %p928, %p929
    %p932 = scmp.ne.s32.totalorder %s917, %s931
    %p933 = scmp.eq.s32.totalorder %s94, 0
    %p934 = por %p932, %p933
    %s935 = ssub.s32 %s88, %s95
    %p936 = scmp.eq.s32.totalorder %s935, 0
    %s938 = sadd.s32 %s937, 1
    %s939 = scalar_select %p936, %s937, %s938
    %p942 = pneg %p936
    %p943 = scmp.eq.s32.totalorder %s88, 1
    %p944 = por %p942, %p943
    %p945 = scmp.ne.s32.totalorder %s937, %s940
    %p946 = scmp.eq.s32.totalorder %s88, 0
    %p947 = por %p945, %p946
    %p948 = scmp.ne.s32.totalorder %s937, %s940
    %p949 = scmp.eq.s32.totalorder %s93, 1
    %p950 = por %p948, %p949
    %p951 = scmp.ne.s32.totalorder %s940, %s941
    %p952 = scmp.eq.s32.totalorder %s93, 0
    %p953 = por %p951, %p952
    %p954 = scmp.ne.s32.totalorder %s940, %s941
    %p955 = scmp.eq.s32.totalorder %s94, 1
    %p956 = por %p954, %p955
    %p958 = scmp.ne.s32.totalorder %s941, %s957
    %p959 = scmp.eq.s32.totalorder %s94, 0
    %p960 = por %p958, %p959
    %s961 = ssub.s32 %s88, %s95
    %p962 = scmp.eq.s32.totalorder %s961, 0
    %s964 = sadd.s32 %s963, 1
    %s965 = scalar_select %p962, %s963, %s964
    %p968 = pneg %p962
    %p969 = scmp.eq.s32.totalorder %s88, 1
    %p970 = por %p968, %p969
    %p971 = scmp.ne.s32.totalorder %s963, %s966
    %p972 = scmp.eq.s32.totalorder %s88, 0
    %p973 = por %p971, %p972
    %p974 = scmp.ne.s32.totalorder %s963, %s966
    %p975 = scmp.eq.s32.totalorder %s93, 1
    %p976 = por %p974, %p975
    %p977 = scmp.ne.s32.totalorder %s966, %s967
    %p978 = scmp.eq.s32.totalorder %s93, 0
    %p979 = por %p977, %p978
    %p980 = scmp.ne.s32.totalorder %s966, %s967
    %p981 = scmp.eq.s32.totalorder %s94, 1
    %p982 = por %p980, %p981
    %p984 = scmp.ne.s32.totalorder %s967, %s983
    %p985 = scmp.eq.s32.totalorder %s94, 0
    %p986 = por %p984, %p985
    %p987 = scmp.le.s32.totalorder 1, %s88
    %p988 = scmp.lt.s32.totalorder %s88, 3
    %p989 = pnand %p987, %p988
    %p990 = pneg %p989
    // Predicated region
    $region9: #{packed_block_forward.1} parent=5 // pred_check
      _
    $region10: #{packed_block_forward.1} parent=5 // pred_check_branch
      %992 = sbr.rel (%p989) target = $region12
    $region11: #{packed_block_forward.1} parent=5 // pred_region
      %s993 = ssub.s32 %s88, 1
      // Predicated region
      $region13: #{packed_block_forward.1} parent=11 // pred_check
        %p994 = pneg %p213
      $region14: #{packed_block_forward.1} parent=11 // pred_check_branch
        %996 = sbr.rel (%p994) target = $region16
      $region15: #{packed_block_forward.1} parent=11 // pred_region
        _
      $region16: #{packed_block_forward.1} parent=11 // pred_fallthru
        _
      // Predicated region
      $region17: #{packed_block_forward.1} parent=11 // pred_check
        %p997 = pneg %p234
      $region18: #{packed_block_forward.1} parent=11 // pred_check_branch
        %999 = sbr.rel (%p997) target = $region20
      $region19: #{packed_block_forward.1} parent=11 // pred_region
        _
      $region20: #{packed_block_forward.1} parent=11 // pred_fallthru
        _
      // Predicated region
      $region21: #{packed_block_forward.1} parent=11 // pred_check
        %p1000 = pneg %p255
      $region22: #{packed_block_forward.1} parent=11 // pred_check_branch
        %1002 = sbr.rel (%p1000) target = $region24
      $region23: #{packed_block_forward.1} parent=11 // pred_region
        _
      $region24: #{packed_block_forward.1} parent=11 // pred_fallthru
        _
      // Predicated region
      $region25: #{packed_block_forward.1} parent=11 // pred_check
        %p1003 = pneg %p276
      $region26: #{packed_block_forward.1} parent=11 // pred_check_branch
        %1005 = sbr.rel (%p1003) target = $region28
      $region27: #{packed_block_forward.1} parent=11 // pred_region
        _
      $region28: #{packed_block_forward.1} parent=11 // pred_fallthru
        _
      // Predicated region
      $region29: #{packed_block_forward.1} parent=11 // pred_check
        %p1006 = pneg %p297
      $region30: #{packed_block_forward.1} parent=11 // pred_check_branch
        %1008 = sbr.rel (%p1006) target = $region32
      $region31: #{packed_block_forward.1} parent=11 // pred_region
        _
      $region32: #{packed_block_forward.1} parent=11 // pred_fallthru
        _
      // Predicated region
      $region33: #{packed_block_forward.1} parent=11 // pred_check
        %p1009 = pneg %p318
      $region34: #{packed_block_forward.1} parent=11 // pred_check_branch
        %1011 = sbr.rel (%p1009) target = $region36
      $region35: #{packed_block_forward.1} parent=11 // pred_region
        _
      $region36: #{packed_block_forward.1} parent=11 // pred_fallthru
        _
      // Predicated region
      $region37: #{packed_block_forward.1} parent=11 // pred_check
        %p1012 = pneg %p339
      $region38: #{packed_block_forward.1} parent=11 // pred_check_branch
        %1014 = sbr.rel (%p1012) target = $region40
      $region39: #{packed_block_forward.1} parent=11 // pred_region
        _
      $region40: #{packed_block_forward.1} parent=11 // pred_fallthru
        _
      // Predicated region
      $region41: #{packed_block_forward.1} parent=11 // pred_check
        %p1015 = pneg %p360
      $region42: #{packed_block_forward.1} parent=11 // pred_check_branch
        %1017 = sbr.rel (%p1015) target = $region44
      $region43: #{packed_block_forward.1} parent=11 // pred_region
        _
      $region44: #{packed_block_forward.1} parent=11 // pred_fallthru
        _
      // Predicated region
      $region45: #{packed_block_forward.1} parent=11 // pred_check
        %p1018 = pneg %p381
      $region46: #{packed_block_forward.1} parent=11 // pred_check_branch
        %1020 = sbr.rel (%p1018) target = $region48
      $region47: #{packed_block_forward.1} parent=11 // pred_region
        _
      $region48: #{packed_block_forward.1} parent=11 // pred_fallthru
        _
      // Predicated region
      $region49: #{packed_block_forward.1} parent=11 // pred_check
        %p1021 = pneg %p402
      $region50: #{packed_block_forward.1} parent=11 // pred_check_branch
        %1023 = sbr.rel (%p1021) target = $region52
      $region51: #{packed_block_forward.1} parent=11 // pred_region
        _
      $region52: #{packed_block_forward.1} parent=11 // pred_fallthru
        _
      // Predicated region
      $region53: #{packed_block_forward.1} parent=11 // pred_check
        %p1024 = pneg %p423
      $region54: #{packed_block_forward.1} parent=11 // pred_check_branch
        %1026 = sbr.rel (%p1024) target = $region56
      $region55: #{packed_block_forward.1} parent=11 // pred_region
        _
      $region56: #{packed_block_forward.1} parent=11 // pred_fallthru
        _
      // Predicated region
      $region57: #{packed_block_forward.1} parent=11 // pred_check
        %p1027 = pneg %p444
      $region58: #{packed_block_forward.1} parent=11 // pred_check_branch
        %1029 = sbr.rel (%p1027) target = $region60
      $region59: #{packed_block_forward.1} parent=11 // pred_region
        _
      $region60: #{packed_block_forward.1} parent=11 // pred_fallthru
        _
      // Predicated region
      $region61: #{packed_block_forward.1} parent=11 // pred_check
        %p1030 = pneg %p465
      $region62: #{packed_block_forward.1} parent=11 // pred_check_branch
        %1032 = sbr.rel (%p1030) target = $region64
      $region63: #{packed_block_forward.1} parent=11 // pred_region
        _
      $region64: #{packed_block_forward.1} parent=11 // pred_fallthru
        _
      // Predicated region
      $region65: #{packed_block_forward.1} parent=11 // pred_check
        %p1033 = pneg %p486
      $region66: #{packed_block_forward.1} parent=11 // pred_check_branch
        %1035 = sbr.rel (%p1033) target = $region68
      $region67: #{packed_block_forward.1} parent=11 // pred_region
        _
      $region68: #{packed_block_forward.1} parent=11 // pred_fallthru
        _
      // Predicated region
      $region69: #{packed_block_forward.1} parent=11 // pred_check
        %p1036 = pneg %p507
      $region70: #{packed_block_forward.1} parent=11 // pred_check_branch
        %1038 = sbr.rel (%p1036) target = $region72
      $region71: #{packed_block_forward.1} parent=11 // pred_region
        _
      $region72: #{packed_block_forward.1} parent=11 // pred_fallthru
        _
      // Predicated region
      $region73: #{packed_block_forward.1} parent=11 // pred_check
        %p1039 = pneg %p528
      $region74: #{packed_block_forward.1} parent=11 // pred_check_branch
        %1041 = sbr.rel (%p1039) target = $region76
      $region75: #{packed_block_forward.1} parent=11 // pred_region
        _
      $region76: #{packed_block_forward.1} parent=11 // pred_fallthru
        _
      // Predicated region
      $region77: #{packed_block_forward.1} parent=11 // pred_check
        %p1042 = pneg %p549
      $region78: #{packed_block_forward.1} parent=11 // pred_check_branch
        %1044 = sbr.rel (%p1042) target = $region80
      $region79: #{packed_block_forward.1} parent=11 // pred_region
        _
      $region80: #{packed_block_forward.1} parent=11 // pred_fallthru
        _
      // Predicated region
      $region81: #{packed_block_forward.1} parent=11 // pred_check
        %p1045 = pneg %p570
      $region82: #{packed_block_forward.1} parent=11 // pred_check_branch
        %1047 = sbr.rel (%p1045) target = $region84
      $region83: #{packed_block_forward.1} parent=11 // pred_region
        _
      $region84: #{packed_block_forward.1} parent=11 // pred_fallthru
        _
      // Predicated region
      $region85: #{packed_block_forward.1} parent=11 // pred_check
        %p1048 = pneg %p591
      $region86: #{packed_block_forward.1} parent=11 // pred_check_branch
        %1050 = sbr.rel (%p1048) target = $region88
      $region87: #{packed_block_forward.1} parent=11 // pred_region
        _
      $region88: #{packed_block_forward.1} parent=11 // pred_fallthru
        _
      // Predicated region
      $region89: #{packed_block_forward.1} parent=11 // pred_check
        %p1051 = pneg %p612
      $region90: #{packed_block_forward.1} parent=11 // pred_check_branch
        %1053 = sbr.rel (%p1051) target = $region92
      $region91: #{packed_block_forward.1} parent=11 // pred_region
        _
      $region92: #{packed_block_forward.1} parent=11 // pred_fallthru
        _
      // Predicated region
      $region93: #{packed_block_forward.1} parent=11 // pred_check
        %p1054 = pneg %p633
      $region94: #{packed_block_forward.1} parent=11 // pred_check_branch
        %1056 = sbr.rel (%p1054) target = $region96
      $region95: #{packed_block_forward.1} parent=11 // pred_region
        _
      $region96: #{packed_block_forward.1} parent=11 // pred_fallthru
        _
      // Predicated region
      $region97: #{packed_block_forward.1} parent=11 // pred_check
        %p1057 = pneg %p654
      $region98: #{packed_block_forward.1} parent=11 // pred_check_branch
        %1059 = sbr.rel (%p1057) target = $region100
      $region99: #{packed_block_forward.1} parent=11 // pred_region
        _
      $region100: #{packed_block_forward.1} parent=11 // pred_fallthru
        _
      // Predicated region
      $region101: #{packed_block_forward.1} parent=11 // pred_check
        %p1060 = pneg %p675
      $region102: #{packed_block_forward.1} parent=11 // pred_check_branch
        %1062 = sbr.rel (%p1060) target = $region104
      $region103: #{packed_block_forward.1} parent=11 // pred_region
        _
      $region104: #{packed_block_forward.1} parent=11 // pred_fallthru
        _
      // Predicated region
      $region105: #{packed_block_forward.1} parent=11 // pred_check
        %p1063 = pneg %p696
      $region106: #{packed_block_forward.1} parent=11 // pred_check_branch
        %1065 = sbr.rel (%p1063) target = $region108
      $region107: #{packed_block_forward.1} parent=11 // pred_region
        _
      $region108: #{packed_block_forward.1} parent=11 // pred_fallthru
        _
      // Predicated region
      $region109: #{packed_block_forward.1} parent=11 // pred_check
        %p1066 = pneg %p717
      $region110: #{packed_block_forward.1} parent=11 // pred_check_branch
        %1068 = sbr.rel (%p1066) target = $region112
      $region111: #{packed_block_forward.1} parent=11 // pred_region
        _
      $region112: #{packed_block_forward.1} parent=11 // pred_fallthru
        _
      // Predicated region
      $region113: #{packed_block_forward.1} parent=11 // pred_check
        %p1069 = pneg %p738
      $region114: #{packed_block_forward.1} parent=11 // pred_check_branch
        %1071 = sbr.rel (%p1069) target = $region116
      $region115: #{packed_block_forward.1} parent=11 // pred_region
        _
      $region116: #{packed_block_forward.1} parent=11 // pred_fallthru
        _
      // Predicated region
      $region117: #{packed_block_forward.1} parent=11 // pred_check
        %p1072 = pneg %p759
      $region118: #{packed_block_forward.1} parent=11 // pred_check_branch
        %1074 = sbr.rel (%p1072) target = $region120
      $region119: #{packed_block_forward.1} parent=11 // pred_region
        _
      $region120: #{packed_block_forward.1} parent=11 // pred_fallthru
        _
      // Predicated region
      $region121: #{packed_block_forward.1} parent=11 // pred_check
        %p1075 = pneg %p780
      $region122: #{packed_block_forward.1} parent=11 // pred_check_branch
        %1077 = sbr.rel (%p1075) target = $region124
      $region123: #{packed_block_forward.1} parent=11 // pred_region
        _
      $region124: #{packed_block_forward.1} parent=11 // pred_fallthru
        _
      // Predicated region
      $region125: #{packed_block_forward.1} parent=11 // pred_check
        %p1078 = pneg %p801
      $region126: #{packed_block_forward.1} parent=11 // pred_check_branch
        %1080 = sbr.rel (%p1078) target = $region128
      $region127: #{packed_block_forward.1} parent=11 // pred_region
        _
      $region128: #{packed_block_forward.1} parent=11 // pred_fallthru
        _
      // Predicated region
      $region129: #{packed_block_forward.1} parent=11 // pred_check
        %p1081 = pneg %p822
      $region130: #{packed_block_forward.1} parent=11 // pred_check_branch
        %1083 = sbr.rel (%p1081) target = $region132
      $region131: #{packed_block_forward.1} parent=11 // pred_region
        _
      $region132: #{packed_block_forward.1} parent=11 // pred_fallthru
        _
      // Predicated region
      $region133: #{packed_block_forward.1} parent=11 // pred_check
        %p1084 = pneg %p843
      $region134: #{packed_block_forward.1} parent=11 // pred_check_branch
        %1086 = sbr.rel (%p1084) target = $region136
      $region135: #{packed_block_forward.1} parent=11 // pred_region
        _
      $region136: #{packed_block_forward.1} parent=11 // pred_fallthru
        _
      // Predicated region
      $region137: #{packed_block_forward.1} parent=11 // pred_check
        %p1087 = pneg %p864
      $region138: #{packed_block_forward.1} parent=11 // pred_check_branch
        %1089 = sbr.rel (%p1087) target = $region140
      $region139: #{packed_block_forward.1} parent=11 // pred_region
        _
      $region140: #{packed_block_forward.1} parent=11 // pred_fallthru
        _
      // Predicated region
      $region141: #{packed_block_forward.1} parent=11 // pred_check
        %p1090 = pneg %p885
      $region142: #{packed_block_forward.1} parent=11 // pred_check_branch
        %1092 = sbr.rel (%p1090) target = $region144
      $region143: #{packed_block_forward.1} parent=11 // pred_region
        _
      $region144: #{packed_block_forward.1} parent=11 // pred_fallthru
        _
      // Predicated region
      $region145: #{packed_block_forward.1} parent=11 // pred_check
        %p1093 = pneg %p906
      $region146: #{packed_block_forward.1} parent=11 // pred_check_branch
        %1095 = sbr.rel (%p1093) target = $region148
      $region147: #{packed_block_forward.1} parent=11 // pred_region
        _
      $region148: #{packed_block_forward.1} parent=11 // pred_fallthru
        _
      // Predicated region
      $region149: #{packed_block_forward.1} parent=11 // pred_check
        %p1096 = pneg %p927
      $region150: #{packed_block_forward.1} parent=11 // pred_check_branch
        %1098 = sbr.rel (%p1096) target = $region152
      $region151: #{packed_block_forward.1} parent=11 // pred_region
        _
      $region152: #{packed_block_forward.1} parent=11 // pred_fallthru
        _
    $region12: #{packed_block_forward.1} parent=5 // pred_fallthru
      _
    %p1099 = scmp.lt.s32.totalorder %s88, 2
    // Predicated region
    $region153: #{packed_block_forward.1} parent=5 // pred_check
      %p1100 = pneg %p1099
    $region154: #{packed_block_forward.1} parent=5 // pred_check_branch
      %1102 = sbr.rel (%p1100) target = $region156
    $region155: #{packed_block_forward.1} parent=5 // pred_region
      // Predicated region
      $region157: #{packed_block_forward.1} parent=155 // pred_check
        %p1103 = pneg %p108
      $region158: #{packed_block_forward.1} parent=155 // pred_check_branch
        %1105 = sbr.rel (%p1103) target = $region160
      $region159: #{packed_block_forward.1} parent=155 // pred_region
        %p1106 = scmp.lt.s32.totalorder %s88, 1
        %s1107 = scalar_select %p1106, %s88, 1
        %s1108 = smul.addr %s1107, 2
        %s1109 = smul.addr %s1108, 8
        %s1110 = scalar_lea.vmem %s1, %s1109
      $region160: #{packed_block_forward.1} parent=155 // pred_fallthru
        _
      // Predicated region
      $region161: #{packed_block_forward.1} parent=155 // pred_check
        %p1111 = pneg %p134
      $region162: #{packed_block_forward.1} parent=155 // pred_check_branch
        %1113 = sbr.rel (%p1111) target = $region164
      $region163: #{packed_block_forward.1} parent=155 // pred_region
        %p1114 = scmp.lt.s32.totalorder %s88, 1
        %s1115 = scalar_select %p1114, %s88, 1
        %s1116 = smul.addr %s1115, 2
        %s1117 = smul.addr %s1116, 8
        %s1118 = scalar_lea.vmem %s3, %s1117
      $region164: #{packed_block_forward.1} parent=155 // pred_fallthru
        _
      // Predicated region
      $region165: #{packed_block_forward.1} parent=155 // pred_check
        %p1119 = pneg %p160
      $region166: #{packed_block_forward.1} parent=155 // pred_check_branch
        %1121 = sbr.rel (%p1119) target = $region168
      $region167: #{packed_block_forward.1} parent=155 // pred_region
        %p1122 = scmp.lt.s32.totalorder %s88, 1
        %s1123 = scalar_select %p1122, %s88, 1
        %s1124 = smul.addr %s1123, 2
        %s1125 = smul.addr %s1124, 8
        %s1126 = scalar_lea.vmem %s5, %s1125
      $region168: #{packed_block_forward.1} parent=155 // pred_fallthru
        _
      // Predicated region
      $region169: #{packed_block_forward.1} parent=155 // pred_check
        %p1127 = pneg %p186
      $region170: #{packed_block_forward.1} parent=155 // pred_check_branch
        %1129 = sbr.rel (%p1127) target = $region172
      $region171: #{packed_block_forward.1} parent=155 // pred_region
        %p1130 = scmp.lt.s32.totalorder %s88, 1
        %s1131 = scalar_select %p1130, %s88, 1
        %s1132 = scalar_lea.vmem %s7, %s1131
      $region172: #{packed_block_forward.1} parent=155 // pred_fallthru
        _
    $region156: #{packed_block_forward.1} parent=5 // pred_fallthru
      _
    %p1133 = scmp.le.s32.totalorder 1, %s88
    %p1134 = scmp.lt.s32.totalorder %s88, 3
    %p1135 = pnand %p1133, %p1134
    %p1136 = pneg %p1135
    // Predicated region
    $region173: #{packed_block_forward.1} parent=5 // pred_check
      _
    $region174: #{packed_block_forward.1} parent=5 // pred_check_branch
      %1138 = sbr.rel (%p1135) target = $region176
    $region175: #{packed_block_forward.1} parent=5 // pred_region
      %s1139 = ssub.s32 %s88, 1
      %p1140 = scmp.lt.s32.totalorder %s93, 1
      %s1141 = scalar_select %p1140, %s93, 1
      %s1142 = smul.addr %s1141, 2
      %s1143 = smul.addr %s1142, 8
      %s1144 = scalar_lea.vmem %s1, %s1143
      %p1145 = pneg %p114
      %p1146 = pneg %p111
      %p1147 = scmp.lt.s32.totalorder %s93, 1
      %s1148 = scalar_select %p1147, %s93, 1
      %s1149 = smul.addr %s1148, 2
      %s1150 = smul.addr %s1149, 8
      %s1151 = scalar_lea.vmem %s3, %s1150
      %p1152 = pneg %p140
      %p1153 = pneg %p137
      %p1154 = scmp.lt.s32.totalorder %s93, 1
      %s1155 = scalar_select %p1154, %s93, 1
      %s1156 = smul.addr %s1155, 2
      %s1157 = smul.addr %s1156, 8
      %s1158 = scalar_lea.vmem %s5, %s1157
      %p1159 = pneg %p166
      %p1160 = pneg %p163
      %p1161 = scmp.lt.s32.totalorder %s93, 1
      %s1162 = scalar_select %p1161, %s93, 1
      %s1163 = scalar_lea.vmem %s7, %s1162
      %p1164 = pneg %p192
      %p1165 = pneg %p189
      %p1166 = pneg %p213
      %p1167 = pneg %p210
      %p1168 = pneg %p234
      %p1169 = pneg %p231
      %p1170 = pneg %p255
      %p1171 = pneg %p252
      %p1172 = pneg %p276
      %p1173 = pneg %p273
      %p1174 = pneg %p297
      %p1175 = pneg %p294
      %p1176 = pneg %p318
      %p1177 = pneg %p315
      %p1178 = pneg %p339
      %p1179 = pneg %p336
      %p1180 = pneg %p360
      %p1181 = pneg %p357
      %p1182 = pneg %p381
      %p1183 = pneg %p378
      %p1184 = pneg %p402
      %p1185 = pneg %p399
      %p1186 = pneg %p423
      %p1187 = pneg %p420
      %p1188 = pneg %p444
      %p1189 = pneg %p441
      %p1190 = pneg %p465
      %p1191 = pneg %p462
      %p1192 = pneg %p486
      %p1193 = pneg %p483
      %p1194 = pneg %p507
      %p1195 = pneg %p504
      %p1196 = pneg %p528
      %p1197 = pneg %p525
      %p1198 = pneg %p549
      %p1199 = pneg %p546
      %p1200 = pneg %p570
      %p1201 = pneg %p567
      %p1202 = pneg %p591
      %p1203 = pneg %p588
      %p1204 = pneg %p612
      %p1205 = pneg %p609
      %p1206 = pneg %p633
      %p1207 = pneg %p630
      %p1208 = pneg %p654
      %p1209 = pneg %p651
      %p1210 = pneg %p675
      %p1211 = pneg %p672
      %p1212 = pneg %p696
      %p1213 = pneg %p693
      %p1214 = pneg %p717
      %p1215 = pneg %p714
      %p1216 = pneg %p738
      %p1217 = pneg %p735
      %p1218 = pneg %p759
      %p1219 = pneg %p756
      %p1220 = pneg %p780
      %p1221 = pneg %p777
      %p1222 = pneg %p801
      %p1223 = pneg %p798
      %p1224 = pneg %p822
      %p1225 = pneg %p819
      %p1226 = pneg %p843
      %p1227 = pneg %p840
      %p1228 = pneg %p864
      %p1229 = pneg %p861
      %p1230 = pneg %p885
      %p1231 = pneg %p882
      %p1232 = pneg %p906
      %p1233 = pneg %p903
      %p1234 = pneg %p927
      %p1235 = pneg %p924
      %p1236 = pneg %p953
      %p1237 = pneg %p950
      %p1238 = scmp.lt.s32.totalorder %s93, 1
      %s1239 = scalar_select %p1238, %s93, 1
      %s1240 = smul.addr %s1239, 2
      %s1241 = smul.addr %s1240, 8
      %s1242 = scalar_lea.vmem %s79, %s1241
      %p1243 = pneg %p979
      %p1244 = pneg %p976
      %p1245 = scmp.lt.s32.totalorder %s93, 1
      %s1246 = scalar_select %p1245, %s93, 1
      %s1247 = smul.addr %s1246, 2
      %s1248 = smul.addr %s1247, 8
      %s1249 = scalar_lea.vmem %s81, %s1248
      %p1250 = scmp.lt.s32.totalorder %s93, 1
      %s1251 = scalar_select %p1250, %s93, 1
      %s1252 = smul.addr %s1251, 2
      %s1253 = smul.addr %s1252, 8
      %s1254 = scalar_lea.vmem %s1, %s1253
      %p1255 = scmp.lt.s32.totalorder %s93, 1
      %s1256 = scalar_select %p1255, %s93, 1
      %s1257 = smul.addr %s1256, 2
      %s1258 = smul.addr %s1257, 8
      %s1259 = scalar_lea.vmem %s3, %s1258
      %p1260 = scmp.lt.s32.totalorder %s93, 1
      %s1261 = scalar_select %p1260, %s93, 1
      %s1262 = smul.addr %s1261, 2
      %s1263 = smul.addr %s1262, 8
      %s1264 = scalar_lea.vmem %s5, %s1263
      %p1265 = scmp.lt.s32.totalorder %s93, 1
      %s1266 = scalar_select %p1265, %s93, 1
      %s1267 = scalar_lea.vmem %s7, %s1266
      %p1268 = scmp.lt.s32.totalorder %s93, 1
      %s1269 = scalar_select %p1268, %s93, 1
      %s1270 = smul.addr %s1269, 2
      %s1271 = smul.addr %s1270, 8
      %s1272 = scalar_lea.vmem %s79, %s1271
      %p1273 = scmp.lt.s32.totalorder %s93, 1
      %s1274 = scalar_select %p1273, %s93, 1
      %s1275 = smul.addr %s1274, 2
      %s1276 = smul.addr %s1275, 8
      %s1277 = scalar_lea.vmem %s81, %s1276
      %v1279 = vld [vmem:[%s1254] sm:$0xff]
      %v1280 = vld [vmem:[%s1254 + $0x8] sm:$0xff]
      %v1281 = vld [vmem:[%s1259] sm:$0xff]
      %v1282 = vld [vmem:[%s1259 + $0x8] sm:$0xff]
      %v1283 = vld [vmem:[%s1264] sm:$0xff]
      %v1284 = vld [vmem:[%s1264 + $0x8] sm:$0xff]
      %v1285 = vpack.c.bf16 %v1284, %v1283
      %v1286 = vld [vmem:[%s1267] sm:$0x1]
      %v1287 = vpack.c.bf16 %v1286, %v1286
      %v1288 = vld [vmem:[%s17] sm:$0xff]
      %v1289 = vld [vmem:[%s17 + $0x8] sm:$0xff]
      %v1290 = vld [vmem:[%s19] sm:$0x3]
      %v1292 = vperm.slane %v1290, 0
      %v1293 = vperm.slane %v1290, 1
      %v1298 = vunpack.c.l.b16 %v1288
      %v1299 = vunpack.c.h.b16 %v1288
      %v1300 = vunpack.c.l.b16 %v1289
      %v1301 = vunpack.c.h.b16 %v1289
      %v1302 = vpack.c.b16 %v1300, %v1298
      %v1303 = vpack.c.b16 %v1301, %v1299
      %vm1306 = vcmask 130048
      %v1308 = vsel %vm1306, %v1285, 0
      %1310 = vmatpush.bf16.msra.mxu0 0
      %1311 = vmatpush.bf16.msra.mxu0 0
      %1312 = vmatpush.bf16.msra.mxu0 0
      %1313 = vmatpush.bf16.msra.mxu0 0
      %1314 = vmatpush.bf16.msra.mxu0 0
      %1315 = vmatpush.bf16.msra.mxu0 0
      %1316 = vmatpush.bf16.msra.mxu0 0
      %1317 = vmatpush.bf16.msra.mxu0 %v1302
      %1318 = vmatmul.bf16.gmra.mxu0 %v1308
      %v1319 = vpop.f32.mrf.mxu0
      %v1320 = vadd.f32 %v1292, %v1319
      %v1321 = vpop.f32.mrf.mxu0
      %v1322 = vadd.f32 %v1292, %v1321
      %1323 = vdwg.mxu0
      %1324 = vmatpush.bf16.msra.mxu0 0
      %1325 = vmatpush.bf16.msra.mxu0 0
      %1326 = vmatpush.bf16.msra.mxu0 0
      %1327 = vmatpush.bf16.msra.mxu0 0
      %1328 = vmatpush.bf16.msra.mxu0 0
      %1329 = vmatpush.bf16.msra.mxu0 0
      %1330 = vmatpush.bf16.msra.mxu0 0
      %1331 = vmatpush.bf16.msra.mxu0 %v1303
      %1332 = vmatmul.bf16.gmra.mxu0 %v1308
      %v1333 = vpop.f32.mrf.mxu0
      %v1334 = vadd.f32 %v1293, %v1333
      %v1335 = vpop.f32.mrf.mxu0
      %v1336 = vadd.f32 %v1293, %v1335
      %1337 = vdwg.mxu0
      %v1338 = vld [vmem:[%s13] sm:$0xf]
      %v1339 = vld [vmem:[%s13 + $0x4] sm:$0xf]
      %v1340 = vld [vmem:[%s13 + $0x8] sm:$0xf]
      %v1341 = vld [vmem:[%s13 + $0xc] sm:$0xf]
      %v1342 = vld [vmem:[%s15] sm:$0x1]
      %v1347 = vunpack.c.l.b16 %v1338
      %v1348 = vunpack.c.l.b16 %v1339
      %v1349 = vunpack.c.l.b16 %v1340
      %v1350 = vunpack.c.l.b16 %v1341
      %v1351 = vpack.c.b16 %v1348, %v1347
      %v1352 = vpack.c.b16 %v1350, %v1349
      %vm1355 = vcmask 261120
      %v1357 = vsel %vm1355, %v1287, 0
      %1359 = vmatpush.bf16.msra.mxu0 0
      %1360 = vmatpush.bf16.msra.mxu0 0
      %1361 = vmatpush.bf16.msra.mxu0 0
      %1362 = vmatpush.bf16.msra.mxu0 0
      %1363 = vmatpush.bf16.msra.mxu0 0
      %1364 = vmatpush.bf16.msra.mxu0 0
      %1365 = vmatpush.bf16.msra.mxu0 %v1352
      %1366 = vmatpush.bf16.msra.mxu0 %v1351
      %1367 = vmatmul.bf16.gmra.mxu0 %v1357
      %v1368 = vpop.f32.mrf.mxu0
      %v1369 = vadd.f32 %v1342, %v1368
      %v1370 = vpop.f32.mrf.mxu0
      %1371 = vdwg.mxu0
      %v1372 = vld [vmem:[%s67] sm:$0xf]
      %v1373 = vld [vmem:[%s67 + $0x4] sm:$0xf]
      %v1374 = vld [vmem:[%s67 + $0x8] sm:$0xf]
      %v1375 = vld [vmem:[%s67 + $0xc] sm:$0xf]
      %v1376 = vld [vmem:[%s69] sm:$0x1]
      %v1381 = vunpack.c.l.b16 %v1372
      %v1382 = vunpack.c.l.b16 %v1373
      %v1383 = vunpack.c.l.b16 %v1374
      %v1384 = vunpack.c.l.b16 %v1375
      %v1385 = vpack.c.b16 %v1382, %v1381
      %v1386 = vpack.c.b16 %v1384, %v1383
      %1389 = vmatpush.bf16.msra.mxu0 0
      %1390 = vmatpush.bf16.msra.mxu0 0
      %1391 = vmatpush.bf16.msra.mxu0 0
      %1392 = vmatpush.bf16.msra.mxu0 0
      %1393 = vmatpush.bf16.msra.mxu0 0
      %1394 = vmatpush.bf16.msra.mxu0 0
      %1395 = vmatpush.bf16.msra.mxu0 %v1386
      %1396 = vmatpush.bf16.msra.mxu0 %v1385
      %1397 = vmatmul.bf16.gmra.mxu0 %v1357
      %v1398 = vpop.f32.mrf.mxu0
      %v1399 = vadd.f32 %v1376, %v1398
      %v1400 = vpop.f32.mrf.mxu0
      %1401 = vdwg.mxu0
      %v1402 = vpack.c.bf16 %v1399, %v1399
      %v1403 = vld [vmem:[%s25] sm:$0xf]
      %v1404 = vld [vmem:[%s25 + $0x4] sm:$0xf]
      %v1405 = vld [vmem:[%s25 + $0x8] sm:$0xf]
      %v1406 = vld [vmem:[%s25 + $0xc] sm:$0xf]
      %v1407 = vld [vmem:[%s25 + $0x10] sm:$0xf]
      %v1408 = vld [vmem:[%s25 + $0x14] sm:$0xf]
      %v1409 = vld [vmem:[%s25 + $0x18] sm:$0xf]
      %v1410 = vld [vmem:[%s25 + $0x1c] sm:$0xf]
      %v1411 = vld [vmem:[%s27] sm:$0x1]
      %v1420 = vunpack.c.l.b16 %v1403
      %v1421 = vunpack.c.l.b16 %v1404
      %v1422 = vunpack.c.l.b16 %v1405
      %v1423 = vunpack.c.l.b16 %v1406
      %v1424 = vunpack.c.l.b16 %v1407
      %v1425 = vunpack.c.l.b16 %v1408
      %v1426 = vunpack.c.l.b16 %v1409
      %v1427 = vunpack.c.l.b16 %v1410
      %v1428 = vpack.c.b16 %v1421, %v1420
      %v1429 = vpack.c.b16 %v1423, %v1422
      %v1430 = vpack.c.b16 %v1425, %v1424
      %v1431 = vpack.c.b16 %v1427, %v1426
      %vm1436 = vcmask 523264
      %v1438 = vsel %vm1436, %v1402, 0
      %1440 = vmatpush.bf16.msra.mxu0 0
      %1441 = vmatpush.bf16.msra.mxu0 0
      %1442 = vmatpush.bf16.msra.mxu0 0
      %1443 = vmatpush.bf16.msra.mxu0 0
      %1444 = vmatpush.bf16.msra.mxu0 %v1431
      %1445 = vmatpush.bf16.msra.mxu0 %v1430
      %1446 = vmatpush.bf16.msra.mxu0 %v1429
      %1447 = vmatpush.bf16.msra.mxu0 %v1428
      %1448 = vmatmul.bf16.gmra.mxu0 %v1438
      %v1449 = vpop.f32.mrf.mxu0
      %v1450 = vadd.f32 %v1411, %v1449
      %v1451 = vpop.f32.mrf.mxu0
      %1452 = vdwg.mxu0
      %v1453 = vld [vmem:[%s29] sm:$0xf]
      %v1454 = vld [vmem:[%s29 + $0x4] sm:$0xf]
      %v1455 = vld [vmem:[%s31] sm:$0x1]
      %v1457 = vperm.slane %v1455, 0
      %v1461 = vunpack.c.l.b16 %v1453
      %v1462 = vunpack.c.l.b16 %v1454
      %v1463 = vpack.c.b16 %v1462, %v1461
      %1465 = vmatpush.bf16.msra.mxu0 0
      %1466 = vmatpush.bf16.msra.mxu0 0
      %1467 = vmatpush.bf16.msra.mxu0 0
      %1468 = vmatpush.bf16.msra.mxu0 0
      %1469 = vmatpush.bf16.msra.mxu0 0
      %1470 = vmatpush.bf16.msra.mxu0 0
      %1471 = vmatpush.bf16.msra.mxu0 0
      %1472 = vmatpush.bf16.msra.mxu0 %v1463
      %1473 = vmatmul.bf16.gmra.mxu0 %v1308
      %v1474 = vpop.f32.mrf.mxu0
      %v1475 = vadd.f32 %v1457, %v1474
      %v1476 = vpop.f32.mrf.mxu0
      %v1477 = vadd.f32 %v1457, %v1476
      %1478 = vdwg.mxu0
      %v1479 = vperm.slane %v1369, 0
      %v1480 = vadd.f32 %v1279, %v1479
      %v1481 = vadd.f32 %v1280, %v1479
      %vm1484 = vcmask 1046528
      %v1485 = vrot.slane %v1480, 1
      %v1486 = vrot.slane %v1481, 1
      %v1487 = vsel %vm1484, %v1485, %v1486
      %1488 = vrot.lane.b32.xlu0 %v1485, 32
      %v1489 = vpop.permute.xlu0 %1488
      %1490 = vrot.lane.b32.xlu0 %v1487, 32
      %v1491 = vpop.permute.xlu0 %1490
      %1492 = vrot.lane.b32.xlu0 %v1486, 32
      %v1493 = vpop.permute.xlu0 %1492
      %vm1498 = vcmask 1045504
      %v1499 = vrot.slane %v1480, 2
      %v1500 = vrot.slane %v1481, 2
      %v1501 = vsel %vm1498, %v1499, %v1500
      %v1502 = vrot.slane 0.0, 2
      %v1503 = vsel %vm1498, %v1500, %v1502
      %1504 = vrot.lane.b32.xlu0 %v1499, 64
      %v1505 = vpop.permute.xlu0 %1504
      %1506 = vrot.lane.b32.xlu0 %v1501, 64
      %v1507 = vpop.permute.xlu0 %1506
      %1508 = vrot.lane.b32.xlu0 %v1503, 64
      %v1509 = vpop.permute.xlu0 %1508
      %v1513 = vsel %vm1355, 0.0, %v1489
      %v1514 = vsel %vm1355, %v1480, %v1491
      %v1515 = vsel %vm1355, %v1481, %v1493
      %v1516 = vsel %vm1436, %v1513, %v1505
      %v1517 = vsel %vm1436, %v1514, %v1507
      %v1518 = vsel %vm1436, %v1515, %v1509
      %v1519 = vpack.c.bf16 %v1517, %v1516
      %v1520 = vpack.c.bf16 %v1518, %v1518
      %v1521 = vld [vmem:[%s11] sm:$0x1]
      %v1523 = vperm.slane %v1521, 0
      %v1525 = vadd.f32 %v1320, %v1523
      %v1526 = vadd.f32 %v1322, %v1523
      %v1527 = vld [vmem:[%s9] sm:$0xf]
      %v1528 = vld [vmem:[%s9 + $0x4] sm:$0xf]
      %v1529 = vld [vmem:[%s9 + $0x8] sm:$0xf]
      %v1530 = vld [vmem:[%s9 + $0xc] sm:$0xf]
      %v1531 = vld [vmem:[%s9 + $0x10] sm:$0xf]
      %v1532 = vld [vmem:[%s9 + $0x14] sm:$0xf]
      %v1533 = vld [vmem:[%s9 + $0x18] sm:$0xf]
      %v1534 = vld [vmem:[%s9 + $0x1c] sm:$0xf]
      %v1535 = vld [vmem:[%s9 + $0x20] sm:$0xf]
      %v1536 = vld [vmem:[%s9 + $0x24] sm:$0xf]
      %v1537 = vld [vmem:[%s9 + $0x28] sm:$0xf]
      %v1538 = vld [vmem:[%s9 + $0x2c] sm:$0xf]
      %vm1539 = vsmask.f32 4352
      %v1541 = vshrl.u32 %v1519, 16
      %v1543 = vrot.slane %v1541, 3
      %v1544 = vshll.u32 %v1519, 16
      %v1546 = vrot.slane %v1544, 4
      %v1547 = vor.u32 %v1543, %v1546
      %v1549 = vshrl.u32 %v1520, 16
      %v1551 = vrot.slane %v1549, 3
      %v1552 = vshll.u32 %v1520, 16
      %v1554 = vrot.slane %v1552, 4
      %v1555 = vor.u32 %v1551, %v1554
      %v1556 = vsel %vm1539, %v1547, %v1555
      %v1569 = vunpack.c.l.b16 %v1527
      %v1570 = vunpack.c.l.b16 %v1528
      %v1571 = vunpack.c.l.b16 %v1529
      %v1572 = vunpack.c.l.b16 %v1530
      %v1573 = vunpack.c.l.b16 %v1531
      %v1574 = vunpack.c.l.b16 %v1532
      %v1575 = vunpack.c.l.b16 %v1533
      %v1576 = vunpack.c.l.b16 %v1534
      %v1577 = vunpack.c.l.b16 %v1535
      %v1578 = vunpack.c.l.b16 %v1536
      %v1579 = vunpack.c.l.b16 %v1537
      %v1580 = vunpack.c.l.b16 %v1538
      %v1581 = vpack.c.b16 %v1570, %v1569
      %v1582 = vpack.c.b16 %v1572, %v1571
      %v1583 = vpack.c.b16 %v1574, %v1573
      %v1584 = vpack.c.b16 %v1576, %v1575
      %v1585 = vpack.c.b16 %v1578, %v1577
      %v1586 = vpack.c.b16 %v1580, %v1579
      %vm1593 = vcmask 785408
      %v1595 = vsel %vm1593, %v1556, 0
      %1597 = vmatpush.bf16.msra.mxu0 0
      %1598 = vmatpush.bf16.msra.mxu0 0
      %1599 = vmatpush.bf16.msra.mxu0 %v1586
      %1600 = vmatpush.bf16.msra.mxu0 %v1585
      %1601 = vmatpush.bf16.msra.mxu0 %v1584
      %1602 = vmatpush.bf16.msra.mxu0 %v1583
      %1603 = vmatpush.bf16.msra.mxu0 %v1582
      %1604 = vmatpush.bf16.msra.mxu0 %v1581
      %1605 = vmatmul.bf16.gmra.mxu0 %v1595
      %v1606 = vpop.f32.mrf.mxu0
      %v1607 = vadd.f32 0.0, %v1606
      %v1608 = vpop.f32.mrf.mxu0
      %v1609 = vadd.f32 0.0, %v1608
      %1610 = vdwg.mxu0
      %v1611 = vadd.f32 %v1525, %v1607
      %v1612 = vadd.f32 %v1526, %v1609
      %v1613 = vxor.u32 %v1611, 2147483648
      %v1614 = vxor.u32 %v1612, 2147483648
      %v1615 = vmul.f32 %v1613, 1.442695
      %v1616 = vpow.pop %v1615
      %v1617 = vmul.f32 %v1614, 1.442695
      %v1618 = vpow.pop %v1617
      %v1619 = vadd.f32 %v1616, 1.0
      %v1620 = vadd.f32 %v1618, 1.0
      %v1621 = vrcp.pop %v1619
      %v1622 = vmul.f32 %v1619, %v1621
      %v1623 = vsub.f32 1.0, %v1622
      %v1624 = vmul.f32 %v1621, %v1623
      %v1625 = vadd.f32 %v1621, %v1624
      %vm1626 = vweird.f32 %v1619
      %vm1627 = vweird.f32 %v1621
      %vm1628 = vmor %vm1626, %vm1627
      %v1629 = vsel %vm1628, %v1621, %v1625
      %v1630 = vand.u32 2147483647, %v1619
      %vm1631 = vcmp.eq.f32.partialorder %v1630, 8.507059e+37
      %v1632 = vand.u32 %v1619, 2147483648
      %v1633 = vor.u32 1.1754944e-38, %v1632
      %v1634 = vsel %vm1631, %v1633, %v1629
      %v1635 = vmul.f32 1.0, %v1634
      %v1636 = vrcp.pop %v1620
      %v1637 = vmul.f32 %v1620, %v1636
      %v1638 = vsub.f32 1.0, %v1637
      %v1639 = vmul.f32 %v1636, %v1638
      %v1640 = vadd.f32 %v1636, %v1639
      %vm1641 = vweird.f32 %v1620
      %vm1642 = vweird.f32 %v1636
      %vm1643 = vmor %vm1641, %vm1642
      %v1644 = vsel %vm1643, %v1636, %v1640
      %v1645 = vand.u32 2147483647, %v1620
      %vm1646 = vcmp.eq.f32.partialorder %v1645, 8.507059e+37
      %v1647 = vand.u32 %v1620, 2147483648
      %v1648 = vor.u32 1.1754944e-38, %v1647
      %v1649 = vsel %vm1646, %v1648, %v1644
      %v1650 = vmul.f32 1.0, %v1649
      %v1651 = vtanh.pop %v1611
      %v1652 = vtanh.pop %v1612
      %1655 = vrot.lane.b32.xlu0 %v1651, 96
      %v1656 = vpop.permute.xlu0 %1655
      %1657 = vrot.lane.b32.xlu0 %v1652, 96
      %v1658 = vpop.permute.xlu0 %1657
      %v1661 = vmul.f32 %v1635, %v1656
      %v1662 = vmul.f32 %v1650, %v1658
      %v1663 = vpack.c.bf16 %v1662, %v1661
      %v1664 = vld [vmem:[%s21] sm:$0xf]
      %v1665 = vld [vmem:[%s21 + $0x4] sm:$0xf]
      %v1666 = vld [vmem:[%s21 + $0x8] sm:$0xf]
      %v1667 = vld [vmem:[%s21 + $0xc] sm:$0xf]
      %v1668 = vld [vmem:[%s23] sm:$0x1]
      %v1670 = vperm.slane %v1668, 0
      %v1676 = vunpack.c.l.b16 %v1664
      %v1677 = vunpack.c.l.b16 %v1665
      %v1678 = vunpack.c.l.b16 %v1666
      %v1679 = vunpack.c.l.b16 %v1667
      %v1680 = vpack.c.b16 %v1677, %v1676
      %v1681 = vpack.c.b16 %v1679, %v1678
      %v1685 = vsel %vm1355, %v1663, 0
      %1687 = vmatpush.bf16.msra.mxu0 0
      %1688 = vmatpush.bf16.msra.mxu0 0
      %1689 = vmatpush.bf16.msra.mxu0 0
      %1690 = vmatpush.bf16.msra.mxu0 0
      %1691 = vmatpush.bf16.msra.mxu0 0
      %1692 = vmatpush.bf16.msra.mxu0 0
      %1693 = vmatpush.bf16.msra.mxu0 %v1681
      %1694 = vmatpush.bf16.msra.mxu0 %v1680
      %1695 = vmatmul.bf16.gmra.mxu0 %v1685
      %v1696 = vpop.f32.mrf.mxu0
      %v1697 = vadd.f32 %v1670, %v1696
      %v1698 = vpop.f32.mrf.mxu0
      %v1699 = vadd.f32 %v1670, %v1698
      %1700 = vdwg.mxu0
      %v1701 = vadd.f32 %v1279, %v1697
      %v1702 = vadd.f32 %v1280, %v1699
      %v1703 = vmul.f32 %v1701, 0.70710677
      %v1704 = vmul.f32 %v1702, 0.70710677
      %v1705 = vadd.f32 %v1697, 0.0
      %v1706 = vadd.f32 %v1699, 0.0
      %1708 = vrot.lane.b32.xlu0 %v1479, 96
      %v1709 = vpop.permute.xlu0 %1708
      %v1711 = vadd.f32 %v1703, %v1709
      %v1712 = vadd.f32 %v1704, %v1709
      %v1715 = vrot.slane %v1711, 2
      %v1716 = vrot.slane %v1712, 2
      %v1717 = vsel %vm1498, %v1715, %v1716
      %1718 = vrot.lane.b32.xlu0 %v1715, 32
      %v1719 = vpop.permute.xlu0 %1718
      %1720 = vrot.lane.b32.xlu0 %v1717, 32
      %v1721 = vpop.permute.xlu0 %1720
      %1722 = vrot.lane.b32.xlu0 %v1716, 32
      %v1723 = vpop.permute.xlu0 %1722
      %vm1727 = vcmask 1043456
      %v1728 = vrot.slane %v1711, 4
      %v1729 = vrot.slane %v1712, 4
      %v1730 = vsel %vm1727, %v1728, %v1729
      %v1731 = vrot.slane 0.0, 4
      %v1732 = vsel %vm1727, %v1729, %v1731
      %1733 = vrot.lane.b32.xlu0 %v1728, 64
      %v1734 = vpop.permute.xlu0 %1733
      %1735 = vrot.lane.b32.xlu0 %v1730, 64
      %v1736 = vpop.permute.xlu0 %1735
      %1737 = vrot.lane.b32.xlu0 %v1732, 64
      %v1738 = vpop.permute.xlu0 %1737
      %v1742 = vsel %vm1355, 0.0, %v1719
      %v1743 = vsel %vm1355, %v1711, %v1721
      %v1744 = vsel %vm1355, %v1712, %v1723
      %v1745 = vsel %vm1436, %v1742, %v1734
      %v1746 = vsel %vm1436, %v1743, %v1736
      %v1747 = vsel %vm1436, %v1744, %v1738
      %v1748 = vpack.c.bf16 %v1746, %v1745
      %v1749 = vpack.c.bf16 %v1747, %v1747
      %s1750 = scalar_lea.vmem %s11, 1
      %v1751 = vld [vmem:[%s1750] sm:$0x1]
      %v1753 = vperm.slane %v1751, 0
      %1754 = vrot.lane.b32.xlu0 %v1753, 64
      %v1755 = vpop.permute.xlu0 %1754
      %v1757 = vadd.f32 %v1320, %v1755
      %v1758 = vadd.f32 %v1322, %v1755
      %s1759 = scalar_lea.vmem %s9, 48
      %v1760 = vld [vmem:[%s1759] sm:$0xf]
      %v1761 = vld [vmem:[%s1759 + $0x4] sm:$0xf]
      %v1762 = vld [vmem:[%s1759 + $0x8] sm:$0xf]
      %v1763 = vld [vmem:[%s1759 + $0xc] sm:$0xf]
      %v1764 = vld [vmem:[%s1759 + $0x10] sm:$0xf]
      %v1765 = vld [vmem:[%s1759 + $0x14] sm:$0xf]
      %v1766 = vld [vmem:[%s1759 + $0x18] sm:$0xf]
      %v1767 = vld [vmem:[%s1759 + $0x1c] sm:$0xf]
      %v1768 = vld [vmem:[%s1759 + $0x20] sm:$0xf]
      %v1769 = vld [vmem:[%s1759 + $0x24] sm:$0xf]
      %v1770 = vld [vmem:[%s1759 + $0x28] sm:$0xf]
      %v1771 = vld [vmem:[%s1759 + $0x2c] sm:$0xf]
      %vm1774 = vcmask 1044480
      %v1775 = vrot.slane %v1748, 3
      %v1776 = vrot.slane %v1749, 3
      %v1777 = vsel %vm1774, %v1775, %v1776
      %v1790 = vunpack.c.l.b16 %v1760
      %v1791 = vunpack.c.l.b16 %v1761
      %v1792 = vunpack.c.l.b16 %v1762
      %v1793 = vunpack.c.l.b16 %v1763
      %v1794 = vunpack.c.l.b16 %v1764
      %v1795 = vunpack.c.l.b16 %v1765
      %v1796 = vunpack.c.l.b16 %v1766
      %v1797 = vunpack.c.l.b16 %v1767
      %v1798 = vunpack.c.l.b16 %v1768
      %v1799 = vunpack.c.l.b16 %v1769
      %v1800 = vunpack.c.l.b16 %v1770
      %v1801 = vunpack.c.l.b16 %v1771
      %v1802 = vpack.c.b16 %v1791, %v1790
      %v1803 = vpack.c.b16 %v1793, %v1792
      %v1804 = vpack.c.b16 %v1795, %v1794
      %v1805 = vpack.c.b16 %v1797, %v1796
      %v1806 = vpack.c.b16 %v1799, %v1798
      %v1807 = vpack.c.b16 %v1801, %v1800
      %v1815 = vsel %vm1593, %v1777, 0
      %1817 = vmatpush.bf16.msra.mxu0 0
      %1818 = vmatpush.bf16.msra.mxu0 0
      %1819 = vmatpush.bf16.msra.mxu0 %v1807
      %1820 = vmatpush.bf16.msra.mxu0 %v1806
      %1821 = vmatpush.bf16.msra.mxu0 %v1805
      %1822 = vmatpush.bf16.msra.mxu0 %v1804
      %1823 = vmatpush.bf16.msra.mxu0 %v1803
      %1824 = vmatpush.bf16.msra.mxu0 %v1802
      %1825 = vmatmul.bf16.gmra.mxu0 %v1815
      %v1826 = vpop.f32.mrf.mxu0
      %v1827 = vadd.f32 0.0, %v1826
      %v1828 = vpop.f32.mrf.mxu0
      %v1829 = vadd.f32 0.0, %v1828
      %1830 = vdwg.mxu0
      %1833 = vrot.lane.b32.xlu0 %v1827, 64
      %v1834 = vpop.permute.xlu0 %1833
      %1835 = vrot.lane.b32.xlu0 %v1829, 64
      %v1836 = vpop.permute.xlu0 %1835
      %v1839 = vadd.f32 %v1757, %v1834
      %v1840 = vadd.f32 %v1758, %v1836
      %v1841 = vxor.u32 %v1839, 2147483648
      %v1842 = vxor.u32 %v1840, 2147483648
      %v1843 = vmul.f32 %v1841, 1.442695
      %v1844 = vpow.pop %v1843
      %v1845 = vmul.f32 %v1842, 1.442695
      %v1846 = vpow.pop %v1845
      %v1847 = vadd.f32 %v1844, 1.0
      %v1848 = vadd.f32 %v1846, 1.0
      %v1849 = vrcp.pop %v1847
      %v1850 = vmul.f32 %v1847, %v1849
      %v1851 = vsub.f32 1.0, %v1850
      %v1852 = vmul.f32 %v1849, %v1851
      %v1853 = vadd.f32 %v1849, %v1852
      %vm1854 = vweird.f32 %v1847
      %vm1855 = vweird.f32 %v1849
      %vm1856 = vmor %vm1854, %vm1855
      %v1857 = vsel %vm1856, %v1849, %v1853
      %v1858 = vand.u32 2147483647, %v1847
      %vm1859 = vcmp.eq.f32.partialorder %v1858, 8.507059e+37
      %v1860 = vand.u32 %v1847, 2147483648
      %v1861 = vor.u32 1.1754944e-38, %v1860
      %v1862 = vsel %vm1859, %v1861, %v1857
      %v1863 = vmul.f32 1.0, %v1862
      %v1864 = vrcp.pop %v1848
      %v1865 = vmul.f32 %v1848, %v1864
      %v1866 = vsub.f32 1.0, %v1865
      %v1867 = vmul.f32 %v1864, %v1866
      %v1868 = vadd.f32 %v1864, %v1867
      %vm1869 = vweird.f32 %v1848
      %vm1870 = vweird.f32 %v1864
      %vm1871 = vmor %vm1869, %vm1870
      %v1872 = vsel %vm1871, %v1864, %v1868
      %v1873 = vand.u32 2147483647, %v1848
      %vm1874 = vcmp.eq.f32.partialorder %v1873, 8.507059e+37
      %v1875 = vand.u32 %v1848, 2147483648
      %v1876 = vor.u32 1.1754944e-38, %v1875
      %v1877 = vsel %vm1874, %v1876, %v1872
      %v1878 = vmul.f32 1.0, %v1877
      %v1879 = vtanh.pop %v1839
      %v1880 = vtanh.pop %v1840
      %1883 = vrot.lane.b32.xlu0 %v1879, 96
      %v1884 = vpop.permute.xlu0 %1883
      %1885 = vrot.lane.b32.xlu0 %v1880, 96
      %v1886 = vpop.permute.xlu0 %1885
      %v1889 = vmul.f32 %v1863, %v1884
      %v1890 = vmul.f32 %v1878, %v1886
      %v1891 = vpack.c.bf16 %v1890, %v1889
      %s1892 = scalar_lea.vmem %s21, 16
      %v1893 = vld [vmem:[%s1892] sm:$0xf]
      %v1894 = vld [vmem:[%s1892 + $0x4] sm:$0xf]
      %v1895 = vld [vmem:[%s1892 + $0x8] sm:$0xf]
      %v1896 = vld [vmem:[%s1892 + $0xc] sm:$0xf]
      %s1897 = scalar_lea.vmem %s23, 1
      %v1898 = vld [vmem:[%s1897] sm:$0x1]
      %v1900 = vperm.slane %v1898, 0
      %1903 = vrot.lane.b32.xlu0 %v1891, 64
      %v1904 = vpop.permute.xlu0 %1903
      %v1909 = vunpack.c.l.b16 %v1893
      %v1910 = vunpack.c.l.b16 %v1894
      %v1911 = vunpack.c.l.b16 %v1895
      %v1912 = vunpack.c.l.b16 %v1896
      %v1913 = vpack.c.b16 %v1910, %v1909
      %v1914 = vpack.c.b16 %v1912, %v1911
      %v1918 = vsel %vm1355, %v1904, 0
      %1920 = vmatpush.bf16.msra.mxu0 0
      %1921 = vmatpush.bf16.msra.mxu0 0
      %1922 = vmatpush.bf16.msra.mxu0 0
      %1923 = vmatpush.bf16.msra.mxu0 0
      %1924 = vmatpush.bf16.msra.mxu0 0
      %1925 = vmatpush.bf16.msra.mxu0 0
      %1926 = vmatpush.bf16.msra.mxu0 %v1914
      %1927 = vmatpush.bf16.msra.mxu0 %v1913
      %1928 = vmatmul.bf16.gmra.mxu0 %v1918
      %v1929 = vpop.f32.mrf.mxu0
      %v1930 = vadd.f32 %v1900, %v1929
      %v1931 = vpop.f32.mrf.mxu0
      %v1932 = vadd.f32 %v1900, %v1931
      %1933 = vdwg.mxu0
      %v1934 = vadd.f32 %v1703, %v1930
      %v1935 = vadd.f32 %v1704, %v1932
      %v1936 = vmul.f32 %v1934, 0.70710677
      %v1937 = vmul.f32 %v1935, 0.70710677
      %v1938 = vadd.f32 %v1705, %v1930
      %v1939 = vadd.f32 %v1706, %v1932
      %1940 = vrot.lane.b32.xlu0 %v1479, 64
      %v1941 = vpop.permute.xlu0 %1940
      %v1943 = vadd.f32 %v1936, %v1941
      %v1944 = vadd.f32 %v1937, %v1941
      %v1947 = vrot.slane %v1943, 4
      %v1948 = vrot.slane %v1944, 4
      %v1949 = vsel %vm1727, %v1947, %v1948
      %1950 = vrot.lane.b32.xlu0 %v1947, 32
      %v1951 = vpop.permute.xlu0 %1950
      %1952 = vrot.lane.b32.xlu0 %v1949, 32
      %v1953 = vpop.permute.xlu0 %1952
      %1954 = vrot.lane.b32.xlu0 %v1948, 32
      %v1955 = vpop.permute.xlu0 %1954
      %1959 = vrot.lane.b32.xlu0 %v1943, 64
      %v1960 = vpop.permute.xlu0 %1959
      %1961 = vrot.lane.b32.xlu0 %v1944, 64
      %v1962 = vpop.permute.xlu0 %1961
      %1963 = vrot.lane.b32.xlu0 0.0, 64
      %v1964 = vpop.permute.xlu0 %1963
      %v1968 = vsel %vm1355, 0.0, %v1951
      %v1969 = vsel %vm1355, %v1943, %v1953
      %v1970 = vsel %vm1355, %v1944, %v1955
      %v1971 = vsel %vm1436, %v1968, %v1960
      %v1972 = vsel %vm1436, %v1969, %v1962
      %v1973 = vsel %vm1436, %v1970, %v1964
      %v1974 = vpack.c.bf16 %v1972, %v1971
      %v1975 = vpack.c.bf16 %v1973, %v1973
      %s1976 = scalar_lea.vmem %s11, 2
      %v1977 = vld [vmem:[%s1976] sm:$0x1]
      %v1979 = vperm.slane %v1977, 0
      %v1981 = vadd.f32 %v1334, %v1979
      %v1982 = vadd.f32 %v1336, %v1979
      %s1983 = scalar_lea.vmem %s9, 96
      %v1984 = vld [vmem:[%s1983] sm:$0xf]
      %v1985 = vld [vmem:[%s1983 + $0x4] sm:$0xf]
      %v1986 = vld [vmem:[%s1983 + $0x8] sm:$0xf]
      %v1987 = vld [vmem:[%s1983 + $0xc] sm:$0xf]
      %v1988 = vld [vmem:[%s1983 + $0x10] sm:$0xf]
      %v1989 = vld [vmem:[%s1983 + $0x14] sm:$0xf]
      %v1990 = vld [vmem:[%s1983 + $0x18] sm:$0xf]
      %v1991 = vld [vmem:[%s1983 + $0x1c] sm:$0xf]
      %v1992 = vld [vmem:[%s1983 + $0x20] sm:$0xf]
      %v1993 = vld [vmem:[%s1983 + $0x24] sm:$0xf]
      %v1994 = vld [vmem:[%s1983 + $0x28] sm:$0xf]
      %v1995 = vld [vmem:[%s1983 + $0x2c] sm:$0xf]
      %vm1998 = vcmask 1045504
      %v1999 = vrot.slane %v1974, 2
      %v2000 = vrot.slane %v1975, 2
      %v2001 = vsel %vm1998, %v1999, %v2000
      %v2014 = vunpack.c.l.b16 %v1984
      %v2015 = vunpack.c.l.b16 %v1985
      %v2016 = vunpack.c.l.b16 %v1986
      %v2017 = vunpack.c.l.b16 %v1987
      %v2018 = vunpack.c.l.b16 %v1988
      %v2019 = vunpack.c.l.b16 %v1989
      %v2020 = vunpack.c.l.b16 %v1990
      %v2021 = vunpack.c.l.b16 %v1991
      %v2022 = vunpack.c.l.b16 %v1992
      %v2023 = vunpack.c.l.b16 %v1993
      %v2024 = vunpack.c.l.b16 %v1994
      %v2025 = vunpack.c.l.b16 %v1995
      %v2026 = vpack.c.b16 %v2015, %v2014
      %v2027 = vpack.c.b16 %v2017, %v2016
      %v2028 = vpack.c.b16 %v2019, %v2018
      %v2029 = vpack.c.b16 %v2021, %v2020
      %v2030 = vpack.c.b16 %v2023, %v2022
      %v2031 = vpack.c.b16 %v2025, %v2024
      %v2039 = vsel %vm1593, %v2001, 0
      %2041 = vmatpush.bf16.msra.mxu0 0
      %2042 = vmatpush.bf16.msra.mxu0 0
      %2043 = vmatpush.bf16.msra.mxu0 %v2031
      %2044 = vmatpush.bf16.msra.mxu0 %v2030
      %2045 = vmatpush.bf16.msra.mxu0 %v2029
      %2046 = vmatpush.bf16.msra.mxu0 %v2028
      %2047 = vmatpush.bf16.msra.mxu0 %v2027
      %2048 = vmatpush.bf16.msra.mxu0 %v2026
      %2049 = vmatmul.bf16.gmra.mxu0 %v2039
      %v2050 = vpop.f32.mrf.mxu0
      %v2051 = vadd.f32 0.0, %v2050
      %v2052 = vpop.f32.mrf.mxu0
      %v2053 = vadd.f32 0.0, %v2052
      %2054 = vdwg.mxu0
      %v2055 = vadd.f32 %v1981, %v2051
      %v2056 = vadd.f32 %v1982, %v2053
      %v2057 = vxor.u32 %v2055, 2147483648
      %v2058 = vxor.u32 %v2056, 2147483648
      %v2059 = vmul.f32 %v2057, 1.442695
      %v2060 = vpow.pop %v2059
      %v2061 = vmul.f32 %v2058, 1.442695
      %v2062 = vpow.pop %v2061
      %v2063 = vadd.f32 %v2060, 1.0
      %v2064 = vadd.f32 %v2062, 1.0
      %v2065 = vrcp.pop %v2063
      %v2066 = vmul.f32 %v2063, %v2065
      %v2067 = vsub.f32 1.0, %v2066
      %v2068 = vmul.f32 %v2065, %v2067
      %v2069 = vadd.f32 %v2065, %v2068
      %vm2070 = vweird.f32 %v2063
      %vm2071 = vweird.f32 %v2065
      %vm2072 = vmor %vm2070, %vm2071
      %v2073 = vsel %vm2072, %v2065, %v2069
      %v2074 = vand.u32 2147483647, %v2063
      %vm2075 = vcmp.eq.f32.partialorder %v2074, 8.507059e+37
      %v2076 = vand.u32 %v2063, 2147483648
      %v2077 = vor.u32 1.1754944e-38, %v2076
      %v2078 = vsel %vm2075, %v2077, %v2073
      %v2079 = vmul.f32 1.0, %v2078
      %v2080 = vrcp.pop %v2064
      %v2081 = vmul.f32 %v2064, %v2080
      %v2082 = vsub.f32 1.0, %v2081
      %v2083 = vmul.f32 %v2080, %v2082
      %v2084 = vadd.f32 %v2080, %v2083
      %vm2085 = vweird.f32 %v2064
      %vm2086 = vweird.f32 %v2080
      %vm2087 = vmor %vm2085, %vm2086
      %v2088 = vsel %vm2087, %v2080, %v2084
      %v2089 = vand.u32 2147483647, %v2064
      %vm2090 = vcmp.eq.f32.partialorder %v2089, 8.507059e+37
      %v2091 = vand.u32 %v2064, 2147483648
      %v2092 = vor.u32 1.1754944e-38, %v2091
      %v2093 = vsel %vm2090, %v2092, %v2088
      %v2094 = vmul.f32 1.0, %v2093
      %v2095 = vtanh.pop %v2055
      %v2096 = vtanh.pop %v2056
      %2099 = vrot.lane.b32.xlu0 %v2095, 96
      %v2100 = vpop.permute.xlu0 %2099
      %2101 = vrot.lane.b32.xlu0 %v2096, 96
      %v2102 = vpop.permute.xlu0 %2101
      %v2105 = vmul.f32 %v2079, %v2100
      %v2106 = vmul.f32 %v2094, %v2102
      %v2107 = vpack.c.bf16 %v2106, %v2105
      %s2108 = scalar_lea.vmem %s21, 32
      %v2109 = vld [vmem:[%s2108] sm:$0xf]
      %v2110 = vld [vmem:[%s2108 + $0x4] sm:$0xf]
      %v2111 = vld [vmem:[%s2108 + $0x8] sm:$0xf]
      %v2112 = vld [vmem:[%s2108 + $0xc] sm:$0xf]
      %s2113 = scalar_lea.vmem %s23, 2
      %v2114 = vld [vmem:[%s2113] sm:$0x1]
      %v2116 = vperm.slane %v2114, 0
      %v2122 = vunpack.c.l.b16 %v2109
      %v2123 = vunpack.c.l.b16 %v2110
      %v2124 = vunpack.c.l.b16 %v2111
      %v2125 = vunpack.c.l.b16 %v2112
      %v2126 = vpack.c.b16 %v2123, %v2122
      %v2127 = vpack.c.b16 %v2125, %v2124
      %v2131 = vsel %vm1355, %v2107, 0
      %2133 = vmatpush.bf16.msra.mxu0 0
      %2134 = vmatpush.bf16.msra.mxu0 0
      %2135 = vmatpush.bf16.msra.mxu0 0
      %2136 = vmatpush.bf16.msra.mxu0 0
      %2137 = vmatpush.bf16.msra.mxu0 0
      %2138 = vmatpush.bf16.msra.mxu0 0
      %2139 = vmatpush.bf16.msra.mxu0 %v2127
      %2140 = vmatpush.bf16.msra.mxu0 %v2126
      %2141 = vmatmul.bf16.gmra.mxu0 %v2131
      %v2142 = vpop.f32.mrf.mxu0
      %v2143 = vadd.f32 %v2116, %v2142
      %v2144 = vpop.f32.mrf.mxu0
      %v2145 = vadd.f32 %v2116, %v2144
      %2146 = vdwg.mxu0
      %v2147 = vadd.f32 %v1936, %v2143
      %v2148 = vadd.f32 %v1937, %v2145
      %v2149 = vmul.f32 %v2147, 0.70710677
      %v2150 = vmul.f32 %v2148, 0.70710677
      %v2151 = vadd.f32 %v1938, %v2143
      %v2152 = vadd.f32 %v1939, %v2145
      %2153 = vrot.lane.b32.xlu0 %v1479, 32
      %v2154 = vpop.permute.xlu0 %2153
      %v2156 = vadd.f32 %v2149, %v2154
      %v2157 = vadd.f32 %v2150, %v2154
      %2160 = vrot.lane.b32.xlu0 %v2156, 32
      %v2161 = vpop.permute.xlu0 %2160
      %2162 = vrot.lane.b32.xlu0 %v2157, 32
      %v2163 = vpop.permute.xlu0 %2162
      %2166 = vrot.lane.b32.xlu0 %v2157, 64
      %v2167 = vpop.permute.xlu0 %2166
      %v2169 = vsel %vm1355, 0.0, %v2161
      %v2170 = vsel %vm1355, %v2156, %v2163
      %v2171 = vsel %vm1436, %v2169, %v2167
      %v2172 = vsel %vm1436, %v2170, %v1964
      %v2173 = vpack.c.bf16 %v2172, %v2171
      %s2174 = scalar_lea.vmem %s11, 3
      %v2175 = vld [vmem:[%s2174] sm:$0x1]
      %v2177 = vperm.slane %v2175, 0
      %2178 = vrot.lane.b32.xlu0 %v2177, 64
      %v2179 = vpop.permute.xlu0 %2178
      %v2181 = vadd.f32 %v1334, %v2179
      %v2182 = vadd.f32 %v1336, %v2179
      %s2183 = scalar_lea.vmem %s9, 144
      %v2184 = vld [vmem:[%s2183] sm:$0xf]
      %v2185 = vld [vmem:[%s2183 + $0x4] sm:$0xf]
      %v2186 = vld [vmem:[%s2183 + $0x8] sm:$0xf]
      %v2187 = vld [vmem:[%s2183 + $0xc] sm:$0xf]
      %v2188 = vld [vmem:[%s2183 + $0x10] sm:$0xf]
      %v2189 = vld [vmem:[%s2183 + $0x14] sm:$0xf]
      %v2190 = vld [vmem:[%s2183 + $0x18] sm:$0xf]
      %v2191 = vld [vmem:[%s2183 + $0x1c] sm:$0xf]
      %v2192 = vld [vmem:[%s2183 + $0x20] sm:$0xf]
      %v2193 = vld [vmem:[%s2183 + $0x24] sm:$0xf]
      %v2194 = vld [vmem:[%s2183 + $0x28] sm:$0xf]
      %v2195 = vld [vmem:[%s2183 + $0x2c] sm:$0xf]
      %v2208 = vunpack.c.l.b16 %v2184
      %v2209 = vunpack.c.l.b16 %v2185
      %v2210 = vunpack.c.l.b16 %v2186
      %v2211 = vunpack.c.l.b16 %v2187
      %v2212 = vunpack.c.l.b16 %v2188
      %v2213 = vunpack.c.l.b16 %v2189
      %v2214 = vunpack.c.l.b16 %v2190
      %v2215 = vunpack.c.l.b16 %v2191
      %v2216 = vunpack.c.l.b16 %v2192
      %v2217 = vunpack.c.l.b16 %v2193
      %v2218 = vunpack.c.l.b16 %v2194
      %v2219 = vunpack.c.l.b16 %v2195
      %v2220 = vpack.c.b16 %v2209, %v2208
      %v2221 = vpack.c.b16 %v2211, %v2210
      %v2222 = vpack.c.b16 %v2213, %v2212
      %v2223 = vpack.c.b16 %v2215, %v2214
      %v2224 = vpack.c.b16 %v2217, %v2216
      %v2225 = vpack.c.b16 %v2219, %v2218
      %v2233 = vsel %vm1593, %v2173, 0
      %2235 = vmatpush.bf16.msra.mxu0 0
      %2236 = vmatpush.bf16.msra.mxu0 0
      %2237 = vmatpush.bf16.msra.mxu0 %v2225
      %2238 = vmatpush.bf16.msra.mxu0 %v2224
      %2239 = vmatpush.bf16.msra.mxu0 %v2223
      %2240 = vmatpush.bf16.msra.mxu0 %v2222
      %2241 = vmatpush.bf16.msra.mxu0 %v2221
      %2242 = vmatpush.bf16.msra.mxu0 %v2220
      %2243 = vmatmul.bf16.gmra.mxu0 %v2233
      %v2244 = vpop.f32.mrf.mxu0
      %v2245 = vadd.f32 0.0, %v2244
      %v2246 = vpop.f32.mrf.mxu0
      %v2247 = vadd.f32 0.0, %v2246
      %2248 = vdwg.mxu0
      %2251 = vrot.lane.b32.xlu0 %v2245, 64
      %v2252 = vpop.permute.xlu0 %2251
      %2253 = vrot.lane.b32.xlu0 %v2247, 64
      %v2254 = vpop.permute.xlu0 %2253
      %v2257 = vadd.f32 %v2181, %v2252
      %v2258 = vadd.f32 %v2182, %v2254
      %v2259 = vxor.u32 %v2257, 2147483648
      %v2260 = vxor.u32 %v2258, 2147483648
      %v2261 = vmul.f32 %v2259, 1.442695
      %v2262 = vpow.pop %v2261
      %v2263 = vmul.f32 %v2260, 1.442695
      %v2264 = vpow.pop %v2263
      %v2265 = vadd.f32 %v2262, 1.0
      %v2266 = vadd.f32 %v2264, 1.0
      %v2267 = vrcp.pop %v2265
      %v2268 = vmul.f32 %v2265, %v2267
      %v2269 = vsub.f32 1.0, %v2268
      %v2270 = vmul.f32 %v2267, %v2269
      %v2271 = vadd.f32 %v2267, %v2270
      %vm2272 = vweird.f32 %v2265
      %vm2273 = vweird.f32 %v2267
      %vm2274 = vmor %vm2272, %vm2273
      %v2275 = vsel %vm2274, %v2267, %v2271
      %v2276 = vand.u32 2147483647, %v2265
      %vm2277 = vcmp.eq.f32.partialorder %v2276, 8.507059e+37
      %v2278 = vand.u32 %v2265, 2147483648
      %v2279 = vor.u32 1.1754944e-38, %v2278
      %v2280 = vsel %vm2277, %v2279, %v2275
      %v2281 = vmul.f32 1.0, %v2280
      %v2282 = vrcp.pop %v2266
      %v2283 = vmul.f32 %v2266, %v2282
      %v2284 = vsub.f32 1.0, %v2283
      %v2285 = vmul.f32 %v2282, %v2284
      %v2286 = vadd.f32 %v2282, %v2285
      %vm2287 = vweird.f32 %v2266
      %vm2288 = vweird.f32 %v2282
      %vm2289 = vmor %vm2287, %vm2288
      %v2290 = vsel %vm2289, %v2282, %v2286
      %v2291 = vand.u32 2147483647, %v2266
      %vm2292 = vcmp.eq.f32.partialorder %v2291, 8.507059e+37
      %v2293 = vand.u32 %v2266, 2147483648
      %v2294 = vor.u32 1.1754944e-38, %v2293
      %v2295 = vsel %vm2292, %v2294, %v2290
      %v2296 = vmul.f32 1.0, %v2295
      %v2297 = vtanh.pop %v2257
      %v2298 = vtanh.pop %v2258
      %2301 = vrot.lane.b32.xlu0 %v2297, 96
      %v2302 = vpop.permute.xlu0 %2301
      %2303 = vrot.lane.b32.xlu0 %v2298, 96
      %v2304 = vpop.permute.xlu0 %2303
      %v2307 = vmul.f32 %v2281, %v2302
      %v2308 = vmul.f32 %v2296, %v2304
      %v2309 = vpack.c.bf16 %v2308, %v2307
      %s2310 = scalar_lea.vmem %s21, 48
      %v2311 = vld [vmem:[%s2310] sm:$0xf]
      %v2312 = vld [vmem:[%s2310 + $0x4] sm:$0xf]
      %v2313 = vld [vmem:[%s2310 + $0x8] sm:$0xf]
      %v2314 = vld [vmem:[%s2310 + $0xc] sm:$0xf]
      %s2315 = scalar_lea.vmem %s23, 3
      %v2316 = vld [vmem:[%s2315] sm:$0x1]
      %v2318 = vperm.slane %v2316, 0
      %2321 = vrot.lane.b32.xlu0 %v2309, 64
      %v2322 = vpop.permute.xlu0 %2321
      %v2327 = vunpack.c.l.b16 %v2311
      %v2328 = vunpack.c.l.b16 %v2312
      %v2329 = vunpack.c.l.b16 %v2313
      %v2330 = vunpack.c.l.b16 %v2314
      %v2331 = vpack.c.b16 %v2328, %v2327
      %v2332 = vpack.c.b16 %v2330, %v2329
      %v2336 = vsel %vm1355, %v2322, 0
      %2338 = vmatpush.bf16.msra.mxu0 0
      %2339 = vmatpush.bf16.msra.mxu0 0
      %2340 = vmatpush.bf16.msra.mxu0 0
      %2341 = vmatpush.bf16.msra.mxu0 0
      %2342 = vmatpush.bf16.msra.mxu0 0
      %2343 = vmatpush.bf16.msra.mxu0 0
      %2344 = vmatpush.bf16.msra.mxu0 %v2332
      %2345 = vmatpush.bf16.msra.mxu0 %v2331
      %2346 = vmatmul.bf16.gmra.mxu0 %v2336
      %v2347 = vpop.f32.mrf.mxu0
      %v2348 = vadd.f32 %v2318, %v2347
      %v2349 = vpop.f32.mrf.mxu0
      %v2350 = vadd.f32 %v2318, %v2349
      %2351 = vdwg.mxu0
      %v2352 = vadd.f32 %v2149, %v2348
      %v2353 = vadd.f32 %v2150, %v2350
      %v2354 = vmul.f32 %v2352, 0.70710677
      %v2355 = vmul.f32 %v2353, 0.70710677
      %v2356 = vadd.f32 %v2151, %v2348
      %v2357 = vadd.f32 %v2152, %v2350
      %v2358 = vmul.f32 %v2356, 0.5
      %v2359 = vmul.f32 %v2357, 0.5
      %v2360 = vperm.slane %v1450, 0
      %v2361 = vadd.f32 %v1281, %v2360
      %v2362 = vadd.f32 %v1282, %v2360
      %v2363 = vadd.f32 %v2361, %v1475
      %v2364 = vadd.f32 %v2362, %v1477
      %v2365 = vld [vmem:[%s33] sm:$0x1]
      %v2366 = vld [vmem:[%s35] sm:$0x1]
      %v2367 = vsel %vm1436, %v2363, 0.0
      %2368 = vadd.xlane.f32.xlu0 %v2367
      %v2369 = vpop.xlane.xlu0 %2368
      %v2370 = vsel %vm1436, %v2364, 0.0
      %2371 = vadd.xlane.f32.xlu0 %v2370
      %v2372 = vpop.xlane.xlu0 %2371
      %v2373 = vrcp.pop 64.0
      %v2374 = vmul.f32 64.0, %v2373
      %v2375 = vsub.f32 1.0, %v2374
      %v2376 = vmul.f32 %v2373, %v2375
      %v2377 = vadd.f32 %v2373, %v2376
      %vm2378 = vweird.f32 %v2373
      %v2379 = vsel %vm2378, %v2373, %v2377
      %v2380 = vmul.f32 %v2369, %v2379
      %v2381 = vmul.f32 %v2372, %v2379
      %v2382 = vsub.f32 %v2363, %v2380
      %v2383 = vsub.f32 %v2364, %v2381
      %v2384 = vmul.f32 %v2382, %v2382
      %v2385 = vmul.f32 %v2383, %v2383
      %v2386 = vsel %vm1436, %v2384, 0.0
      %2387 = vadd.xlane.f32.xlu0 %v2386
      %v2388 = vpop.xlane.xlu0 %2387
      %v2389 = vsel %vm1436, %v2385, 0.0
      %2390 = vadd.xlane.f32.xlu0 %v2389
      %v2391 = vpop.xlane.xlu0 %2390
      %v2392 = vmul.f32 %v2388, %v2379
      %v2393 = vmul.f32 %v2391, %v2379
      %v2394 = vadd.f32 %v2392, 1e-05
      %v2395 = vadd.f32 %v2393, 1e-05
      %v2396 = vrsqrt.pop %v2394
      %v2397 = vmul.f32 %v2396, %v2394
      %v2398 = vmul.f32 %v2397, %v2396
      %v2399 = vmul.f32 0.5, %v2398
      %v2400 = vsub.f32 1.5, %v2399
      %v2401 = vmul.f32 %v2396, %v2400
      %vm2402 = vweird.f32 %v2394
      %vm2403 = vweird.f32 %v2396
      %vm2404 = vmor %vm2402, %vm2403
      %v2405 = vsel %vm2404, %v2396, %v2401
      %v2406 = vrsqrt.pop %v2395
      %v2407 = vmul.f32 %v2406, %v2395
      %v2408 = vmul.f32 %v2407, %v2406
      %v2409 = vmul.f32 0.5, %v2408
      %v2410 = vsub.f32 1.5, %v2409
      %v2411 = vmul.f32 %v2406, %v2410
      %vm2412 = vweird.f32 %v2395
      %vm2413 = vweird.f32 %v2406
      %vm2414 = vmor %vm2412, %vm2413
      %v2415 = vsel %vm2414, %v2406, %v2411
      %v2416 = vmul.f32 %v2382, %v2405
      %v2417 = vmul.f32 %v2383, %v2415
      %v2419 = vperm.slane %v2365, 0
      %v2421 = vmul.f32 %v2416, %v2419
      %v2422 = vmul.f32 %v2417, %v2419
      %v2424 = vperm.slane %v2366, 0
      %v2426 = vadd.f32 %v2421, %v2424
      %v2427 = vadd.f32 %v2422, %v2424
      %v2428 = vpack.c.bf16 %v2427, %v2426
      %v2429 = vld [vmem:[%s37] sm:$0xff]
      %v2430 = vld [vmem:[%s37 + $0x8] sm:$0xff]
      %v2431 = vld [vmem:[%s37 + $0x10] sm:$0xff]
      %v2432 = vld [vmem:[%s37 + $0x18] sm:$0xff]
      %v2433 = vld [vmem:[%s37 + $0x20] sm:$0xff]
      %v2434 = vld [vmem:[%s37 + $0x28] sm:$0xff]
      %v2435 = vld [vmem:[%s37 + $0x30] sm:$0xff]
      %v2436 = vld [vmem:[%s37 + $0x38] sm:$0xff]
      %v2437 = vld [vmem:[%s39] sm:$0x3]
      %v2439 = vperm.slane %v2437, 0
      %v2440 = vperm.slane %v2437, 1
      %v2451 = vunpack.c.l.b16 %v2429
      %v2452 = vunpack.c.h.b16 %v2429
      %v2453 = vunpack.c.l.b16 %v2430
      %v2454 = vunpack.c.h.b16 %v2430
      %v2455 = vunpack.c.l.b16 %v2431
      %v2456 = vunpack.c.h.b16 %v2431
      %v2457 = vunpack.c.l.b16 %v2432
      %v2458 = vunpack.c.h.b16 %v2432
      %v2459 = vunpack.c.l.b16 %v2433
      %v2460 = vunpack.c.h.b16 %v2433
      %v2461 = vunpack.c.l.b16 %v2434
      %v2462 = vunpack.c.h.b16 %v2434
      %v2463 = vunpack.c.l.b16 %v2435
      %v2464 = vunpack.c.h.b16 %v2435
      %v2465 = vunpack.c.l.b16 %v2436
      %v2466 = vunpack.c.h.b16 %v2436
      %v2467 = vpack.c.b16 %v2453, %v2451
      %v2468 = vpack.c.b16 %v2454, %v2452
      %v2469 = vpack.c.b16 %v2457, %v2455
      %v2470 = vpack.c.b16 %v2458, %v2456
      %v2471 = vpack.c.b16 %v2461, %v2459
      %v2472 = vpack.c.b16 %v2462, %v2460
      %v2473 = vpack.c.b16 %v2465, %v2463
      %v2474 = vpack.c.b16 %v2466, %v2464
      %v2484 = vsel %vm1436, %v2428, 0
      %2486 = vmatpush.bf16.msra.mxu0 0
      %2487 = vmatpush.bf16.msra.mxu0 0
      %2488 = vmatpush.bf16.msra.mxu0 0
      %2489 = vmatpush.bf16.msra.mxu0 0
      %2490 = vmatpush.bf16.msra.mxu0 %v2473
      %2491 = vmatpush.bf16.msra.mxu0 %v2471
      %2492 = vmatpush.bf16.msra.mxu0 %v2469
      %2493 = vmatpush.bf16.msra.mxu0 %v2467
      %2494 = vmatmul.bf16.gmra.mxu0 %v2484
      %v2495 = vpop.f32.mrf.mxu0
      %v2496 = vadd.f32 %v2439, %v2495
      %v2497 = vpop.f32.mrf.mxu0
      %v2498 = vadd.f32 %v2439, %v2497
      %2499 = vdwg.mxu0
      %2500 = vmatpush.bf16.msra.mxu0 0
      %2501 = vmatpush.bf16.msra.mxu0 0
      %2502 = vmatpush.bf16.msra.mxu0 0
      %2503 = vmatpush.bf16.msra.mxu0 0
      %2504 = vmatpush.bf16.msra.mxu0 %v2474
      %2505 = vmatpush.bf16.msra.mxu0 %v2472
      %2506 = vmatpush.bf16.msra.mxu0 %v2470
      %2507 = vmatpush.bf16.msra.mxu0 %v2468
      %2508 = vmatmul.bf16.gmra.mxu0 %v2484
      %v2509 = vpop.f32.mrf.mxu0
      %v2510 = vadd.f32 %v2440, %v2509
      %v2511 = vpop.f32.mrf.mxu0
      %v2512 = vadd.f32 %v2440, %v2511
      %2513 = vdwg.mxu0
      %v2514 = vxor.u32 %v2510, 2147483648
      %v2515 = vxor.u32 %v2512, 2147483648
      %v2516 = vmul.f32 %v2514, 1.442695
      %v2517 = vpow.pop %v2516
      %v2518 = vmul.f32 %v2515, 1.442695
      %v2519 = vpow.pop %v2518
      %v2520 = vadd.f32 %v2517, 1.0
      %v2521 = vadd.f32 %v2519, 1.0
      %v2522 = vrcp.pop %v2520
      %v2523 = vmul.f32 %v2520, %v2522
      %v2524 = vsub.f32 1.0, %v2523
      %v2525 = vmul.f32 %v2522, %v2524
      %v2526 = vadd.f32 %v2522, %v2525
      %vm2527 = vweird.f32 %v2520
      %vm2528 = vweird.f32 %v2522
      %vm2529 = vmor %vm2527, %vm2528
      %v2530 = vsel %vm2529, %v2522, %v2526
      %v2531 = vand.u32 2147483647, %v2520
      %vm2532 = vcmp.eq.f32.partialorder %v2531, 8.507059e+37
      %v2533 = vand.u32 %v2520, 2147483648
      %v2534 = vor.u32 1.1754944e-38, %v2533
      %v2535 = vsel %vm2532, %v2534, %v2530
      %v2536 = vmul.f32 1.0, %v2535
      %v2537 = vrcp.pop %v2521
      %v2538 = vmul.f32 %v2521, %v2537
      %v2539 = vsub.f32 1.0, %v2538
      %v2540 = vmul.f32 %v2537, %v2539
      %v2541 = vadd.f32 %v2537, %v2540
      %vm2542 = vweird.f32 %v2521
      %vm2543 = vweird.f32 %v2537
      %vm2544 = vmor %vm2542, %vm2543
      %v2545 = vsel %vm2544, %v2537, %v2541
      %v2546 = vand.u32 2147483647, %v2521
      %vm2547 = vcmp.eq.f32.partialorder %v2546, 8.507059e+37
      %v2548 = vand.u32 %v2521, 2147483648
      %v2549 = vor.u32 1.1754944e-38, %v2548
      %v2550 = vsel %vm2547, %v2549, %v2545
      %v2551 = vmul.f32 1.0, %v2550
      %v2552 = vmul.f32 %v2496, %v2536
      %v2553 = vmul.f32 %v2498, %v2551
      %v2554 = vld [vmem:[%s41] sm:$0xff]
      %v2555 = vld [vmem:[%s41 + $0x8] sm:$0xff]
      %v2556 = vld [vmem:[%s41 + $0x10] sm:$0xff]
      %v2557 = vld [vmem:[%s41 + $0x18] sm:$0x7f]
      %v2558 = vperm.slane %v2554, 0
      %v2559 = vmul.f32 %v2558, 0.0
      %v2560 = vmul.f32 %v2552, %v2558
      %v2561 = vadd.f32 %v2559, 0.0
      %v2562 = vadd.f32 %v2560, 0.0
      %v2563 = vperm.slane %v2554, 1
      %v2564 = vmul.f32 %v2563, 0.0
      %v2565 = vmul.f32 %v2552, %v2563
      %v2568 = vrot.slane %v2564, 1
      %v2569 = vsel %vm1484, %v2568, %v2568
      %v2570 = vrot.slane %v2565, 1
      %v2571 = vsel %vm1484, %v2568, %v2570
      %v2575 = vadd.f32 %v2561, %v2569
      %v2576 = vadd.f32 %v2561, %v2571
      %v2577 = vadd.f32 %v2562, %v2570
      %v2578 = vperm.slane %v2554, 2
      %v2579 = vmul.f32 %v2578, 0.0
      %v2580 = vmul.f32 %v2552, %v2578
      %v2583 = vrot.slane %v2579, 2
      %v2584 = vsel %vm1498, %v2583, %v2583
      %v2585 = vrot.slane %v2580, 2
      %v2586 = vsel %vm1498, %v2583, %v2585
      %v2590 = vadd.f32 %v2575, %v2584
      %v2591 = vadd.f32 %v2576, %v2586
      %v2592 = vadd.f32 %v2577, %v2585
      %v2593 = vperm.slane %v2554, 3
      %v2594 = vmul.f32 %v2593, 0.0
      %v2595 = vmul.f32 %v2552, %v2593
      %vm2598 = vcmask 1044480
      %v2599 = vrot.slane %v2594, 3
      %v2600 = vsel %vm2598, %v2599, %v2599
      %v2601 = vrot.slane %v2595, 3
      %v2602 = vsel %vm2598, %v2599, %v2601
      %v2606 = vadd.f32 %v2590, %v2600
      %v2607 = vadd.f32 %v2591, %v2602
      %v2608 = vadd.f32 %v2592, %v2601
      %v2609 = vperm.slane %v2554, 4
      %v2610 = vmul.f32 %v2609, 0.0
      %v2611 = vmul.f32 %v2552, %v2609
      %v2614 = vrot.slane %v2610, 4
      %v2615 = vsel %vm1727, %v2614, %v2614
      %v2616 = vrot.slane %v2611, 4
      %v2617 = vsel %vm1727, %v2614, %v2616
      %v2621 = vadd.f32 %v2606, %v2615
      %v2622 = vadd.f32 %v2607, %v2617
      %v2623 = vadd.f32 %v2608, %v2616
      %v2624 = vperm.slane %v2554, 5
      %v2625 = vmul.f32 %v2624, 0.0
      %v2626 = vmul.f32 %v2552, %v2624
      %vm2629 = vcmask 1042432
      %v2630 = vrot.slane %v2625, 5
      %v2631 = vsel %vm2629, %v2630, %v2630
      %v2632 = vrot.slane %v2626, 5
      %v2633 = vsel %vm2629, %v2630, %v2632
      %v2637 = vadd.f32 %v2621, %v2631
      %v2638 = vadd.f32 %v2622, %v2633
      %v2639 = vadd.f32 %v2623, %v2632
      %v2640 = vperm.slane %v2554, 6
      %v2641 = vmul.f32 %v2640, 0.0
      %v2642 = vmul.f32 %v2552, %v2640
      %vm2645 = vcmask 1041408
      %v2646 = vrot.slane %v2641, 6
      %v2647 = vsel %vm2645, %v2646, %v2646
      %v2648 = vrot.slane %v2642, 6
      %v2649 = vsel %vm2645, %v2646, %v2648
      %v2653 = vadd.f32 %v2637, %v2647
      %v2654 = vadd.f32 %v2638, %v2649
      %v2655 = vadd.f32 %v2639, %v2648
      %v2656 = vperm.slane %v2554, 7
      %v2657 = vmul.f32 %v2656, 0.0
      %v2658 = vmul.f32 %v2552, %v2656
      %vm2661 = vcmask 1040384
      %v2662 = vrot.slane %v2657, 7
      %v2663 = vrot.slane %v2658, 7
      %v2664 = vsel %vm2661, %v2662, %v2663
      %v2668 = vadd.f32 %v2653, %v2662
      %v2669 = vadd.f32 %v2654, %v2664
      %v2670 = vadd.f32 %v2655, %v2663
      %v2671 = vperm.slane %v2555, 0
      %v2672 = vmul.f32 %v2671, 0.0
      %v2673 = vmul.f32 %v2552, %v2671
      %v2674 = vmul.f32 %v2553, %v2671
      %v2675 = vadd.f32 %v2668, %v2672
      %v2676 = vadd.f32 %v2669, %v2673
      %v2677 = vadd.f32 %v2670, %v2674
      %v2678 = vperm.slane %v2555, 1
      %v2679 = vmul.f32 %v2678, 0.0
      %v2680 = vmul.f32 %v2552, %v2678
      %v2681 = vmul.f32 %v2553, %v2678
      %v2685 = vrot.slane %v2679, 1
      %v2686 = vrot.slane %v2680, 1
      %v2687 = vsel %vm1484, %v2685, %v2686
      %v2688 = vrot.slane %v2681, 1
      %v2689 = vsel %vm1484, %v2686, %v2688
      %v2693 = vadd.f32 %v2675, %v2687
      %v2694 = vadd.f32 %v2676, %v2689
      %v2695 = vadd.f32 %v2677, %v2688
      %v2696 = vperm.slane %v2555, 2
      %v2697 = vmul.f32 %v2696, 0.0
      %v2698 = vmul.f32 %v2552, %v2696
      %v2699 = vmul.f32 %v2553, %v2696
      %v2703 = vrot.slane %v2697, 2
      %v2704 = vrot.slane %v2698, 2
      %v2705 = vsel %vm1498, %v2703, %v2704
      %v2706 = vrot.slane %v2699, 2
      %v2707 = vsel %vm1498, %v2704, %v2706
      %v2711 = vadd.f32 %v2693, %v2705
      %v2712 = vadd.f32 %v2694, %v2707
      %v2713 = vadd.f32 %v2695, %v2706
      %v2714 = vperm.slane %v2555, 3
      %v2715 = vmul.f32 %v2714, 0.0
      %v2716 = vmul.f32 %v2552, %v2714
      %v2717 = vmul.f32 %v2553, %v2714
      %v2721 = vrot.slane %v2715, 3
      %v2722 = vrot.slane %v2716, 3
      %v2723 = vsel %vm2598, %v2721, %v2722
      %v2724 = vrot.slane %v2717, 3
      %v2725 = vsel %vm2598, %v2722, %v2724
      %v2729 = vadd.f32 %v2711, %v2723
      %v2730 = vadd.f32 %v2712, %v2725
      %v2731 = vadd.f32 %v2713, %v2724
      %v2732 = vperm.slane %v2555, 4
      %v2733 = vmul.f32 %v2732, 0.0
      %v2734 = vmul.f32 %v2552, %v2732
      %v2735 = vmul.f32 %v2553, %v2732
      %v2739 = vrot.slane %v2733, 4
      %v2740 = vrot.slane %v2734, 4
      %v2741 = vsel %vm1727, %v2739, %v2740
      %v2742 = vrot.slane %v2735, 4
      %v2743 = vsel %vm1727, %v2740, %v2742
      %v2747 = vadd.f32 %v2729, %v2741
      %v2748 = vadd.f32 %v2730, %v2743
      %v2749 = vadd.f32 %v2731, %v2742
      %v2750 = vperm.slane %v2555, 5
      %v2751 = vmul.f32 %v2750, 0.0
      %v2752 = vmul.f32 %v2552, %v2750
      %v2753 = vmul.f32 %v2553, %v2750
      %v2757 = vrot.slane %v2751, 5
      %v2758 = vrot.slane %v2752, 5
      %v2759 = vsel %vm2629, %v2757, %v2758
      %v2760 = vrot.slane %v2753, 5
      %v2761 = vsel %vm2629, %v2758, %v2760
      %v2765 = vadd.f32 %v2747, %v2759
      %v2766 = vadd.f32 %v2748, %v2761
      %v2767 = vadd.f32 %v2749, %v2760
      %v2768 = vperm.slane %v2555, 6
      %v2769 = vmul.f32 %v2768, 0.0
      %v2770 = vmul.f32 %v2552, %v2768
      %v2771 = vmul.f32 %v2553, %v2768
      %v2775 = vrot.slane %v2769, 6
      %v2776 = vrot.slane %v2770, 6
      %v2777 = vsel %vm2645, %v2775, %v2776
      %v2778 = vrot.slane %v2771, 6
      %v2779 = vsel %vm2645, %v2776, %v2778
      %v2783 = vadd.f32 %v2765, %v2777
      %v2784 = vadd.f32 %v2766, %v2779
      %v2785 = vadd.f32 %v2767, %v2778
      %v2786 = vperm.slane %v2555, 7
      %v2787 = vmul.f32 %v2552, %v2786
      %v2788 = vmul.f32 %v2553, %v2786
      %v2791 = vrot.slane %v2787, 7
      %v2792 = vrot.slane %v2788, 7
      %v2793 = vsel %vm2661, %v2791, %v2792
      %v2797 = vadd.f32 %v2783, %v2791
      %v2798 = vadd.f32 %v2784, %v2793
      %v2799 = vadd.f32 %v2785, %v2792
      %v2800 = vperm.slane %v2556, 0
      %v2801 = vmul.f32 %v2552, %v2800
      %v2802 = vmul.f32 %v2553, %v2800
      %v2803 = vmul.f32 %v2800, 0.0
      %v2804 = vadd.f32 %v2797, %v2801
      %v2805 = vadd.f32 %v2798, %v2802
      %v2806 = vadd.f32 %v2799, %v2803
      %v2807 = vperm.slane %v2556, 1
      %v2808 = vmul.f32 %v2552, %v2807
      %v2809 = vmul.f32 %v2553, %v2807
      %v2810 = vmul.f32 %v2807, 0.0
      %v2814 = vrot.slane %v2808, 1
      %v2815 = vrot.slane %v2809, 1
      %v2816 = vsel %vm1484, %v2814, %v2815
      %v2817 = vrot.slane %v2810, 1
      %v2818 = vsel %vm1484, %v2815, %v2817
      %v2822 = vadd.f32 %v2804, %v2816
      %v2823 = vadd.f32 %v2805, %v2818
      %v2824 = vadd.f32 %v2806, %v2817
      %v2825 = vperm.slane %v2556, 2
      %v2826 = vmul.f32 %v2552, %v2825
      %v2827 = vmul.f32 %v2553, %v2825
      %v2828 = vmul.f32 %v2825, 0.0
      %v2832 = vrot.slane %v2826, 2
      %v2833 = vrot.slane %v2827, 2
      %v2834 = vsel %vm1498, %v2832, %v2833
      %v2835 = vrot.slane %v2828, 2
      %v2836 = vsel %vm1498, %v2833, %v2835
      %v2840 = vadd.f32 %v2822, %v2834
      %v2841 = vadd.f32 %v2823, %v2836
      %v2842 = vadd.f32 %v2824, %v2835
      %v2843 = vperm.slane %v2556, 3
      %v2844 = vmul.f32 %v2552, %v2843
      %v2845 = vmul.f32 %v2553, %v2843
      %v2846 = vmul.f32 %v2843, 0.0
      %v2850 = vrot.slane %v2844, 3
      %v2851 = vrot.slane %v2845, 3
      %v2852 = vsel %vm2598, %v2850, %v2851
      %v2853 = vrot.slane %v2846, 3
      %v2854 = vsel %vm2598, %v2851, %v2853
      %v2858 = vadd.f32 %v2840, %v2852
      %v2859 = vadd.f32 %v2841, %v2854
      %v2860 = vadd.f32 %v2842, %v2853
      %v2861 = vperm.slane %v2556, 4
      %v2862 = vmul.f32 %v2552, %v2861
      %v2863 = vmul.f32 %v2553, %v2861
      %v2864 = vmul.f32 %v2861, 0.0
      %v2868 = vrot.slane %v2862, 4
      %v2869 = vrot.slane %v2863, 4
      %v2870 = vsel %vm1727, %v2868, %v2869
      %v2871 = vrot.slane %v2864, 4
      %v2872 = vsel %vm1727, %v2869, %v2871
      %v2876 = vadd.f32 %v2858, %v2870
      %v2877 = vadd.f32 %v2859, %v2872
      %v2878 = vadd.f32 %v2860, %v2871
      %v2879 = vperm.slane %v2556, 5
      %v2880 = vmul.f32 %v2552, %v2879
      %v2881 = vmul.f32 %v2553, %v2879
      %v2882 = vmul.f32 %v2879, 0.0
      %v2886 = vrot.slane %v2880, 5
      %v2887 = vrot.slane %v2881, 5
      %v2888 = vsel %vm2629, %v2886, %v2887
      %v2889 = vrot.slane %v2882, 5
      %v2890 = vsel %vm2629, %v2887, %v2889
      %v2894 = vadd.f32 %v2876, %v2888
      %v2895 = vadd.f32 %v2877, %v2890
      %v2896 = vadd.f32 %v2878, %v2889
      %v2897 = vperm.slane %v2556, 6
      %v2898 = vmul.f32 %v2552, %v2897
      %v2899 = vmul.f32 %v2553, %v2897
      %v2900 = vmul.f32 %v2897, 0.0
      %v2904 = vrot.slane %v2898, 6
      %v2905 = vrot.slane %v2899, 6
      %v2906 = vsel %vm2645, %v2904, %v2905
      %v2907 = vrot.slane %v2900, 6
      %v2908 = vsel %vm2645, %v2905, %v2907
      %v2912 = vadd.f32 %v2894, %v2906
      %v2913 = vadd.f32 %v2895, %v2908
      %v2914 = vadd.f32 %v2896, %v2907
      %v2915 = vperm.slane %v2556, 7
      %v2916 = vmul.f32 %v2553, %v2915
      %v2917 = vmul.f32 %v2915, 0.0
      %v2920 = vrot.slane %v2916, 7
      %v2921 = vrot.slane %v2917, 7
      %v2922 = vsel %vm2661, %v2920, %v2921
      %v2926 = vadd.f32 %v2912, %v2920
      %v2927 = vadd.f32 %v2913, %v2922
      %v2928 = vadd.f32 %v2914, %v2921
      %v2929 = vperm.slane %v2557, 0
      %v2930 = vmul.f32 %v2553, %v2929
      %v2931 = vmul.f32 %v2929, 0.0
      %v2932 = vadd.f32 %v2926, %v2930
      %v2933 = vadd.f32 %v2927, %v2931
      %v2934 = vadd.f32 %v2928, %v2931
      %v2935 = vperm.slane %v2557, 1
      %v2936 = vmul.f32 %v2553, %v2935
      %v2937 = vmul.f32 %v2935, 0.0
      %v2940 = vrot.slane %v2936, 1
      %v2941 = vrot.slane %v2937, 1
      %v2942 = vsel %vm1484, %v2940, %v2941
      %v2943 = vsel %vm1484, %v2941, %v2941
      %v2947 = vadd.f32 %v2932, %v2942
      %v2948 = vadd.f32 %v2933, %v2943
      %v2949 = vadd.f32 %v2934, %v2941
      %v2950 = vperm.slane %v2557, 2
      %v2951 = vmul.f32 %v2553, %v2950
      %v2952 = vmul.f32 %v2950, 0.0
      %v2955 = vrot.slane %v2951, 2
      %v2956 = vrot.slane %v2952, 2
      %v2957 = vsel %vm1498, %v2955, %v2956
      %v2958 = vsel %vm1498, %v2956, %v2956
      %v2962 = vadd.f32 %v2947, %v2957
      %v2963 = vadd.f32 %v2948, %v2958
      %v2964 = vadd.f32 %v2949, %v2956
      %v2965 = vperm.slane %v2557, 3
      %v2966 = vmul.f32 %v2553, %v2965
      %v2967 = vmul.f32 %v2965, 0.0
      %v2970 = vrot.slane %v2966, 3
      %v2971 = vrot.slane %v2967, 3
      %v2972 = vsel %vm2598, %v2970, %v2971
      %v2973 = vsel %vm2598, %v2971, %v2971
      %v2977 = vadd.f32 %v2962, %v2972
      %v2978 = vadd.f32 %v2963, %v2973
      %v2979 = vadd.f32 %v2964, %v2971
      %v2980 = vperm.slane %v2557, 4
      %v2981 = vmul.f32 %v2553, %v2980
      %v2982 = vmul.f32 %v2980, 0.0
      %v2985 = vrot.slane %v2981, 4
      %v2986 = vrot.slane %v2982, 4
      %v2987 = vsel %vm1727, %v2985, %v2986
      %v2988 = vsel %vm1727, %v2986, %v2986
      %v2992 = vadd.f32 %v2977, %v2987
      %v2993 = vadd.f32 %v2978, %v2988
      %v2994 = vadd.f32 %v2979, %v2986
      %v2995 = vperm.slane %v2557, 5
      %v2996 = vmul.f32 %v2553, %v2995
      %v2997 = vmul.f32 %v2995, 0.0
      %v3000 = vrot.slane %v2996, 5
      %v3001 = vrot.slane %v2997, 5
      %v3002 = vsel %vm2629, %v3000, %v3001
      %v3003 = vsel %vm2629, %v3001, %v3001
      %v3007 = vadd.f32 %v2992, %v3002
      %v3008 = vadd.f32 %v2993, %v3003
      %v3009 = vadd.f32 %v2994, %v3001
      %v3010 = vperm.slane %v2557, 6
      %v3011 = vmul.f32 %v2553, %v3010
      %v3012 = vmul.f32 %v3010, 0.0
      %v3015 = vrot.slane %v3011, 6
      %v3016 = vrot.slane %v3012, 6
      %v3017 = vsel %vm2645, %v3015, %v3016
      %v3018 = vsel %vm2645, %v3016, %v3016
      %v3022 = vadd.f32 %v3007, %v3017
      %v3023 = vadd.f32 %v3008, %v3018
      %v3024 = vadd.f32 %v3009, %v3016
      %v3025 = vld [vmem:[%s43] sm:$0x1]
      %v3027 = vperm.slane %v3025, 0
      %v3029 = vadd.f32 %v3022, %v3027
      %v3030 = vadd.f32 %v3023, %v3027
      %v3031 = vadd.f32 %v3024, %v3027
      %v3032 = vld [vmem:[%s45] sm:$0x1]
      %vm3033 = vcmp.ge.f32.partialorder %v3029, 0.0
      %vm3034 = vcmp.ge.f32.partialorder %v3030, 0.0
      %vm3035 = vcmp.ge.f32.partialorder %v3031, 0.0
      %v3037 = vperm.slane %v3032, 0
      %v3039 = vmul.f32 %v3037, %v3029
      %v3040 = vmul.f32 %v3037, %v3030
      %v3041 = vmul.f32 %v3037, %v3031
      %v3042 = vsel %vm3033, %v3029, %v3039
      %v3043 = vsel %vm3034, %v3030, %v3040
      %v3044 = vsel %vm3035, %v3031, %v3041
      %v3045 = vpack.c.bf16 %v3043, %v3042
      %v3046 = vpack.c.bf16 %v3044, %v3044
      %v3047 = vld [vmem:[%s47] sm:$0xf]
      %v3048 = vld [vmem:[%s47 + $0x4] sm:$0xf]
      %v3049 = vld [vmem:[%s47 + $0x8] sm:$0xf]
      %v3050 = vld [vmem:[%s47 + $0xc] sm:$0xf]
      %v3051 = vld [vmem:[%s47 + $0x10] sm:$0xf]
      %v3052 = vld [vmem:[%s47 + $0x14] sm:$0xf]
      %v3053 = vld [vmem:[%s47 + $0x18] sm:$0xf]
      %v3054 = vld [vmem:[%s47 + $0x1c] sm:$0xf]
      %v3055 = vld [vmem:[%s47 + $0x20] sm:$0xf]
      %v3056 = vld [vmem:[%s47 + $0x24] sm:$0xf]
      %v3057 = vld [vmem:[%s47 + $0x28] sm:$0xf]
      %v3058 = vld [vmem:[%s47 + $0x2c] sm:$0xf]
      %v3059 = vld [vmem:[%s47 + $0x30] sm:$0xf]
      %v3060 = vld [vmem:[%s47 + $0x34] sm:$0xf]
      %v3061 = vld [vmem:[%s47 + $0x38] sm:$0xf]
      %v3062 = vld [vmem:[%s47 + $0x3c] sm:$0xf]
      %v3063 = vld [vmem:[%s49] sm:$0x1]
      %v3065 = vperm.slane %v3063, 0
      %vm3067 = vsmask.f32 7424
      %v3069 = vshrl.u32 %v3045, 16
      %v3071 = vshll.u32 %v3045, 16
      %v3073 = vrot.slane %v3071, 1
      %v3074 = vor.u32 %v3069, %v3073
      %v3076 = vshll.u32 %v3046, 16
      %v3078 = vrot.slane %v3076, 1
      %v3079 = vsel %vm3067, %v3074, %v3078
      %v3097 = vunpack.c.l.b16 %v3047
      %v3098 = vunpack.c.l.b16 %v3048
      %v3099 = vunpack.c.l.b16 %v3049
      %v3100 = vunpack.c.l.b16 %v3050
      %v3101 = vunpack.c.l.b16 %v3051
      %v3102 = vunpack.c.l.b16 %v3052
      %v3103 = vunpack.c.l.b16 %v3053
      %v3104 = vunpack.c.l.b16 %v3054
      %v3105 = vunpack.c.l.b16 %v3055
      %v3106 = vunpack.c.l.b16 %v3056
      %v3107 = vunpack.c.l.b16 %v3057
      %v3108 = vunpack.c.l.b16 %v3058
      %v3109 = vunpack.c.l.b16 %v3059
      %v3110 = vunpack.c.l.b16 %v3060
      %v3111 = vunpack.c.l.b16 %v3061
      %v3112 = vunpack.c.l.b16 %v3062
      %v3113 = vpack.c.b16 %v3098, %v3097
      %v3114 = vpack.c.b16 %v3100, %v3099
      %v3115 = vpack.c.b16 %v3102, %v3101
      %v3116 = vpack.c.b16 %v3104, %v3103
      %v3117 = vpack.c.b16 %v3106, %v3105
      %v3118 = vpack.c.b16 %v3108, %v3107
      %v3119 = vpack.c.b16 %v3110, %v3109
      %v3120 = vpack.c.b16 %v3112, %v3111
      %3129 = vmatpush.bf16.msra.mxu0 %v3120
      %3130 = vmatpush.bf16.msra.mxu0 %v3119
      %3131 = vmatpush.bf16.msra.mxu0 %v3118
      %3132 = vmatpush.bf16.msra.mxu0 %v3117
      %3133 = vmatpush.bf16.msra.mxu0 %v3116
      %3134 = vmatpush.bf16.msra.mxu0 %v3115
      %3135 = vmatpush.bf16.msra.mxu0 %v3114
      %3136 = vmatpush.bf16.msra.mxu0 %v3113
      %3137 = vmatmul.bf16.gmra.mxu0 %v3079
      %v3138 = vpop.f32.mrf.mxu0
      %v3139 = vadd.f32 %v3065, %v3138
      %v3140 = vpop.f32.mrf.mxu0
      %v3141 = vadd.f32 %v3065, %v3140
      %3142 = vdwg.mxu0
      %v3143 = vadd.f32 %v3139, %v1281
      %v3144 = vadd.f32 %v3141, %v1282
      %3146 = vrot.lane.b32.xlu0 %v2360, 64
      %v3147 = vpop.permute.xlu0 %3146
      %v3149 = vadd.f32 %v3143, %v3147
      %v3150 = vadd.f32 %v3144, %v3147
      %3153 = vrot.lane.b32.xlu0 %v1475, 64
      %v3154 = vpop.permute.xlu0 %3153
      %3155 = vrot.lane.b32.xlu0 %v1477, 64
      %v3156 = vpop.permute.xlu0 %3155
      %v3159 = vadd.f32 %v3149, %v3154
      %v3160 = vadd.f32 %v3150, %v3156
      %s3161 = scalar_lea.vmem %s33, 1
      %v3162 = vld [vmem:[%s3161] sm:$0x1]
      %s3163 = scalar_lea.vmem %s35, 1
      %v3164 = vld [vmem:[%s3163] sm:$0x1]
      %v3165 = vsel %vm1436, %v3159, 0.0
      %3166 = vadd.xlane.f32.xlu0 %v3165
      %v3167 = vpop.xlane.xlu0 %3166
      %v3168 = vsel %vm1436, %v3160, 0.0
      %3169 = vadd.xlane.f32.xlu0 %v3168
      %v3170 = vpop.xlane.xlu0 %3169
      %v3171 = vmul.f32 %v3167, %v2379
      %v3172 = vmul.f32 %v3170, %v2379
      %v3173 = vsub.f32 %v3159, %v3171
      %v3174 = vsub.f32 %v3160, %v3172
      %v3175 = vmul.f32 %v3173, %v3173
      %v3176 = vmul.f32 %v3174, %v3174
      %v3177 = vsel %vm1436, %v3175, 0.0
      %3178 = vadd.xlane.f32.xlu0 %v3177
      %v3179 = vpop.xlane.xlu0 %3178
      %v3180 = vsel %vm1436, %v3176, 0.0
      %3181 = vadd.xlane.f32.xlu0 %v3180
      %v3182 = vpop.xlane.xlu0 %3181
      %v3183 = vmul.f32 %v3179, %v2379
      %v3184 = vmul.f32 %v3182, %v2379
      %v3185 = vadd.f32 %v3183, 1e-05
      %v3186 = vadd.f32 %v3184, 1e-05
      %v3187 = vrsqrt.pop %v3185
      %v3188 = vmul.f32 %v3187, %v3185
      %v3189 = vmul.f32 %v3188, %v3187
      %v3190 = vmul.f32 0.5, %v3189
      %v3191 = vsub.f32 1.5, %v3190
      %v3192 = vmul.f32 %v3187, %v3191
      %vm3193 = vweird.f32 %v3185
      %vm3194 = vweird.f32 %v3187
      %vm3195 = vmor %vm3193, %vm3194
      %v3196 = vsel %vm3195, %v3187, %v3192
      %v3197 = vrsqrt.pop %v3186
      %v3198 = vmul.f32 %v3197, %v3186
      %v3199 = vmul.f32 %v3198, %v3197
      %v3200 = vmul.f32 0.5, %v3199
      %v3201 = vsub.f32 1.5, %v3200
      %v3202 = vmul.f32 %v3197, %v3201
      %vm3203 = vweird.f32 %v3186
      %vm3204 = vweird.f32 %v3197
      %vm3205 = vmor %vm3203, %vm3204
      %v3206 = vsel %vm3205, %v3197, %v3202
      %v3207 = vmul.f32 %v3173, %v3196
      %v3208 = vmul.f32 %v3174, %v3206
      %v3210 = vperm.slane %v3162, 0
      %v3212 = vmul.f32 %v3207, %v3210
      %v3213 = vmul.f32 %v3208, %v3210
      %v3215 = vperm.slane %v3164, 0
      %v3217 = vadd.f32 %v3212, %v3215
      %v3218 = vadd.f32 %v3213, %v3215
      %v3219 = vpack.c.bf16 %v3218, %v3217
      %s3220 = scalar_lea.vmem %s37, 64
      %v3221 = vld [vmem:[%s3220] sm:$0xff]
      %v3222 = vld [vmem:[%s3220 + $0x8] sm:$0xff]
      %v3223 = vld [vmem:[%s3220 + $0x10] sm:$0xff]
      %v3224 = vld [vmem:[%s3220 + $0x18] sm:$0xff]
      %v3225 = vld [vmem:[%s3220 + $0x20] sm:$0xff]
      %v3226 = vld [vmem:[%s3220 + $0x28] sm:$0xff]
      %v3227 = vld [vmem:[%s3220 + $0x30] sm:$0xff]
      %v3228 = vld [vmem:[%s3220 + $0x38] sm:$0xff]
      %s3229 = scalar_lea.vmem %s39, 2
      %v3230 = vld [vmem:[%s3229] sm:$0x3]
      %v3232 = vperm.slane %v3230, 0
      %v3233 = vperm.slane %v3230, 1
      %v3244 = vunpack.c.l.b16 %v3221
      %v3245 = vunpack.c.h.b16 %v3221
      %v3246 = vunpack.c.l.b16 %v3222
      %v3247 = vunpack.c.h.b16 %v3222
      %v3248 = vunpack.c.l.b16 %v3223
      %v3249 = vunpack.c.h.b16 %v3223
      %v3250 = vunpack.c.l.b16 %v3224
      %v3251 = vunpack.c.h.b16 %v3224
      %v3252 = vunpack.c.l.b16 %v3225
      %v3253 = vunpack.c.h.b16 %v3225
      %v3254 = vunpack.c.l.b16 %v3226
      %v3255 = vunpack.c.h.b16 %v3226
      %v3256 = vunpack.c.l.b16 %v3227
      %v3257 = vunpack.c.h.b16 %v3227
      %v3258 = vunpack.c.l.b16 %v3228
      %v3259 = vunpack.c.h.b16 %v3228
      %v3260 = vpack.c.b16 %v3246, %v3244
      %v3261 = vpack.c.b16 %v3247, %v3245
      %v3262 = vpack.c.b16 %v3250, %v3248
      %v3263 = vpack.c.b16 %v3251, %v3249
      %v3264 = vpack.c.b16 %v3254, %v3252
      %v3265 = vpack.c.b16 %v3255, %v3253
      %v3266 = vpack.c.b16 %v3258, %v3256
      %v3267 = vpack.c.b16 %v3259, %v3257
      %v3277 = vsel %vm1436, %v3219, 0
      %3279 = vmatpush.bf16.msra.mxu0 0
      %3280 = vmatpush.bf16.msra.mxu0 0
      %3281 = vmatpush.bf16.msra.mxu0 0
      %3282 = vmatpush.bf16.msra.mxu0 0
      %3283 = vmatpush.bf16.msra.mxu0 %v3266
      %3284 = vmatpush.bf16.msra.mxu0 %v3264
      %3285 = vmatpush.bf16.msra.mxu0 %v3262
      %3286 = vmatpush.bf16.msra.mxu0 %v3260
      %3287 = vmatmul.bf16.gmra.mxu0 %v3277
      %v3288 = vpop.f32.mrf.mxu0
      %v3289 = vadd.f32 %v3232, %v3288
      %v3290 = vpop.f32.mrf.mxu0
      %v3291 = vadd.f32 %v3232, %v3290
      %3292 = vdwg.mxu0
      %3293 = vmatpush.bf16.msra.mxu0 0
      %3294 = vmatpush.bf16.msra.mxu0 0
      %3295 = vmatpush.bf16.msra.mxu0 0
      %3296 = vmatpush.bf16.msra.mxu0 0
      %3297 = vmatpush.bf16.msra.mxu0 %v3267
      %3298 = vmatpush.bf16.msra.mxu0 %v3265
      %3299 = vmatpush.bf16.msra.mxu0 %v3263
      %3300 = vmatpush.bf16.msra.mxu0 %v3261
      %3301 = vmatmul.bf16.gmra.mxu0 %v3277
      %v3302 = vpop.f32.mrf.mxu0
      %v3303 = vadd.f32 %v3233, %v3302
      %v3304 = vpop.f32.mrf.mxu0
      %v3305 = vadd.f32 %v3233, %v3304
      %3306 = vdwg.mxu0
      %v3307 = vxor.u32 %v3303, 2147483648
      %v3308 = vxor.u32 %v3305, 2147483648
      %v3309 = vmul.f32 %v3307, 1.442695
      %v3310 = vpow.pop %v3309
      %v3311 = vmul.f32 %v3308, 1.442695
      %v3312 = vpow.pop %v3311
      %v3313 = vadd.f32 %v3310, 1.0
      %v3314 = vadd.f32 %v3312, 1.0
      %v3315 = vrcp.pop %v3313
      %v3316 = vmul.f32 %v3313, %v3315
      %v3317 = vsub.f32 1.0, %v3316
      %v3318 = vmul.f32 %v3315, %v3317
      %v3319 = vadd.f32 %v3315, %v3318
      %vm3320 = vweird.f32 %v3313
      %vm3321 = vweird.f32 %v3315
      %vm3322 = vmor %vm3320, %vm3321
      %v3323 = vsel %vm3322, %v3315, %v3319
      %v3324 = vand.u32 2147483647, %v3313
      %vm3325 = vcmp.eq.f32.partialorder %v3324, 8.507059e+37
      %v3326 = vand.u32 %v3313, 2147483648
      %v3327 = vor.u32 1.1754944e-38, %v3326
      %v3328 = vsel %vm3325, %v3327, %v3323
      %v3329 = vmul.f32 1.0, %v3328
      %v3330 = vrcp.pop %v3314
      %v3331 = vmul.f32 %v3314, %v3330
      %v3332 = vsub.f32 1.0, %v3331
      %v3333 = vmul.f32 %v3330, %v3332
      %v3334 = vadd.f32 %v3330, %v3333
      %vm3335 = vweird.f32 %v3314
      %vm3336 = vweird.f32 %v3330
      %vm3337 = vmor %vm3335, %vm3336
      %v3338 = vsel %vm3337, %v3330, %v3334
      %v3339 = vand.u32 2147483647, %v3314
      %vm3340 = vcmp.eq.f32.partialorder %v3339, 8.507059e+37
      %v3341 = vand.u32 %v3314, 2147483648
      %v3342 = vor.u32 1.1754944e-38, %v3341
      %v3343 = vsel %vm3340, %v3342, %v3338
      %v3344 = vmul.f32 1.0, %v3343
      %v3345 = vmul.f32 %v3289, %v3329
      %v3346 = vmul.f32 %v3291, %v3344
      %s3347 = scalar_lea.vmem %s41, 32
      %v3348 = vld [vmem:[%s3347] sm:$0xff]
      %v3349 = vld [vmem:[%s3347 + $0x8] sm:$0xff]
      %v3350 = vld [vmem:[%s3347 + $0x10] sm:$0xff]
      %v3351 = vld [vmem:[%s3347 + $0x18] sm:$0x7f]
      %v3352 = vperm.slane %v3348, 0
      %v3353 = vmul.f32 %v3352, 0.0
      %v3354 = vmul.f32 %v3345, %v3352
      %v3355 = vadd.f32 %v3353, 0.0
      %v3356 = vadd.f32 %v3354, 0.0
      %v3357 = vperm.slane %v3348, 1
      %v3358 = vmul.f32 %v3357, 0.0
      %v3359 = vmul.f32 %v3345, %v3357
      %v3362 = vrot.slane %v3358, 1
      %v3363 = vsel %vm1484, %v3362, %v3362
      %v3364 = vrot.slane %v3359, 1
      %v3365 = vsel %vm1484, %v3362, %v3364
      %v3369 = vadd.f32 %v3355, %v3363
      %v3370 = vadd.f32 %v3355, %v3365
      %v3371 = vadd.f32 %v3356, %v3364
      %v3372 = vperm.slane %v3348, 2
      %v3373 = vmul.f32 %v3372, 0.0
      %v3374 = vmul.f32 %v3345, %v3372
      %v3377 = vrot.slane %v3373, 2
      %v3378 = vsel %vm1498, %v3377, %v3377
      %v3379 = vrot.slane %v3374, 2
      %v3380 = vsel %vm1498, %v3377, %v3379
      %v3384 = vadd.f32 %v3369, %v3378
      %v3385 = vadd.f32 %v3370, %v3380
      %v3386 = vadd.f32 %v3371, %v3379
      %v3387 = vperm.slane %v3348, 3
      %v3388 = vmul.f32 %v3387, 0.0
      %v3389 = vmul.f32 %v3345, %v3387
      %v3392 = vrot.slane %v3388, 3
      %v3393 = vsel %vm2598, %v3392, %v3392
      %v3394 = vrot.slane %v3389, 3
      %v3395 = vsel %vm2598, %v3392, %v3394
      %v3399 = vadd.f32 %v3384, %v3393
      %v3400 = vadd.f32 %v3385, %v3395
      %v3401 = vadd.f32 %v3386, %v3394
      %v3402 = vperm.slane %v3348, 4
      %v3403 = vmul.f32 %v3402, 0.0
      %v3404 = vmul.f32 %v3345, %v3402
      %v3407 = vrot.slane %v3403, 4
      %v3408 = vsel %vm1727, %v3407, %v3407
      %v3409 = vrot.slane %v3404, 4
      %v3410 = vsel %vm1727, %v3407, %v3409
      %v3414 = vadd.f32 %v3399, %v3408
      %v3415 = vadd.f32 %v3400, %v3410
      %v3416 = vadd.f32 %v3401, %v3409
      %v3417 = vperm.slane %v3348, 5
      %v3418 = vmul.f32 %v3417, 0.0
      %v3419 = vmul.f32 %v3345, %v3417
      %v3422 = vrot.slane %v3418, 5
      %v3423 = vsel %vm2629, %v3422, %v3422
      %v3424 = vrot.slane %v3419, 5
      %v3425 = vsel %vm2629, %v3422, %v3424
      %v3429 = vadd.f32 %v3414, %v3423
      %v3430 = vadd.f32 %v3415, %v3425
      %v3431 = vadd.f32 %v3416, %v3424
      %v3432 = vperm.slane %v3348, 6
      %v3433 = vmul.f32 %v3432, 0.0
      %v3434 = vmul.f32 %v3345, %v3432
      %v3437 = vrot.slane %v3433, 6
      %v3438 = vsel %vm2645, %v3437, %v3437
      %v3439 = vrot.slane %v3434, 6
      %v3440 = vsel %vm2645, %v3437, %v3439
      %v3444 = vadd.f32 %v3429, %v3438
      %v3445 = vadd.f32 %v3430, %v3440
      %v3446 = vadd.f32 %v3431, %v3439
      %v3447 = vperm.slane %v3348, 7
      %v3448 = vmul.f32 %v3447, 0.0
      %v3449 = vmul.f32 %v3345, %v3447
      %v3452 = vrot.slane %v3448, 7
      %v3453 = vrot.slane %v3449, 7
      %v3454 = vsel %vm2661, %v3452, %v3453
      %v3458 = vadd.f32 %v3444, %v3452
      %v3459 = vadd.f32 %v3445, %v3454
      %v3460 = vadd.f32 %v3446, %v3453
      %v3461 = vperm.slane %v3349, 0
      %v3462 = vmul.f32 %v3461, 0.0
      %v3463 = vmul.f32 %v3345, %v3461
      %v3464 = vmul.f32 %v3346, %v3461
      %v3465 = vadd.f32 %v3458, %v3462
      %v3466 = vadd.f32 %v3459, %v3463
      %v3467 = vadd.f32 %v3460, %v3464
      %v3468 = vperm.slane %v3349, 1
      %v3469 = vmul.f32 %v3468, 0.0
      %v3470 = vmul.f32 %v3345, %v3468
      %v3471 = vmul.f32 %v3346, %v3468
      %v3475 = vrot.slane %v3469, 1
      %v3476 = vrot.slane %v3470, 1
      %v3477 = vsel %vm1484, %v3475, %v3476
      %v3478 = vrot.slane %v3471, 1
      %v3479 = vsel %vm1484, %v3476, %v3478
      %v3483 = vadd.f32 %v3465, %v3477
      %v3484 = vadd.f32 %v3466, %v3479
      %v3485 = vadd.f32 %v3467, %v3478
      %v3486 = vperm.slane %v3349, 2
      %v3487 = vmul.f32 %v3486, 0.0
      %v3488 = vmul.f32 %v3345, %v3486
      %v3489 = vmul.f32 %v3346, %v3486
      %v3493 = vrot.slane %v3487, 2
      %v3494 = vrot.slane %v3488, 2
      %v3495 = vsel %vm1498, %v3493, %v3494
      %v3496 = vrot.slane %v3489, 2
      %v3497 = vsel %vm1498, %v3494, %v3496
      %v3501 = vadd.f32 %v3483, %v3495
      %v3502 = vadd.f32 %v3484, %v3497
      %v3503 = vadd.f32 %v3485, %v3496
      %v3504 = vperm.slane %v3349, 3
      %v3505 = vmul.f32 %v3504, 0.0
      %v3506 = vmul.f32 %v3345, %v3504
      %v3507 = vmul.f32 %v3346, %v3504
      %v3511 = vrot.slane %v3505, 3
      %v3512 = vrot.slane %v3506, 3
      %v3513 = vsel %vm2598, %v3511, %v3512
      %v3514 = vrot.slane %v3507, 3
      %v3515 = vsel %vm2598, %v3512, %v3514
      %v3519 = vadd.f32 %v3501, %v3513
      %v3520 = vadd.f32 %v3502, %v3515
      %v3521 = vadd.f32 %v3503, %v3514
      %v3522 = vperm.slane %v3349, 4
      %v3523 = vmul.f32 %v3522, 0.0
      %v3524 = vmul.f32 %v3345, %v3522
      %v3525 = vmul.f32 %v3346, %v3522
      %v3529 = vrot.slane %v3523, 4
      %v3530 = vrot.slane %v3524, 4
      %v3531 = vsel %vm1727, %v3529, %v3530
      %v3532 = vrot.slane %v3525, 4
      %v3533 = vsel %vm1727, %v3530, %v3532
      %v3537 = vadd.f32 %v3519, %v3531
      %v3538 = vadd.f32 %v3520, %v3533
      %v3539 = vadd.f32 %v3521, %v3532
      %v3540 = vperm.slane %v3349, 5
      %v3541 = vmul.f32 %v3540, 0.0
      %v3542 = vmul.f32 %v3345, %v3540
      %v3543 = vmul.f32 %v3346, %v3540
      %v3547 = vrot.slane %v3541, 5
      %v3548 = vrot.slane %v3542, 5
      %v3549 = vsel %vm2629, %v3547, %v3548
      %v3550 = vrot.slane %v3543, 5
      %v3551 = vsel %vm2629, %v3548, %v3550
      %v3555 = vadd.f32 %v3537, %v3549
      %v3556 = vadd.f32 %v3538, %v3551
      %v3557 = vadd.f32 %v3539, %v3550
      %v3558 = vperm.slane %v3349, 6
      %v3559 = vmul.f32 %v3558, 0.0
      %v3560 = vmul.f32 %v3345, %v3558
      %v3561 = vmul.f32 %v3346, %v3558
      %v3565 = vrot.slane %v3559, 6
      %v3566 = vrot.slane %v3560, 6
      %v3567 = vsel %vm2645, %v3565, %v3566
      %v3568 = vrot.slane %v3561, 6
      %v3569 = vsel %vm2645, %v3566, %v3568
      %v3573 = vadd.f32 %v3555, %v3567
      %v3574 = vadd.f32 %v3556, %v3569
      %v3575 = vadd.f32 %v3557, %v3568
      %v3576 = vperm.slane %v3349, 7
      %v3577 = vmul.f32 %v3345, %v3576
      %v3578 = vmul.f32 %v3346, %v3576
      %v3581 = vrot.slane %v3577, 7
      %v3582 = vrot.slane %v3578, 7
      %v3583 = vsel %vm2661, %v3581, %v3582
      %v3587 = vadd.f32 %v3573, %v3581
      %v3588 = vadd.f32 %v3574, %v3583
      %v3589 = vadd.f32 %v3575, %v3582
      %v3590 = vperm.slane %v3350, 0
      %v3591 = vmul.f32 %v3345, %v3590
      %v3592 = vmul.f32 %v3346, %v3590
      %v3593 = vmul.f32 %v3590, 0.0
      %v3594 = vadd.f32 %v3587, %v3591
      %v3595 = vadd.f32 %v3588, %v3592
      %v3596 = vadd.f32 %v3589, %v3593
      %v3597 = vperm.slane %v3350, 1
      %v3598 = vmul.f32 %v3345, %v3597
      %v3599 = vmul.f32 %v3346, %v3597
      %v3600 = vmul.f32 %v3597, 0.0
      %v3604 = vrot.slane %v3598, 1
      %v3605 = vrot.slane %v3599, 1
      %v3606 = vsel %vm1484, %v3604, %v3605
      %v3607 = vrot.slane %v3600, 1
      %v3608 = vsel %vm1484, %v3605, %v3607
      %v3612 = vadd.f32 %v3594, %v3606
      %v3613 = vadd.f32 %v3595, %v3608
      %v3614 = vadd.f32 %v3596, %v3607
      %v3615 = vperm.slane %v3350, 2
      %v3616 = vmul.f32 %v3345, %v3615
      %v3617 = vmul.f32 %v3346, %v3615
      %v3618 = vmul.f32 %v3615, 0.0
      %v3622 = vrot.slane %v3616, 2
      %v3623 = vrot.slane %v3617, 2
      %v3624 = vsel %vm1498, %v3622, %v3623
      %v3625 = vrot.slane %v3618, 2
      %v3626 = vsel %vm1498, %v3623, %v3625
      %v3630 = vadd.f32 %v3612, %v3624
      %v3631 = vadd.f32 %v3613, %v3626
      %v3632 = vadd.f32 %v3614, %v3625
      %v3633 = vperm.slane %v3350, 3
      %v3634 = vmul.f32 %v3345, %v3633
      %v3635 = vmul.f32 %v3346, %v3633
      %v3636 = vmul.f32 %v3633, 0.0
      %v3640 = vrot.slane %v3634, 3
      %v3641 = vrot.slane %v3635, 3
      %v3642 = vsel %vm2598, %v3640, %v3641
      %v3643 = vrot.slane %v3636, 3
      %v3644 = vsel %vm2598, %v3641, %v3643
      %v3648 = vadd.f32 %v3630, %v3642
      %v3649 = vadd.f32 %v3631, %v3644
      %v3650 = vadd.f32 %v3632, %v3643
      %v3651 = vperm.slane %v3350, 4
      %v3652 = vmul.f32 %v3345, %v3651
      %v3653 = vmul.f32 %v3346, %v3651
      %v3654 = vmul.f32 %v3651, 0.0
      %v3658 = vrot.slane %v3652, 4
      %v3659 = vrot.slane %v3653, 4
      %v3660 = vsel %vm1727, %v3658, %v3659
      %v3661 = vrot.slane %v3654, 4
      %v3662 = vsel %vm1727, %v3659, %v3661
      %v3666 = vadd.f32 %v3648, %v3660
      %v3667 = vadd.f32 %v3649, %v3662
      %v3668 = vadd.f32 %v3650, %v3661
      %v3669 = vperm.slane %v3350, 5
      %v3670 = vmul.f32 %v3345, %v3669
      %v3671 = vmul.f32 %v3346, %v3669
      %v3672 = vmul.f32 %v3669, 0.0
      %v3676 = vrot.slane %v3670, 5
      %v3677 = vrot.slane %v3671, 5
      %v3678 = vsel %vm2629, %v3676, %v3677
      %v3679 = vrot.slane %v3672, 5
      %v3680 = vsel %vm2629, %v3677, %v3679
      %v3684 = vadd.f32 %v3666, %v3678
      %v3685 = vadd.f32 %v3667, %v3680
      %v3686 = vadd.f32 %v3668, %v3679
      %v3687 = vperm.slane %v3350, 6
      %v3688 = vmul.f32 %v3345, %v3687
      %v3689 = vmul.f32 %v3346, %v3687
      %v3690 = vmul.f32 %v3687, 0.0
      %v3694 = vrot.slane %v3688, 6
      %v3695 = vrot.slane %v3689, 6
      %v3696 = vsel %vm2645, %v3694, %v3695
      %v3697 = vrot.slane %v3690, 6
      %v3698 = vsel %vm2645, %v3695, %v3697
      %v3702 = vadd.f32 %v3684, %v3696
      %v3703 = vadd.f32 %v3685, %v3698
      %v3704 = vadd.f32 %v3686, %v3697
      %v3705 = vperm.slane %v3350, 7
      %v3706 = vmul.f32 %v3346, %v3705
      %v3707 = vmul.f32 %v3705, 0.0
      %v3710 = vrot.slane %v3706, 7
      %v3711 = vrot.slane %v3707, 7
      %v3712 = vsel %vm2661, %v3710, %v3711
      %v3716 = vadd.f32 %v3702, %v3710
      %v3717 = vadd.f32 %v3703, %v3712
      %v3718 = vadd.f32 %v3704, %v3711
      %v3719 = vperm.slane %v3351, 0
      %v3720 = vmul.f32 %v3346, %v3719
      %v3721 = vmul.f32 %v3719, 0.0
      %v3722 = vadd.f32 %v3716, %v3720
      %v3723 = vadd.f32 %v3717, %v3721
      %v3724 = vadd.f32 %v3718, %v3721
      %v3725 = vperm.slane %v3351, 1
      %v3726 = vmul.f32 %v3346, %v3725
      %v3727 = vmul.f32 %v3725, 0.0
      %v3730 = vrot.slane %v3726, 1
      %v3731 = vrot.slane %v3727, 1
      %v3732 = vsel %vm1484, %v3730, %v3731
      %v3733 = vsel %vm1484, %v3731, %v3731
      %v3737 = vadd.f32 %v3722, %v3732
      %v3738 = vadd.f32 %v3723, %v3733
      %v3739 = vadd.f32 %v3724, %v3731
      %v3740 = vperm.slane %v3351, 2
      %v3741 = vmul.f32 %v3346, %v3740
      %v3742 = vmul.f32 %v3740, 0.0
      %v3745 = vrot.slane %v3741, 2
      %v3746 = vrot.slane %v3742, 2
      %v3747 = vsel %vm1498, %v3745, %v3746
      %v3748 = vsel %vm1498, %v3746, %v3746
      %v3752 = vadd.f32 %v3737, %v3747
      %v3753 = vadd.f32 %v3738, %v3748
      %v3754 = vadd.f32 %v3739, %v3746
      %v3755 = vperm.slane %v3351, 3
      %v3756 = vmul.f32 %v3346, %v3755
      %v3757 = vmul.f32 %v3755, 0.0
      %v3760 = vrot.slane %v3756, 3
      %v3761 = vrot.slane %v3757, 3
      %v3762 = vsel %vm2598, %v3760, %v3761
      %v3763 = vsel %vm2598, %v3761, %v3761
      %v3767 = vadd.f32 %v3752, %v3762
      %v3768 = vadd.f32 %v3753, %v3763
      %v3769 = vadd.f32 %v3754, %v3761
      %v3770 = vperm.slane %v3351, 4
      %v3771 = vmul.f32 %v3346, %v3770
      %v3772 = vmul.f32 %v3770, 0.0
      %v3775 = vrot.slane %v3771, 4
      %v3776 = vrot.slane %v3772, 4
      %v3777 = vsel %vm1727, %v3775, %v3776
      %v3778 = vsel %vm1727, %v3776, %v3776
      %v3782 = vadd.f32 %v3767, %v3777
      %v3783 = vadd.f32 %v3768, %v3778
      %v3784 = vadd.f32 %v3769, %v3776
      %v3785 = vperm.slane %v3351, 5
      %v3786 = vmul.f32 %v3346, %v3785
      %v3787 = vmul.f32 %v3785, 0.0
      %v3790 = vrot.slane %v3786, 5
      %v3791 = vrot.slane %v3787, 5
      %v3792 = vsel %vm2629, %v3790, %v3791
      %v3793 = vsel %vm2629, %v3791, %v3791
      %v3797 = vadd.f32 %v3782, %v3792
      %v3798 = vadd.f32 %v3783, %v3793
      %v3799 = vadd.f32 %v3784, %v3791
      %v3800 = vperm.slane %v3351, 6
      %v3801 = vmul.f32 %v3346, %v3800
      %v3802 = vmul.f32 %v3800, 0.0
      %v3805 = vrot.slane %v3801, 6
      %v3806 = vrot.slane %v3802, 6
      %v3807 = vsel %vm2645, %v3805, %v3806
      %v3808 = vsel %vm2645, %v3806, %v3806
      %v3812 = vadd.f32 %v3797, %v3807
      %v3813 = vadd.f32 %v3798, %v3808
      %v3814 = vadd.f32 %v3799, %v3806
      %s3815 = scalar_lea.vmem %s43, 1
      %v3816 = vld [vmem:[%s3815] sm:$0x1]
      %v3818 = vperm.slane %v3816, 0
      %v3820 = vadd.f32 %v3812, %v3818
      %v3821 = vadd.f32 %v3813, %v3818
      %v3822 = vadd.f32 %v3814, %v3818
      %s3823 = scalar_lea.vmem %s45, 1
      %v3824 = vld [vmem:[%s3823] sm:$0x1]
      %vm3825 = vcmp.ge.f32.partialorder %v3820, 0.0
      %vm3826 = vcmp.ge.f32.partialorder %v3821, 0.0
      %vm3827 = vcmp.ge.f32.partialorder %v3822, 0.0
      %v3829 = vperm.slane %v3824, 0
      %v3831 = vmul.f32 %v3829, %v3820
      %v3832 = vmul.f32 %v3829, %v3821
      %v3833 = vmul.f32 %v3829, %v3822
      %v3834 = vsel %vm3825, %v3820, %v3831
      %v3835 = vsel %vm3826, %v3821, %v3832
      %v3836 = vsel %vm3827, %v3822, %v3833
      %v3837 = vpack.c.bf16 %v3835, %v3834
      %v3838 = vpack.c.bf16 %v3836, %v3836
      %s3839 = scalar_lea.vmem %s47, 64
      %v3840 = vld [vmem:[%s3839] sm:$0xf]
      %v3841 = vld [vmem:[%s3839 + $0x4] sm:$0xf]
      %v3842 = vld [vmem:[%s3839 + $0x8] sm:$0xf]
      %v3843 = vld [vmem:[%s3839 + $0xc] sm:$0xf]
      %v3844 = vld [vmem:[%s3839 + $0x10] sm:$0xf]
      %v3845 = vld [vmem:[%s3839 + $0x14] sm:$0xf]
      %v3846 = vld [vmem:[%s3839 + $0x18] sm:$0xf]
      %v3847 = vld [vmem:[%s3839 + $0x1c] sm:$0xf]
      %v3848 = vld [vmem:[%s3839 + $0x20] sm:$0xf]
      %v3849 = vld [vmem:[%s3839 + $0x24] sm:$0xf]
      %v3850 = vld [vmem:[%s3839 + $0x28] sm:$0xf]
      %v3851 = vld [vmem:[%s3839 + $0x2c] sm:$0xf]
      %v3852 = vld [vmem:[%s3839 + $0x30] sm:$0xf]
      %v3853 = vld [vmem:[%s3839 + $0x34] sm:$0xf]
      %v3854 = vld [vmem:[%s3839 + $0x38] sm:$0xf]
      %v3855 = vld [vmem:[%s3839 + $0x3c] sm:$0xf]
      %s3856 = scalar_lea.vmem %s49, 1
      %v3857 = vld [vmem:[%s3856] sm:$0x1]
      %v3859 = vperm.slane %v3857, 0
      %v3862 = vshrl.u32 %v3837, 16
      %v3864 = vshll.u32 %v3837, 16
      %v3866 = vrot.slane %v3864, 1
      %v3867 = vor.u32 %v3862, %v3866
      %v3869 = vshll.u32 %v3838, 16
      %v3871 = vrot.slane %v3869, 1
      %v3872 = vsel %vm3067, %v3867, %v3871
      %v3890 = vunpack.c.l.b16 %v3840
      %v3891 = vunpack.c.l.b16 %v3841
      %v3892 = vunpack.c.l.b16 %v3842
      %v3893 = vunpack.c.l.b16 %v3843
      %v3894 = vunpack.c.l.b16 %v3844
      %v3895 = vunpack.c.l.b16 %v3845
      %v3896 = vunpack.c.l.b16 %v3846
      %v3897 = vunpack.c.l.b16 %v3847
      %v3898 = vunpack.c.l.b16 %v3848
      %v3899 = vunpack.c.l.b16 %v3849
      %v3900 = vunpack.c.l.b16 %v3850
      %v3901 = vunpack.c.l.b16 %v3851
      %v3902 = vunpack.c.l.b16 %v3852
      %v3903 = vunpack.c.l.b16 %v3853
      %v3904 = vunpack.c.l.b16 %v3854
      %v3905 = vunpack.c.l.b16 %v3855
      %v3906 = vpack.c.b16 %v3891, %v3890
      %v3907 = vpack.c.b16 %v3893, %v3892
      %v3908 = vpack.c.b16 %v3895, %v3894
      %v3909 = vpack.c.b16 %v3897, %v3896
      %v3910 = vpack.c.b16 %v3899, %v3898
      %v3911 = vpack.c.b16 %v3901, %v3900
      %v3912 = vpack.c.b16 %v3903, %v3902
      %v3913 = vpack.c.b16 %v3905, %v3904
      %3922 = vmatpush.bf16.msra.mxu0 %v3913
      %3923 = vmatpush.bf16.msra.mxu0 %v3912
      %3924 = vmatpush.bf16.msra.mxu0 %v3911
      %3925 = vmatpush.bf16.msra.mxu0 %v3910
      %3926 = vmatpush.bf16.msra.mxu0 %v3909
      %3927 = vmatpush.bf16.msra.mxu0 %v3908
      %3928 = vmatpush.bf16.msra.mxu0 %v3907
      %3929 = vmatpush.bf16.msra.mxu0 %v3906
      %3930 = vmatmul.bf16.gmra.mxu0 %v3872
      %v3931 = vpop.f32.mrf.mxu0
      %v3932 = vadd.f32 %v3859, %v3931
      %v3933 = vpop.f32.mrf.mxu0
      %v3934 = vadd.f32 %v3859, %v3933
      %3935 = vdwg.mxu0
      %v3936 = vadd.f32 %v3932, %v3143
      %v3937 = vadd.f32 %v3934, %v3144
      %v3938 = vld [vmem:[%s55] sm:$0x1]
      %v3939 = vld [vmem:[%s57] sm:$0x1]
      %3942 = vrot.lane.b32.xlu0 %v2358, 96
      %v3943 = vpop.permute.xlu0 %3942
      %3944 = vrot.lane.b32.xlu0 %v2359, 96
      %v3945 = vpop.permute.xlu0 %3944
      %v3948 = vsel %vm1355, %v3943, 0.0
      %3949 = vadd.xlane.f32.xlu0 %v3948
      %v3950 = vpop.xlane.xlu0 %3949
      %v3951 = vsel %vm1355, %v3945, 0.0
      %3952 = vadd.xlane.f32.xlu0 %v3951
      %v3953 = vpop.xlane.xlu0 %3952
      %v3954 = vrcp.pop 32.0
      %v3955 = vmul.f32 32.0, %v3954
      %v3956 = vsub.f32 1.0, %v3955
      %v3957 = vmul.f32 %v3954, %v3956
      %v3958 = vadd.f32 %v3954, %v3957
      %vm3959 = vweird.f32 %v3954
      %v3960 = vsel %vm3959, %v3954, %v3958
      %v3961 = vmul.f32 %v3950, %v3960
      %v3962 = vmul.f32 %v3953, %v3960
      %v3963 = vsub.f32 %v2358, %v3961
      %v3964 = vsub.f32 %v2359, %v3962
      %v3965 = vmul.f32 %v3963, %v3963
      %v3966 = vmul.f32 %v3964, %v3964
      %3969 = vrot.lane.b32.xlu0 %v3965, 96
      %v3970 = vpop.permute.xlu0 %3969
      %3971 = vrot.lane.b32.xlu0 %v3966, 96
      %v3972 = vpop.permute.xlu0 %3971
      %v3975 = vsel %vm1355, %v3970, 0.0
      %3976 = vadd.xlane.f32.xlu0 %v3975
      %v3977 = vpop.xlane.xlu0 %3976
      %v3978 = vsel %vm1355, %v3972, 0.0
      %3979 = vadd.xlane.f32.xlu0 %v3978
      %v3980 = vpop.xlane.xlu0 %3979
      %v3981 = vmul.f32 %v3977, %v3960
      %v3982 = vmul.f32 %v3980, %v3960
      %v3983 = vadd.f32 %v3981, 1e-05
      %v3984 = vadd.f32 %v3982, 1e-05
      %v3985 = vrsqrt.pop %v3983
      %v3986 = vmul.f32 %v3985, %v3983
      %v3987 = vmul.f32 %v3986, %v3985
      %v3988 = vmul.f32 0.5, %v3987
      %v3989 = vsub.f32 1.5, %v3988
      %v3990 = vmul.f32 %v3985, %v3989
      %vm3991 = vweird.f32 %v3983
      %vm3992 = vweird.f32 %v3985
      %vm3993 = vmor %vm3991, %vm3992
      %v3994 = vsel %vm3993, %v3985, %v3990
      %v3995 = vrsqrt.pop %v3984
      %v3996 = vmul.f32 %v3995, %v3984
      %v3997 = vmul.f32 %v3996, %v3995
      %v3998 = vmul.f32 0.5, %v3997
      %v3999 = vsub.f32 1.5, %v3998
      %v4000 = vmul.f32 %v3995, %v3999
      %vm4001 = vweird.f32 %v3984
      %vm4002 = vweird.f32 %v3995
      %vm4003 = vmor %vm4001, %vm4002
      %v4004 = vsel %vm4003, %v3995, %v4000
      %v4005 = vmul.f32 %v3963, %v3994
      %v4006 = vmul.f32 %v3964, %v4004
      %v4008 = vperm.slane %v3938, 0
      %4009 = vrot.lane.b32.xlu0 %v4008, 32
      %v4010 = vpop.permute.xlu0 %4009
      %v4012 = vmul.f32 %v4005, %v4010
      %v4013 = vmul.f32 %v4006, %v4010
      %v4015 = vperm.slane %v3939, 0
      %4016 = vrot.lane.b32.xlu0 %v4015, 32
      %v4017 = vpop.permute.xlu0 %4016
      %v4019 = vadd.f32 %v4012, %v4017
      %v4020 = vadd.f32 %v4013, %v4017
      %v4021 = vpack.c.bf16 %v3937, %v3936
      %v4022 = vld [vmem:[%s59] sm:$0xf]
      %v4023 = vld [vmem:[%s59 + $0x4] sm:$0xf]
      %v4024 = vld [vmem:[%s59 + $0x8] sm:$0xf]
      %v4025 = vld [vmem:[%s59 + $0xc] sm:$0xf]
      %v4026 = vld [vmem:[%s59 + $0x10] sm:$0xf]
      %v4027 = vld [vmem:[%s59 + $0x14] sm:$0xf]
      %v4028 = vld [vmem:[%s59 + $0x18] sm:$0xf]
      %v4029 = vld [vmem:[%s59 + $0x1c] sm:$0xf]
      %v4030 = vld [vmem:[%s61] sm:$0x1]
      %v4032 = vperm.slane %v4030, 0
      %v4042 = vunpack.c.l.b16 %v4022
      %v4043 = vunpack.c.l.b16 %v4023
      %v4044 = vunpack.c.l.b16 %v4024
      %v4045 = vunpack.c.l.b16 %v4025
      %v4046 = vunpack.c.l.b16 %v4026
      %v4047 = vunpack.c.l.b16 %v4027
      %v4048 = vunpack.c.l.b16 %v4028
      %v4049 = vunpack.c.l.b16 %v4029
      %v4050 = vpack.c.b16 %v4043, %v4042
      %v4051 = vpack.c.b16 %v4045, %v4044
      %v4052 = vpack.c.b16 %v4047, %v4046
      %v4053 = vpack.c.b16 %v4049, %v4048
      %v4059 = vsel %vm1436, %v4021, 0
      %4061 = vmatpush.bf16.msra.mxu0 0
      %4062 = vmatpush.bf16.msra.mxu0 0
      %4063 = vmatpush.bf16.msra.mxu0 0
      %4064 = vmatpush.bf16.msra.mxu0 0
      %4065 = vmatpush.bf16.msra.mxu0 %v4053
      %4066 = vmatpush.bf16.msra.mxu0 %v4052
      %4067 = vmatpush.bf16.msra.mxu0 %v4051
      %4068 = vmatpush.bf16.msra.mxu0 %v4050
      %4069 = vmatmul.bf16.gmra.mxu0 %v4059
      %v4070 = vpop.f32.mrf.mxu0
      %v4071 = vadd.f32 %v4032, %v4070
      %v4072 = vpop.f32.mrf.mxu0
      %v4073 = vadd.f32 %v4032, %v4072
      %4074 = vdwg.mxu0
      %v4075 = vxor.u32 %v4071, 2147483648
      %v4076 = vxor.u32 %v4073, 2147483648
      %v4077 = vmul.f32 %v4075, 1.442695
      %v4078 = vpow.pop %v4077
      %v4079 = vmul.f32 %v4076, 1.442695
      %v4080 = vpow.pop %v4079
      %v4081 = vadd.f32 %v4078, 1.0
      %v4082 = vadd.f32 %v4080, 1.0
      %v4083 = vrcp.pop %v4081
      %v4084 = vmul.f32 %v4081, %v4083
      %v4085 = vsub.f32 1.0, %v4084
      %v4086 = vmul.f32 %v4083, %v4085
      %v4087 = vadd.f32 %v4083, %v4086
      %vm4088 = vweird.f32 %v4081
      %vm4089 = vweird.f32 %v4083
      %vm4090 = vmor %vm4088, %vm4089
      %v4091 = vsel %vm4090, %v4083, %v4087
      %v4092 = vand.u32 2147483647, %v4081
      %vm4093 = vcmp.eq.f32.partialorder %v4092, 8.507059e+37
      %v4094 = vand.u32 %v4081, 2147483648
      %v4095 = vor.u32 1.1754944e-38, %v4094
      %v4096 = vsel %vm4093, %v4095, %v4091
      %v4097 = vmul.f32 1.0, %v4096
      %v4098 = vrcp.pop %v4082
      %v4099 = vmul.f32 %v4082, %v4098
      %v4100 = vsub.f32 1.0, %v4099
      %v4101 = vmul.f32 %v4098, %v4100
      %v4102 = vadd.f32 %v4098, %v4101
      %vm4103 = vweird.f32 %v4082
      %vm4104 = vweird.f32 %v4098
      %vm4105 = vmor %vm4103, %vm4104
      %v4106 = vsel %vm4105, %v4098, %v4102
      %v4107 = vand.u32 2147483647, %v4082
      %vm4108 = vcmp.eq.f32.partialorder %v4107, 8.507059e+37
      %v4109 = vand.u32 %v4082, 2147483648
      %v4110 = vor.u32 1.1754944e-38, %v4109
      %v4111 = vsel %vm4108, %v4110, %v4106
      %v4112 = vmul.f32 1.0, %v4111
      %v4113 = vmul.f32 %v4071, %v4097
      %v4114 = vmul.f32 %v4073, %v4112
      %v4115 = vpack.c.bf16 %v4114, %v4113
      %v4116 = vld [vmem:[%s63] sm:$0xf]
      %v4117 = vld [vmem:[%s63 + $0x4] sm:$0xf]
      %v4118 = vld [vmem:[%s63 + $0x8] sm:$0xf]
      %v4119 = vld [vmem:[%s63 + $0xc] sm:$0xf]
      %v4120 = vld [vmem:[%s63 + $0x10] sm:$0xf]
      %v4121 = vld [vmem:[%s63 + $0x14] sm:$0xf]
      %v4122 = vld [vmem:[%s63 + $0x18] sm:$0xf]
      %v4123 = vld [vmem:[%s63 + $0x1c] sm:$0xf]
      %v4124 = vld [vmem:[%s65] sm:$0x1]
      %v4126 = vperm.slane %v4124, 0
      %v4136 = vunpack.c.l.b16 %v4116
      %v4137 = vunpack.c.l.b16 %v4117
      %v4138 = vunpack.c.l.b16 %v4118
      %v4139 = vunpack.c.l.b16 %v4119
      %v4140 = vunpack.c.l.b16 %v4120
      %v4141 = vunpack.c.l.b16 %v4121
      %v4142 = vunpack.c.l.b16 %v4122
      %v4143 = vunpack.c.l.b16 %v4123
      %v4144 = vpack.c.b16 %v4137, %v4136
      %v4145 = vpack.c.b16 %v4139, %v4138
      %v4146 = vpack.c.b16 %v4141, %v4140
      %v4147 = vpack.c.b16 %v4143, %v4142
      %v4153 = vsel %vm1436, %v4115, 0
      %4155 = vmatpush.bf16.msra.mxu0 0
      %4156 = vmatpush.bf16.msra.mxu0 0
      %4157 = vmatpush.bf16.msra.mxu0 0
      %4158 = vmatpush.bf16.msra.mxu0 0
      %4159 = vmatpush.bf16.msra.mxu0 %v4147
      %4160 = vmatpush.bf16.msra.mxu0 %v4146
      %4161 = vmatpush.bf16.msra.mxu0 %v4145
      %4162 = vmatpush.bf16.msra.mxu0 %v4144
      %4163 = vmatmul.bf16.gmra.mxu0 %v4153
      %v4164 = vpop.f32.mrf.mxu0
      %v4165 = vadd.f32 %v4126, %v4164
      %v4166 = vpop.f32.mrf.mxu0
      %v4167 = vadd.f32 %v4126, %v4166
      %4168 = vdwg.mxu0
      %v4169 = vadd.f32 %v2354, %v4165
      %v4170 = vadd.f32 %v2355, %v4167
      %v4171 = vpack.c.bf16 %v4020, %v4019
      %v4172 = vld [vmem:[%s51] sm:$0xf]
      %v4173 = vld [vmem:[%s51 + $0x4] sm:$0xf]
      %v4174 = vld [vmem:[%s51 + $0x8] sm:$0xf]
      %v4175 = vld [vmem:[%s51 + $0xc] sm:$0xf]
      %4177 = vrot.lane.b32.xlu0 %v4171, 96
      %v4178 = vpop.permute.xlu0 %4177
      %v4183 = vunpack.c.l.b16 %v4172
      %v4184 = vunpack.c.l.b16 %v4173
      %v4185 = vunpack.c.l.b16 %v4174
      %v4186 = vunpack.c.l.b16 %v4175
      %v4187 = vpack.c.b16 %v4184, %v4183
      %v4188 = vpack.c.b16 %v4186, %v4185
      %v4192 = vsel %vm1355, %v4178, 0
      %4194 = vmatpush.bf16.msra.mxu0 0
      %4195 = vmatpush.bf16.msra.mxu0 0
      %4196 = vmatpush.bf16.msra.mxu0 0
      %4197 = vmatpush.bf16.msra.mxu0 0
      %4198 = vmatpush.bf16.msra.mxu0 0
      %4199 = vmatpush.bf16.msra.mxu0 0
      %4200 = vmatpush.bf16.msra.mxu0 %v4188
      %4201 = vmatpush.bf16.msra.mxu0 %v4187
      %4202 = vmatmul.bf16.gmra.mxu0 %v4192
      %v4203 = vpop.f32.mrf.mxu0
      %v4204 = vadd.f32 0.0, %v4203
      %v4205 = vpop.f32.mrf.mxu0
      %v4206 = vadd.f32 0.0, %v4205
      %4207 = vdwg.mxu0
      %v4208 = vadd.f32 %v3936, %v4204
      %v4209 = vadd.f32 %v3937, %v4206
      %v4210 = vld [vmem:[%s53] sm:$0x1]
      %v4212 = vperm.slane %v4210, 0
      %v4214 = vadd.f32 %v4208, %v4212
      %v4215 = vadd.f32 %v4209, %v4212
      %v4216 = vsel %vm1355, %v4169, 0.0
      %4217 = vadd.xlane.f32.xlu0 %v4216
      %v4218 = vpop.xlane.xlu0 %4217
      %v4219 = vsel %vm1355, %v4170, 0.0
      %4220 = vadd.xlane.f32.xlu0 %v4219
      %v4221 = vpop.xlane.xlu0 %4220
      %v4222 = vsel %vm1436, %v4214, 0.0
      %4223 = vadd.xlane.f32.xlu0 %v4222
      %v4224 = vpop.xlane.xlu0 %4223
      %v4225 = vsel %vm1436, %v4215, 0.0
      %4226 = vadd.xlane.f32.xlu0 %v4225
      %v4227 = vpop.xlane.xlu0 %4226
      %v4228 = vadd.f32 %v4218, %v4224
      %v4229 = vadd.f32 %v4221, %v4227
      %v4230 = vrcp.pop 96.0
      %v4231 = vmul.f32 96.0, %v4230
      %v4232 = vsub.f32 1.0, %v4231
      %v4233 = vmul.f32 %v4230, %v4232
      %v4234 = vadd.f32 %v4230, %v4233
      %vm4235 = vweird.f32 %v4230
      %v4236 = vsel %vm4235, %v4230, %v4234
      %v4237 = vmul.f32 %v4228, %v4236
      %v4238 = vmul.f32 %v4229, %v4236
      %v4239 = vsub.f32 %v4169, %v4237
      %v4240 = vsub.f32 %v4170, %v4238
      %v4241 = vmul.f32 %v4239, %v4239
      %v4242 = vmul.f32 %v4240, %v4240
      %v4243 = vsel %vm1355, %v4241, 0.0
      %4244 = vadd.xlane.f32.xlu0 %v4243
      %v4245 = vpop.xlane.xlu0 %4244
      %v4246 = vsel %vm1355, %v4242, 0.0
      %4247 = vadd.xlane.f32.xlu0 %v4246
      %v4248 = vpop.xlane.xlu0 %4247
      %v4249 = vsub.f32 %v4214, %v4237
      %v4250 = vsub.f32 %v4215, %v4238
      %v4251 = vmul.f32 %v4249, %v4249
      %v4252 = vmul.f32 %v4250, %v4250
      %v4253 = vsel %vm1436, %v4251, 0.0
      %4254 = vadd.xlane.f32.xlu0 %v4253
      %v4255 = vpop.xlane.xlu0 %4254
      %v4256 = vsel %vm1436, %v4252, 0.0
      %4257 = vadd.xlane.f32.xlu0 %v4256
      %v4258 = vpop.xlane.xlu0 %4257
      %v4259 = vadd.f32 %v4245, %v4255
      %v4260 = vadd.f32 %v4248, %v4258
      %v4261 = vmul.f32 %v4259, %v4236
      %v4262 = vmul.f32 %v4260, %v4236
      %v4263 = vadd.f32 %v4261, 1e-05
      %v4264 = vadd.f32 %v4262, 1e-05
      %v4265 = vrsqrt.pop %v4263
      %v4266 = vmul.f32 %v4265, %v4263
      %v4267 = vmul.f32 %v4266, %v4265
      %v4268 = vmul.f32 0.5, %v4267
      %v4269 = vsub.f32 1.5, %v4268
      %v4270 = vmul.f32 %v4265, %v4269
      %vm4271 = vweird.f32 %v4263
      %vm4272 = vweird.f32 %v4265
      %vm4273 = vmor %vm4271, %vm4272
      %v4274 = vsel %vm4273, %v4265, %v4270
      %v4275 = vrsqrt.pop %v4264
      %v4276 = vmul.f32 %v4275, %v4264
      %v4277 = vmul.f32 %v4276, %v4275
      %v4278 = vmul.f32 0.5, %v4277
      %v4279 = vsub.f32 1.5, %v4278
      %v4280 = vmul.f32 %v4275, %v4279
      %vm4281 = vweird.f32 %v4264
      %vm4282 = vweird.f32 %v4275
      %vm4283 = vmor %vm4281, %vm4282
      %v4284 = vsel %vm4283, %v4275, %v4280
      %v4285 = vmul.f32 %v4239, %v4274
      %v4286 = vmul.f32 %v4240, %v4284
      %v4287 = vld [vmem:[%s71] sm:$0x1]
      %v4289 = vperm.slane %v4287, 0
      %v4291 = vmul.f32 %v4285, %v4289
      %v4292 = vmul.f32 %v4286, %v4289
      %v4293 = vld [vmem:[%s73] sm:$0x1]
      %v4295 = vperm.slane %v4293, 0
      %v4297 = vadd.f32 %v4291, %v4295
      %v4298 = vadd.f32 %v4292, %v4295
      %4299 = vst.msk [vmem:[%s1272] sm:$0xff] %vm1355, %v4297
      %4300 = vst.msk [vmem:[%s1272 + $0x8] sm:$0xff] %vm1355, %v4298
      %v4301 = vmul.f32 %v4249, %v4274
      %v4302 = vmul.f32 %v4250, %v4284
      %v4303 = vld [vmem:[%s75] sm:$0x1]
      %v4305 = vperm.slane %v4303, 0
      %v4307 = vmul.f32 %v4301, %v4305
      %v4308 = vmul.f32 %v4302, %v4305
      %v4309 = vld [vmem:[%s77] sm:$0x1]
      %v4311 = vperm.slane %v4309, 0
      %v4313 = vadd.f32 %v4307, %v4311
      %v4314 = vadd.f32 %v4308, %v4311
      %4315 = vst.msk [vmem:[%s1277] sm:$0xff] %vm1436, %v4313
      %4316 = vst.msk [vmem:[%s1277 + $0x8] sm:$0xff] %vm1436, %v4314
      %p4317 = scmp.lt.s32.totalorder %s93, 1
      %s4318 = scalar_select %p4317, %s93, 1
      %s4319 = smul.addr %s4318, 2
      %s4320 = smul.addr %s4319, 8
      %s4321 = scalar_lea.vmem %s79, %s4320
      %p4322 = scmp.lt.s32.totalorder %s93, 1
      %s4323 = scalar_select %p4322, %s93, 1
      %s4324 = smul.addr %s4323, 2
      %s4325 = smul.addr %s4324, 8
      %s4326 = scalar_lea.vmem %s81, %s4325
      // Predicated region
      $region177: #{packed_block_forward.1} parent=175 // pred_check
        %p4327 = pneg %p950
      $region178: #{packed_block_forward.1} parent=175 // pred_check_branch
        %4329 = sbr.rel (%p4327) target = $region180
      $region179: #{packed_block_forward.1} parent=175 // pred_region
        _
      $region180: #{packed_block_forward.1} parent=175 // pred_fallthru
        _
      // Predicated region
      $region181: #{packed_block_forward.1} parent=175 // pred_check
        %p4330 = pneg %p976
      $region182: #{packed_block_forward.1} parent=175 // pred_check_branch
        %4332 = sbr.rel (%p4330) target = $region184
      $region183: #{packed_block_forward.1} parent=175 // pred_region
        _
      $region184: #{packed_block_forward.1} parent=175 // pred_fallthru
        _
    $region176: #{packed_block_forward.1} parent=5 // pred_fallthru
      _
    %p4333 = scmp.le.s32.totalorder 2, %s88
    // Predicated region
    $region185: #{packed_block_forward.1} parent=5 // pred_check
      %p4334 = pneg %p4333
    $region186: #{packed_block_forward.1} parent=5 // pred_check_branch
      %4336 = sbr.rel (%p4334) target = $region188
    $region187: #{packed_block_forward.1} parent=5 // pred_region
      %s4337 = ssub.s32 %s88, 2
      // Predicated region
      $region189: #{packed_block_forward.1} parent=187 // pred_check
        %p4338 = pneg %p956
      $region190: #{packed_block_forward.1} parent=187 // pred_check_branch
        %4340 = sbr.rel (%p4338) target = $region192
      $region191: #{packed_block_forward.1} parent=187 // pred_region
        %p4341 = scmp.lt.s32.totalorder %s94, 1
        %s4342 = scalar_select %p4341, %s94, 1
        %s4343 = smul.addr %s4342, 2
        %s4344 = smul.addr %s4343, 8
        %s4345 = scalar_lea.vmem %s79, %s4344
      $region192: #{packed_block_forward.1} parent=187 // pred_fallthru
        _
      // Predicated region
      $region193: #{packed_block_forward.1} parent=187 // pred_check
        %p4346 = pneg %p982
      $region194: #{packed_block_forward.1} parent=187 // pred_check_branch
        %4348 = sbr.rel (%p4346) target = $region196
      $region195: #{packed_block_forward.1} parent=187 // pred_region
        %p4349 = scmp.lt.s32.totalorder %s94, 1
        %s4350 = scalar_select %p4349, %s94, 1
        %s4351 = smul.addr %s4350, 2
        %s4352 = smul.addr %s4351, 8
        %s4353 = scalar_lea.vmem %s81, %s4352
      $region196: #{packed_block_forward.1} parent=187 // pred_fallthru
        _
    $region188: #{packed_block_forward.1} parent=5 // pred_fallthru
      _
  $region6: #{packed_block_forward.1} parent=0 // loop_footer
    %s92 = sadd.s32 1, %s88
  $region7: #{packed_block_forward.1} parent=0 // loop_footer_branch
    %87 = sbr.rel target = $region3
  $region8: #{packed_block_forward.1} parent=0 // loop_exit
    _

</llo_original>
